<compile_context>
chip_gen: v5e
topology: v5e:2x2
jax: 0.10.0
libtpu: 0.0.40
codegen_flags: <defaults>
</compile_context>

<pallas_src>
import jax
import jax.numpy as jnp
import numpy as np
from jax import lax
from jax.experimental import pallas as pl
from jax.experimental.pallas import tpu as pltpu

LANE = 128
SUBLANE = 8

# Weights could be cast to bfloat16 (MXU-native on v5e/v6e/v7x) for larger models;
# kept float32 here so the 1e-3 check against the f32 PyTorch-style reference holds.
WEIGHT_DTYPE = jnp.float32


def _round_up(x, m):
    return ((x + m - 1) // m) * m


# ----------------------------- Pallas kernel -------------------------------- #

def _recurrence(xg_ref, whh, Hp, T, B_pad, seq_out_ref, unroll):
    """Serial LSTM recurrence over T steps.

    xg_ref      : (T*B_pad, 4*Hp) VMEM scratch holding X @ W_ih + (b_ih + b_hh)
    whh         : (Hp, 4*Hp)      hidden->hidden weights (value, hoisted)
    seq_out_ref : optional (T*B_pad, Hp) ref for the h_t sequence (next layer's
                  input); None for the final layer.
    Returns the final hidden state (B_pad, Hp), float32.
    """
    h0 = jnp.zeros((B_pad, Hp), jnp.float32)
    c0 = jnp.zeros((B_pad, Hp), jnp.float32)

    def step(t, carry):
        h, c = carry
        row = pl.multiple_of(t * B_pad, SUBLANE)  # provably sublane-aligned start
        gates = (xg_ref[pl.ds(row, B_pad), :]
                 + jnp.dot(h, whh, preferred_element_type=jnp.float32))
        # PyTorch gate order i, f, g, o; each slot is a full 128-lane tile.
        i_g = jax.nn.sigmoid(gates[:, 0 * Hp:1 * Hp])
        f_g = jax.nn.sigmoid(gates[:, 1 * Hp:2 * Hp])
        g_g = jnp.tanh(gates[:, 2 * Hp:3 * Hp])
        o_g = jax.nn.sigmoid(gates[:, 3 * Hp:4 * Hp])
        c_new = f_g * c + i_g * g_g
        h_new = o_g * jnp.tanh(c_new)
        if seq_out_ref is not None:
            seq_out_ref[pl.ds(row, B_pad), :] = h_new
        return (h_new, c_new)

    h_last, _ = lax.fori_loop(0, T, step, (h0, c0), unroll=unroll)
    return h_last


def make_fused_lstm_kernel(num_layers, T, B_pad, Hp, unroll):
    """Kernel fusing all LSTM layers + the FC head into a single invocation.

    Ref order: x, (wih, whh, b) * num_layers, fc_w, fc_b, out, then scratch
    (0..2 ping-pong sequence buffers followed by the xg projection buffer).
    """

    def kernel(*refs):
        x_ref = refs[0]
        layer_refs = [refs[1 + 3 * l: 4 + 3 * l] for l in range(num_layers)]
        fcw_ref = refs[1 + 3 * num_layers]
        fcb_ref = refs[2 + 3 * num_layers]
        out_ref = refs[3 + 3 * num_layers]
        scratch = refs[4 + 3 * num_layers:]
        xg_ref = scratch[-1]
        seq_refs = scratch[:-1]

        cur_in = x_ref  # (T*B_pad, In_l) ref feeding the current layer
        h_last = None
        for l in range(num_layers):
            wih_ref, whh_ref, b_ref = layer_refs[l]
            # Batched input projection for all timesteps; bias folded in once.
            xg_ref[...] = (jnp.dot(cur_in[...], wih_ref[...],
                                   preferred_element_type=jnp.float32)
                           + b_ref[...])
            whh = whh_ref[...]  # hoisted out of the time loop
            is_last = (l == num_layers - 1)
            seq_out = None if is_last else seq_refs[l % len(seq_refs)]
            h_last = _recurrence(xg_ref, whh, Hp, T, B_pad, seq_out, unroll)
            if not is_last:
                cur_in = seq_out

        # Fused FC head: only (B_pad, O) ever leaves VMEM.
        out_ref[...] = (jnp.dot(h_last, fcw_ref[...],
                                preferred_element_type=jnp.float32)
                        + fcb_ref[...]).astype(out_ref.dtype)

    return kernel


# -------------------------------- Wrapper ------------------------------------ #

def lstm_model_forward(x, kparams):
    """Full LSTMModel forward.  x: (batch, seq, input_size) -> (batch, 1, output_size)."""
    B, T, In = x.shape
    lstm_layers = kparams["lstm"]
    num_layers = len(lstm_layers)
    Hp = lstm_layers[0][1].shape[0]          # whh_p: (Hp, 4*Hp)
    O = kparams["fc_b"].shape[-1]
    B_pad = _round_up(B, SUBLANE)

    # Wrapper-side layout plumbing: time-major, batch padded to 8 sublanes,
    # pre-flattened 2-D so the kernel never reshapes across (8,128) tiles.
    x_tm = jnp.transpose(x, (1, 0, 2))                       # (T, B, In)
    x_tm = jnp.pad(x_tm, ((0, 0), (0, B_pad - B), (0, 0)))   # (T, B_pad, In)
    x2d = x_tm.reshape(T * B_pad, In).astype(jnp.float32)

    flat_inputs = [x2d]
    for (wih_p, whh_p, b_p) in lstm_layers:
        flat_inputs += [wih_p, whh_p, b_p]
    flat_inputs += [kparams["fc_w_p"], kparams["fc_b"]]

    n_seq = 0 if num_layers == 1 else (1 if num_layers == 2 else 2)
    scratch_shapes = ([pltpu.VMEM((T * B_pad, Hp), jnp.float32)] * n_seq
                      + [pltpu.VMEM((T * B_pad, 4 * Hp), jnp.float32)])

    unroll = True if T <= 16 else 4
    kernel = make_fused_lstm_kernel(num_layers, T, B_pad, Hp, unroll)

    # ---- cost estimate & explicit VMEM budget -------------------------------
    flops = 2 * B_pad * Hp * O
    for l in range(num_layers):
        in_l = In if l == 0 else Hp
        flops += 2 * T * B_pad * in_l * 4 * Hp   # input-projection GEMM
        flops += 2 * T * B_pad * Hp * 4 * Hp     # recurrent matmuls
    transcendentals = num_layers * T * B_pad * Hp * 5   # 3 sigmoid + 2 tanh / step
    operand_bytes = sum(int(np.prod(a.shape)) * a.dtype.itemsize for a in flat_inputs)
    bytes_accessed = operand_bytes + B_pad * O * 4

    scratch_bytes = (n_seq * T * B_pad * Hp + T * B_pad * 4 * Hp) * 4
    # Clamp at 64 MiB (v7x physical); raise above the 16/32 MiB default scoped limit.
    vmem_budget = int(min(max(2 * (scratch_bytes + operand_bytes) + (4 << 20),
                              32 << 20),
                          64 << 20))

    out = pl.pallas_call(
        kernel,
        out_shape=jax.ShapeDtypeStruct((B_pad, O), jnp.float32),
        in_specs=[pl.BlockSpec(memory_space=pltpu.MemorySpace.VMEM)] * len(flat_inputs),
        out_specs=pl.BlockSpec(memory_space=pltpu.MemorySpace.VMEM),
        scratch_shapes=scratch_shapes,
        compiler_params=pltpu.CompilerParams(vmem_limit_bytes=vmem_budget),
        cost_estimate=pl.CostEstimate(flops=flops,
                                      transcendentals=transcendentals,
                                      bytes_accessed=bytes_accessed),
    )(*flat_inputs)

    return out[:B, None, :]  # drop batch padding; unsqueeze(1)


# --------------------------- Parameter construction -------------------------- #

def init_params(key, input_size, hidden_size, num_layers, output_size):
    """PyTorch-shaped params: W_ih (4H, in), W_hh (4H, H), b_ih/b_hh (4H), fc (O, H)."""
    k = 1.0 / np.sqrt(hidden_size)
    lstm = []
    for layer in range(num_layers):
        in_sz = input_size if layer == 0 else hidden_size
        key, k1, k2, k3, k4 = jax.random.split(key, 5)
        w_ih = jax.random.uniform(k1, (4 * hidden_size, in_sz), jnp.float32, -k, k)
        w_hh = jax.random.uniform(k2, (4 * hidden_size, hidden_size), jnp.float32, -k, k)
        b_ih = jax.random.uniform(k3, (4 * hidden_size,), jnp.float32, -k, k)
        b_hh = jax.random.uniform(k4, (4 * hidden_size,), jnp.float32, -k, k)
        lstm.append((w_ih, w_hh, b_ih, b_hh))
    key, k5, k6 = jax.random.split(key, 3)
    fc_w = jax.random.uniform(k5, (output_size, hidden_size), jnp.float32, -k, k)
    fc_b = jax.random.uniform(k6, (output_size,), jnp.float32, -k, k)
    return {"lstm": lstm, "fc_w": fc_w, "fc_b": fc_b}


def prepare_kernel_params(params, input_size, hidden_size):
    """Repack PyTorch-shaped params into the kernel layout.

    Each of the 4 gates gets its own lane-aligned Hp-wide slot (Hp = ceil128(H)) so
    in-kernel gate slicing is tile-aligned; pad rows/lanes are zero so padded
    hidden-state columns stay exactly zero and the FC ignores them (valid because
    h0/c0 are zero, as in the PyTorch module).
    """
    H = hidden_size
    Hp = _round_up(H, LANE)
    lstm_k = []
    for layer, (w_ih, w_hh, b_ih, b_hh) in enumerate(params["lstm"]):
        in_sz = input_size if layer == 0 else H
        in_pad = in_sz if layer == 0 else Hp  # prev layer output is Hp-padded
        wih_t = w_ih.T          # (in_sz, 4H)
        whh_t = w_hh.T          # (H, 4H)
        bias = b_ih + b_hh      # (4H,)
        wih_p = jnp.zeros((in_pad, 4 * Hp), jnp.float32)
        whh_p = jnp.zeros((Hp, 4 * Hp), jnp.float32)
        b_p = jnp.zeros((1, 4 * Hp), jnp.float32)
        for g in range(4):
            wih_p = wih_p.at[:in_sz, g * Hp:g * Hp + H].set(wih_t[:, g * H:(g + 1) * H])
            whh_p = whh_p.at[:H, g * Hp:g * Hp + H].set(whh_t[:, g * H:(g + 1) * H])
            b_p = b_p.at[0, g * Hp:g * Hp + H].set(bias[g * H:(g + 1) * H])
        lstm_k.append((wih_p.astype(WEIGHT_DTYPE), whh_p.astype(WEIGHT_DTYPE),
                       b_p.astype(jnp.float32)))
    fc_w_p = jnp.zeros((Hp, params["fc_w"].shape[0]), jnp.float32)
    fc_w_p = fc_w_p.at[:H, :].set(params["fc_w"].T).astype(WEIGHT_DTYPE)
    fc_b = params["fc_b"][None, :].astype(jnp.float32)
    return {"lstm": lstm_k, "fc_w_p": fc_w_p, "fc_b": fc_b}


# ------------------------------ Pure-JAX reference --------------------------- #

def reference_forward(x, params):
    B = x.shape[0]
    xs = jnp.transpose(x, (1, 0, 2))
    for (w_ih, w_hh, b_ih, b_hh) in params["lstm"]:
        H = w_hh.shape[1]
        wih_t, whh_t = w_ih.T, w_hh.T
        bias = (b_ih + b_hh)[None, :]
        h = jnp.zeros((B, H), jnp.float32)
        c = jnp.zeros((B, H), jnp.float32)

        def step(carry, x_t):
            h, c = carry
            gates = x_t @ wih_t + h @ whh_t + bias
            i = jax.nn.sigmoid(gates[:, 0 * H:1 * H])
            f = jax.nn.sigmoid(gates[:, 1 * H:2 * H])
            g = jnp.tanh(gates[:, 2 * H:3 * H])
            o = jax.nn.sigmoid(gates[:, 3 * H:4 * H])
            c = f * c + i * g
            h = o * jnp.tanh(c)
            return (h, c), h

        (_, _), xs = jax.lax.scan(step, (h, c), xs)
    out = xs[-1] @ params["fc_w"].T + params["fc_b"][None, :]
    return out[:, None, :]


# ----------------------------------- Main ------------------------------------ #

if __name__ == "__main__":
    batch, seq = 2, 8
    input_size, hidden_size, num_layers, output_size = 16, 32, 2, 4

    key = jax.random.PRNGKey(0)
    key, kx, kp = jax.random.split(key, 3)
    x = jax.random.normal(kx, (batch, seq, input_size), jnp.float32)
    params = init_params(kp, input_size, hidden_size, num_layers, output_size)
    kparams = prepare_kernel_params(params, input_size, hidden_size)

    fwd = jax.jit(lstm_model_forward)
    out = jax.block_until_ready(fwd(x, kparams))

    assert out.shape == (batch, 1, output_size), out.shape

    ref = jax.block_until_ready(reference_forward(x, params))
    np.testing.assert_allclose(np.asarray(out), np.asarray(ref), rtol=1e-3, atol=1e-3)

    print("KERNEL_OK")
</pallas_src>

<mosaic_0001>
module attributes {stable_mosaic.version = 11 : i64} {
  func.func @kernel(%arg0: memref<64x16xf32, #tpu.memory_space<vmem>>, %arg1: memref<16x512xf32, #tpu.memory_space<vmem>>, %arg2: memref<128x512xf32, #tpu.memory_space<vmem>>, %arg3: memref<1x512xf32, #tpu.memory_space<vmem>>, %arg4: memref<128x512xf32, #tpu.memory_space<vmem>>, %arg5: memref<128x512xf32, #tpu.memory_space<vmem>>, %arg6: memref<1x512xf32, #tpu.memory_space<vmem>>, %arg7: memref<128x4xf32, #tpu.memory_space<vmem>>, %arg8: memref<1x4xf32, #tpu.memory_space<vmem>>, %arg9: memref<8x4xf32, #tpu.memory_space<vmem>>, %arg10: memref<64x128xf32, #tpu.memory_space<vmem>>, %arg11: memref<64x512xf32, #tpu.memory_space<vmem>>) attributes {dimension_semantics = [], scalar_prefetch = 0 : i64, scratch_operands = 2 : i64, tpu.core_type = #tpu.core_type<tc>} {
    %c0 = arith.constant 0 : index
    %c0_0 = arith.constant 0 : index
    %0 = vector.load %arg0[%c0, %c0_0] : memref<64x16xf32, #tpu.memory_space<vmem>>, vector<64x16xf32>
    %c0_1 = arith.constant 0 : index
    %c0_2 = arith.constant 0 : index
    %1 = vector.load %arg1[%c0_1, %c0_2] : memref<16x512xf32, #tpu.memory_space<vmem>>, vector<16x512xf32>
    %cst = arith.constant dense<0.000000e+00> : vector<64x512xf32>
    %2 = tpu.matmul %0, %1, %cst {dimension_numbers = #tpu.dot_dimension_numbers<[1], [0], [0], [1], [0, 0, 1, 1], [], []>} : vector<64x16xf32>, vector<16x512xf32>, vector<64x512xf32> -> vector<64x512xf32>
    %c0_3 = arith.constant 0 : index
    %c0_4 = arith.constant 0 : index
    %3 = vector.load %arg3[%c0_3, %c0_4] : memref<1x512xf32, #tpu.memory_space<vmem>>, vector<1x512xf32>
    %4 = vector.broadcast %3 : vector<1x512xf32> to vector<64x512xf32>
    %5 = arith.addf %2, %4 : vector<64x512xf32>
    %c0_5 = arith.constant 0 : index
    %c0_6 = arith.constant 0 : index
    %6 = vector.load %arg11[%c0_5, %c0_6] : memref<64x512xf32, #tpu.memory_space<vmem>>, vector<64x512xf32>
    tpu.vector_store %arg11[%c0_5, %c0_6], %5 {strides = array<i32>} : memref<64x512xf32, #tpu.memory_space<vmem>>, vector<64x512xf32>,
    %c0_7 = arith.constant 0 : index
    %c0_8 = arith.constant 0 : index
    %7 = vector.load %arg2[%c0_7, %c0_8] : memref<128x512xf32, #tpu.memory_space<vmem>>, vector<128x512xf32>
    %cst_9 = arith.constant 0.000000e+00 : f32
    %8 = vector.broadcast %cst_9 : f32 to vector<8x128xf32>
    %cst_10 = arith.constant 0.000000e+00 : f32
    %9 = vector.broadcast %cst_10 : f32 to vector<8x128xf32>
    %c0_i32 = arith.constant 0 : i32
    %c8_i32 = arith.constant 8 : i32
    %10 = arith.muli %c0_i32, %c8_i32 : i32
    %11 = tpu.assume_multiple %10, 8 : i32
    %12 = arith.index_cast %11 : i32 to index
    %c0_11 = arith.constant 0 : index
    %13 = vector.load %arg11[%12, %c0_11] : memref<64x512xf32, #tpu.memory_space<vmem>>, vector<8x512xf32>
    %cst_12 = arith.constant dense<0.000000e+00> : vector<8x512xf32>
    %14 = tpu.matmul %8, %7, %cst_12 {dimension_numbers = #tpu.dot_dimension_numbers<[1], [0], [0], [1], [0, 0, 1, 1], [], []>} : vector<8x128xf32>, vector<128x512xf32>, vector<8x512xf32> -> vector<8x512xf32>
    %15 = arith.addf %13, %14 : vector<8x512xf32>
    %16 = vector.extract_strided_slice %15 {offsets = [0, 0], sizes = [8, 128], strides = [1, 1]} : vector<8x512xf32> to vector<8x128xf32>
    %17 = arith.negf %16 : vector<8x128xf32>
    %18 = math.exp %17 : vector<8x128xf32>
    %cst_13 = arith.constant 1.000000e+00 : f32
    %19 = vector.broadcast %cst_13 : f32 to vector<8x128xf32>
    %20 = arith.addf %19, %18 : vector<8x128xf32>
    %21 = arith.divf %19, %20 : vector<8x128xf32>
    %22 = vector.extract_strided_slice %15 {offsets = [0, 128], sizes = [8, 128], strides = [1, 1]} : vector<8x512xf32> to vector<8x128xf32>
    %23 = arith.negf %22 : vector<8x128xf32>
    %24 = math.exp %23 : vector<8x128xf32>
    %cst_14 = arith.constant 1.000000e+00 : f32
    %25 = vector.broadcast %cst_14 : f32 to vector<8x128xf32>
    %26 = arith.addf %25, %24 : vector<8x128xf32>
    %27 = arith.divf %25, %26 : vector<8x128xf32>
    %28 = vector.extract_strided_slice %15 {offsets = [0, 256], sizes = [8, 128], strides = [1, 1]} : vector<8x512xf32> to vector<8x128xf32>
    %29 = math.tanh %28 : vector<8x128xf32>
    %30 = vector.extract_strided_slice %15 {offsets = [0, 384], sizes = [8, 128], strides = [1, 1]} : vector<8x512xf32> to vector<8x128xf32>
    %31 = arith.negf %30 : vector<8x128xf32>
    %32 = math.exp %31 : vector<8x128xf32>
    %cst_15 = arith.constant 1.000000e+00 : f32
    %33 = vector.broadcast %cst_15 : f32 to vector<8x128xf32>
    %34 = arith.addf %33, %32 : vector<8x128xf32>
    %35 = arith.divf %33, %34 : vector<8x128xf32>
    %36 = arith.mulf %27, %9 : vector<8x128xf32>
    %37 = arith.mulf %21, %29 : vector<8x128xf32>
    %38 = arith.addf %36, %37 : vector<8x128xf32>
    %39 = math.tanh %38 : vector<8x128xf32>
    %40 = arith.mulf %35, %39 : vector<8x128xf32>
    %41 = arith.index_cast %11 : i32 to index
    %c0_16 = arith.constant 0 : index
    %42 = vector.load %arg10[%41, %c0_16] : memref<64x128xf32, #tpu.memory_space<vmem>>, vector<8x128xf32>
    tpu.vector_store %arg10[%41, %c0_16], %40 {strides = array<i32>} : memref<64x128xf32, #tpu.memory_space<vmem>>, vector<8x128xf32>,
    %c1_i32 = arith.constant 1 : i32
    %c8_i32_17 = arith.constant 8 : i32
    %43 = arith.muli %c1_i32, %c8_i32_17 : i32
    %44 = tpu.assume_multiple %43, 8 : i32
    %45 = arith.index_cast %44 : i32 to index
    %c0_18 = arith.constant 0 : index
    %46 = vector.load %arg11[%45, %c0_18] : memref<64x512xf32, #tpu.memory_space<vmem>>, vector<8x512xf32>
    %cst_19 = arith.constant dense<0.000000e+00> : vector<8x512xf32>
    %47 = tpu.matmul %40, %7, %cst_19 {dimension_numbers = #tpu.dot_dimension_numbers<[1], [0], [0], [1], [0, 0, 1, 1], [], []>} : vector<8x128xf32>, vector<128x512xf32>, vector<8x512xf32> -> vector<8x512xf32>
    %48 = arith.addf %46, %47 : vector<8x512xf32>
    %49 = vector.extract_strided_slice %48 {offsets = [0, 0], sizes = [8, 128], strides = [1, 1]} : vector<8x512xf32> to vector<8x128xf32>
    %50 = arith.negf %49 : vector<8x128xf32>
    %51 = math.exp %50 : vector<8x128xf32>
    %cst_20 = arith.constant 1.000000e+00 : f32
    %52 = vector.broadcast %cst_20 : f32 to vector<8x128xf32>
    %53 = arith.addf %52, %51 : vector<8x128xf32>
    %54 = arith.divf %52, %53 : vector<8x128xf32>
    %55 = vector.extract_strided_slice %48 {offsets = [0, 128], sizes = [8, 128], strides = [1, 1]} : vector<8x512xf32> to vector<8x128xf32>
    %56 = arith.negf %55 : vector<8x128xf32>
    %57 = math.exp %56 : vector<8x128xf32>
    %cst_21 = arith.constant 1.000000e+00 : f32
    %58 = vector.broadcast %cst_21 : f32 to vector<8x128xf32>
    %59 = arith.addf %58, %57 : vector<8x128xf32>
    %60 = arith.divf %58, %59 : vector<8x128xf32>
    %61 = vector.extract_strided_slice %48 {offsets = [0, 256], sizes = [8, 128], strides = [1, 1]} : vector<8x512xf32> to vector<8x128xf32>
    %62 = math.tanh %61 : vector<8x128xf32>
    %63 = vector.extract_strided_slice %48 {offsets = [0, 384], sizes = [8, 128], strides = [1, 1]} : vector<8x512xf32> to vector<8x128xf32>
    %64 = arith.negf %63 : vector<8x128xf32>
    %65 = math.exp %64 : vector<8x128xf32>
    %cst_22 = arith.constant 1.000000e+00 : f32
    %66 = vector.broadcast %cst_22 : f32 to vector<8x128xf32>
    %67 = arith.addf %66, %65 : vector<8x128xf32>
    %68 = arith.divf %66, %67 : vector<8x128xf32>
    %69 = arith.mulf %60, %38 : vector<8x128xf32>
    %70 = arith.mulf %54, %62 : vector<8x128xf32>
    %71 = arith.addf %69, %70 : vector<8x128xf32>
    %72 = math.tanh %71 : vector<8x128xf32>
    %73 = arith.mulf %68, %72 : vector<8x128xf32>
    %74 = arith.index_cast %44 : i32 to index
    %c0_23 = arith.constant 0 : index
    %75 = vector.load %arg10[%74, %c0_23] : memref<64x128xf32, #tpu.memory_space<vmem>>, vector<8x128xf32>
    tpu.vector_store %arg10[%74, %c0_23], %73 {strides = array<i32>} : memref<64x128xf32, #tpu.memory_space<vmem>>, vector<8x128xf32>,
    %c2_i32 = arith.constant 2 : i32
    %c8_i32_24 = arith.constant 8 : i32
    %76 = arith.muli %c2_i32, %c8_i32_24 : i32
    %77 = tpu.assume_multiple %76, 8 : i32
    %78 = arith.index_cast %77 : i32 to index
    %c0_25 = arith.constant 0 : index
    %79 = vector.load %arg11[%78, %c0_25] : memref<64x512xf32, #tpu.memory_space<vmem>>, vector<8x512xf32>
    %cst_26 = arith.constant dense<0.000000e+00> : vector<8x512xf32>
    %80 = tpu.matmul %73, %7, %cst_26 {dimension_numbers = #tpu.dot_dimension_numbers<[1], [0], [0], [1], [0, 0, 1, 1], [], []>} : vector<8x128xf32>, vector<128x512xf32>, vector<8x512xf32> -> vector<8x512xf32>
    %81 = arith.addf %79, %80 : vector<8x512xf32>
    %82 = vector.extract_strided_slice %81 {offsets = [0, 0], sizes = [8, 128], strides = [1, 1]} : vector<8x512xf32> to vector<8x128xf32>
    %83 = arith.negf %82 : vector<8x128xf32>
    %84 = math.exp %83 : vector<8x128xf32>
    %cst_27 = arith.constant 1.000000e+00 : f32
    %85 = vector.broadcast %cst_27 : f32 to vector<8x128xf32>
    %86 = arith.addf %85, %84 : vector<8x128xf32>
    %87 = arith.divf %85, %86 : vector<8x128xf32>
    %88 = vector.extract_strided_slice %81 {offsets = [0, 128], sizes = [8, 128], strides = [1, 1]} : vector<8x512xf32> to vector<8x128xf32>
    %89 = arith.negf %88 : vector<8x128xf32>
    %90 = math.exp %89 : vector<8x128xf32>
    %cst_28 = arith.constant 1.000000e+00 : f32
    %91 = vector.broadcast %cst_28 : f32 to vector<8x128xf32>
    %92 = arith.addf %91, %90 : vector<8x128xf32>
    %93 = arith.divf %91, %92 : vector<8x128xf32>
    %94 = vector.extract_strided_slice %81 {offsets = [0, 256], sizes = [8, 128], strides = [1, 1]} : vector<8x512xf32> to vector<8x128xf32>
    %95 = math.tanh %94 : vector<8x128xf32>
    %96 = vector.extract_strided_slice %81 {offsets = [0, 384], sizes = [8, 128], strides = [1, 1]} : vector<8x512xf32> to vector<8x128xf32>
    %97 = arith.negf %96 : vector<8x128xf32>
    %98 = math.exp %97 : vector<8x128xf32>
    %cst_29 = arith.constant 1.000000e+00 : f32
    %99 = vector.broadcast %cst_29 : f32 to vector<8x128xf32>
    %100 = arith.addf %99, %98 : vector<8x128xf32>
    %101 = arith.divf %99, %100 : vector<8x128xf32>
    %102 = arith.mulf %93, %71 : vector<8x128xf32>
    %103 = arith.mulf %87, %95 : vector<8x128xf32>
    %104 = arith.addf %102, %103 : vector<8x128xf32>
    %105 = math.tanh %104 : vector<8x128xf32>
    %106 = arith.mulf %101, %105 : vector<8x128xf32>
    %107 = arith.index_cast %77 : i32 to index
    %c0_30 = arith.constant 0 : index
    %108 = vector.load %arg10[%107, %c0_30] : memref<64x128xf32, #tpu.memory_space<vmem>>, vector<8x128xf32>
    tpu.vector_store %arg10[%107, %c0_30], %106 {strides = array<i32>} : memref<64x128xf32, #tpu.memory_space<vmem>>, vector<8x128xf32>,
    %c3_i32 = arith.constant 3 : i32
    %c8_i32_31 = arith.constant 8 : i32
    %109 = arith.muli %c3_i32, %c8_i32_31 : i32
    %110 = tpu.assume_multiple %109, 8 : i32
    %111 = arith.index_cast %110 : i32 to index
    %c0_32 = arith.constant 0 : index
    %112 = vector.load %arg11[%111, %c0_32] : memref<64x512xf32, #tpu.memory_space<vmem>>, vector<8x512xf32>
    %cst_33 = arith.constant dense<0.000000e+00> : vector<8x512xf32>
    %113 = tpu.matmul %106, %7, %cst_33 {dimension_numbers = #tpu.dot_dimension_numbers<[1], [0], [0], [1], [0, 0, 1, 1], [], []>} : vector<8x128xf32>, vector<128x512xf32>, vector<8x512xf32> -> vector<8x512xf32>
    %114 = arith.addf %112, %113 : vector<8x512xf32>
    %115 = vector.extract_strided_slice %114 {offsets = [0, 0], sizes = [8, 128], strides = [1, 1]} : vector<8x512xf32> to vector<8x128xf32>
    %116 = arith.negf %115 : vector<8x128xf32>
    %117 = math.exp %116 : vector<8x128xf32>
    %cst_34 = arith.constant 1.000000e+00 : f32
    %118 = vector.broadcast %cst_34 : f32 to vector<8x128xf32>
    %119 = arith.addf %118, %117 : vector<8x128xf32>
    %120 = arith.divf %118, %119 : vector<8x128xf32>
    %121 = vector.extract_strided_slice %114 {offsets = [0, 128], sizes = [8, 128], strides = [1, 1]} : vector<8x512xf32> to vector<8x128xf32>
    %122 = arith.negf %121 : vector<8x128xf32>
    %123 = math.exp %122 : vector<8x128xf32>
    %cst_35 = arith.constant 1.000000e+00 : f32
    %124 = vector.broadcast %cst_35 : f32 to vector<8x128xf32>
    %125 = arith.addf %124, %123 : vector<8x128xf32>
    %126 = arith.divf %124, %125 : vector<8x128xf32>
    %127 = vector.extract_strided_slice %114 {offsets = [0, 256], sizes = [8, 128], strides = [1, 1]} : vector<8x512xf32> to vector<8x128xf32>
    %128 = math.tanh %127 : vector<8x128xf32>
    %129 = vector.extract_strided_slice %114 {offsets = [0, 384], sizes = [8, 128], strides = [1, 1]} : vector<8x512xf32> to vector<8x128xf32>
    %130 = arith.negf %129 : vector<8x128xf32>
    %131 = math.exp %130 : vector<8x128xf32>
    %cst_36 = arith.constant 1.000000e+00 : f32
    %132 = vector.broadcast %cst_36 : f32 to vector<8x128xf32>
    %133 = arith.addf %132, %131 : vector<8x128xf32>
    %134 = arith.divf %132, %133 : vector<8x128xf32>
    %135 = arith.mulf %126, %104 : vector<8x128xf32>
    %136 = arith.mulf %120, %128 : vector<8x128xf32>
    %137 = arith.addf %135, %136 : vector<8x128xf32>
    %138 = math.tanh %137 : vector<8x128xf32>
    %139 = arith.mulf %134, %138 : vector<8x128xf32>
    %140 = arith.index_cast %110 : i32 to index
    %c0_37 = arith.constant 0 : index
    %141 = vector.load %arg10[%140, %c0_37] : memref<64x128xf32, #tpu.memory_space<vmem>>, vector<8x128xf32>
    tpu.vector_store %arg10[%140, %c0_37], %139 {strides = array<i32>} : memref<64x128xf32, #tpu.memory_space<vmem>>, vector<8x128xf32>,
    %c4_i32 = arith.constant 4 : i32
    %c8_i32_38 = arith.constant 8 : i32
    %142 = arith.muli %c4_i32, %c8_i32_38 : i32
    %143 = tpu.assume_multiple %142, 8 : i32
    %144 = arith.index_cast %143 : i32 to index
    %c0_39 = arith.constant 0 : index
    %145 = vector.load %arg11[%144, %c0_39] : memref<64x512xf32, #tpu.memory_space<vmem>>, vector<8x512xf32>
    %cst_40 = arith.constant dense<0.000000e+00> : vector<8x512xf32>
    %146 = tpu.matmul %139, %7, %cst_40 {dimension_numbers = #tpu.dot_dimension_numbers<[1], [0], [0], [1], [0, 0, 1, 1], [], []>} : vector<8x128xf32>, vector<128x512xf32>, vector<8x512xf32> -> vector<8x512xf32>
    %147 = arith.addf %145, %146 : vector<8x512xf32>
    %148 = vector.extract_strided_slice %147 {offsets = [0, 0], sizes = [8, 128], strides = [1, 1]} : vector<8x512xf32> to vector<8x128xf32>
    %149 = arith.negf %148 : vector<8x128xf32>
    %150 = math.exp %149 : vector<8x128xf32>
    %cst_41 = arith.constant 1.000000e+00 : f32
    %151 = vector.broadcast %cst_41 : f32 to vector<8x128xf32>
    %152 = arith.addf %151, %150 : vector<8x128xf32>
    %153 = arith.divf %151, %152 : vector<8x128xf32>
    %154 = vector.extract_strided_slice %147 {offsets = [0, 128], sizes = [8, 128], strides = [1, 1]} : vector<8x512xf32> to vector<8x128xf32>
    %155 = arith.negf %154 : vector<8x128xf32>
    %156 = math.exp %155 : vector<8x128xf32>
    %cst_42 = arith.constant 1.000000e+00 : f32
    %157 = vector.broadcast %cst_42 : f32 to vector<8x128xf32>
    %158 = arith.addf %157, %156 : vector<8x128xf32>
    %159 = arith.divf %157, %158 : vector<8x128xf32>
    %160 = vector.extract_strided_slice %147 {offsets = [0, 256], sizes = [8, 128], strides = [1, 1]} : vector<8x512xf32> to vector<8x128xf32>
    %161 = math.tanh %160 : vector<8x128xf32>
    %162 = vector.extract_strided_slice %147 {offsets = [0, 384], sizes = [8, 128], strides = [1, 1]} : vector<8x512xf32> to vector<8x128xf32>
    %163 = arith.negf %162 : vector<8x128xf32>
    %164 = math.exp %163 : vector<8x128xf32>
    %cst_43 = arith.constant 1.000000e+00 : f32
    %165 = vector.broadcast %cst_43 : f32 to vector<8x128xf32>
    %166 = arith.addf %165, %164 : vector<8x128xf32>
    %167 = arith.divf %165, %166 : vector<8x128xf32>
    %168 = arith.mulf %159, %137 : vector<8x128xf32>
    %169 = arith.mulf %153, %161 : vector<8x128xf32>
    %170 = arith.addf %168, %169 : vector<8x128xf32>
    %171 = math.tanh %170 : vector<8x128xf32>
    %172 = arith.mulf %167, %171 : vector<8x128xf32>
    %173 = arith.index_cast %143 : i32 to index
    %c0_44 = arith.constant 0 : index
    %174 = vector.load %arg10[%173, %c0_44] : memref<64x128xf32, #tpu.memory_space<vmem>>, vector<8x128xf32>
    tpu.vector_store %arg10[%173, %c0_44], %172 {strides = array<i32>} : memref<64x128xf32, #tpu.memory_space<vmem>>, vector<8x128xf32>,
    %c5_i32 = arith.constant 5 : i32
    %c8_i32_45 = arith.constant 8 : i32
    %175 = arith.muli %c5_i32, %c8_i32_45 : i32
    %176 = tpu.assume_multiple %175, 8 : i32
    %177 = arith.index_cast %176 : i32 to index
    %c0_46 = arith.constant 0 : index
    %178 = vector.load %arg11[%177, %c0_46] : memref<64x512xf32, #tpu.memory_space<vmem>>, vector<8x512xf32>
    %cst_47 = arith.constant dense<0.000000e+00> : vector<8x512xf32>
    %179 = tpu.matmul %172, %7, %cst_47 {dimension_numbers = #tpu.dot_dimension_numbers<[1], [0], [0], [1], [0, 0, 1, 1], [], []>} : vector<8x128xf32>, vector<128x512xf32>, vector<8x512xf32> -> vector<8x512xf32>
    %180 = arith.addf %178, %179 : vector<8x512xf32>
    %181 = vector.extract_strided_slice %180 {offsets = [0, 0], sizes = [8, 128], strides = [1, 1]} : vector<8x512xf32> to vector<8x128xf32>
    %182 = arith.negf %181 : vector<8x128xf32>
    %183 = math.exp %182 : vector<8x128xf32>
    %cst_48 = arith.constant 1.000000e+00 : f32
    %184 = vector.broadcast %cst_48 : f32 to vector<8x128xf32>
    %185 = arith.addf %184, %183 : vector<8x128xf32>
    %186 = arith.divf %184, %185 : vector<8x128xf32>
    %187 = vector.extract_strided_slice %180 {offsets = [0, 128], sizes = [8, 128], strides = [1, 1]} : vector<8x512xf32> to vector<8x128xf32>
    %188 = arith.negf %187 : vector<8x128xf32>
    %189 = math.exp %188 : vector<8x128xf32>
    %cst_49 = arith.constant 1.000000e+00 : f32
    %190 = vector.broadcast %cst_49 : f32 to vector<8x128xf32>
    %191 = arith.addf %190, %189 : vector<8x128xf32>
    %192 = arith.divf %190, %191 : vector<8x128xf32>
    %193 = vector.extract_strided_slice %180 {offsets = [0, 256], sizes = [8, 128], strides = [1, 1]} : vector<8x512xf32> to vector<8x128xf32>
    %194 = math.tanh %193 : vector<8x128xf32>
    %195 = vector.extract_strided_slice %180 {offsets = [0, 384], sizes = [8, 128], strides = [1, 1]} : vector<8x512xf32> to vector<8x128xf32>
    %196 = arith.negf %195 : vector<8x128xf32>
    %197 = math.exp %196 : vector<8x128xf32>
    %cst_50 = arith.constant 1.000000e+00 : f32
    %198 = vector.broadcast %cst_50 : f32 to vector<8x128xf32>
    %199 = arith.addf %198, %197 : vector<8x128xf32>
    %200 = arith.divf %198, %199 : vector<8x128xf32>
    %201 = arith.mulf %192, %170 : vector<8x128xf32>
    %202 = arith.mulf %186, %194 : vector<8x128xf32>
    %203 = arith.addf %201, %202 : vector<8x128xf32>
    %204 = math.tanh %203 : vector<8x128xf32>
    %205 = arith.mulf %200, %204 : vector<8x128xf32>
    %206 = arith.index_cast %176 : i32 to index
    %c0_51 = arith.constant 0 : index
    %207 = vector.load %arg10[%206, %c0_51] : memref<64x128xf32, #tpu.memory_space<vmem>>, vector<8x128xf32>
    tpu.vector_store %arg10[%206, %c0_51], %205 {strides = array<i32>} : memref<64x128xf32, #tpu.memory_space<vmem>>, vector<8x128xf32>,
    %c6_i32 = arith.constant 6 : i32
    %c8_i32_52 = arith.constant 8 : i32
    %208 = arith.muli %c6_i32, %c8_i32_52 : i32
    %209 = tpu.assume_multiple %208, 8 : i32
    %210 = arith.index_cast %209 : i32 to index
    %c0_53 = arith.constant 0 : index
    %211 = vector.load %arg11[%210, %c0_53] : memref<64x512xf32, #tpu.memory_space<vmem>>, vector<8x512xf32>
    %cst_54 = arith.constant dense<0.000000e+00> : vector<8x512xf32>
    %212 = tpu.matmul %205, %7, %cst_54 {dimension_numbers = #tpu.dot_dimension_numbers<[1], [0], [0], [1], [0, 0, 1, 1], [], []>} : vector<8x128xf32>, vector<128x512xf32>, vector<8x512xf32> -> vector<8x512xf32>
    %213 = arith.addf %211, %212 : vector<8x512xf32>
    %214 = vector.extract_strided_slice %213 {offsets = [0, 0], sizes = [8, 128], strides = [1, 1]} : vector<8x512xf32> to vector<8x128xf32>
    %215 = arith.negf %214 : vector<8x128xf32>
    %216 = math.exp %215 : vector<8x128xf32>
    %cst_55 = arith.constant 1.000000e+00 : f32
    %217 = vector.broadcast %cst_55 : f32 to vector<8x128xf32>
    %218 = arith.addf %217, %216 : vector<8x128xf32>
    %219 = arith.divf %217, %218 : vector<8x128xf32>
    %220 = vector.extract_strided_slice %213 {offsets = [0, 128], sizes = [8, 128], strides = [1, 1]} : vector<8x512xf32> to vector<8x128xf32>
    %221 = arith.negf %220 : vector<8x128xf32>
    %222 = math.exp %221 : vector<8x128xf32>
    %cst_56 = arith.constant 1.000000e+00 : f32
    %223 = vector.broadcast %cst_56 : f32 to vector<8x128xf32>
    %224 = arith.addf %223, %222 : vector<8x128xf32>
    %225 = arith.divf %223, %224 : vector<8x128xf32>
    %226 = vector.extract_strided_slice %213 {offsets = [0, 256], sizes = [8, 128], strides = [1, 1]} : vector<8x512xf32> to vector<8x128xf32>
    %227 = math.tanh %226 : vector<8x128xf32>
    %228 = vector.extract_strided_slice %213 {offsets = [0, 384], sizes = [8, 128], strides = [1, 1]} : vector<8x512xf32> to vector<8x128xf32>
    %229 = arith.negf %228 : vector<8x128xf32>
    %230 = math.exp %229 : vector<8x128xf32>
    %cst_57 = arith.constant 1.000000e+00 : f32
    %231 = vector.broadcast %cst_57 : f32 to vector<8x128xf32>
    %232 = arith.addf %231, %230 : vector<8x128xf32>
    %233 = arith.divf %231, %232 : vector<8x128xf32>
    %234 = arith.mulf %225, %203 : vector<8x128xf32>
    %235 = arith.mulf %219, %227 : vector<8x128xf32>
    %236 = arith.addf %234, %235 : vector<8x128xf32>
    %237 = math.tanh %236 : vector<8x128xf32>
    %238 = arith.mulf %233, %237 : vector<8x128xf32>
    %239 = arith.index_cast %209 : i32 to index
    %c0_58 = arith.constant 0 : index
    %240 = vector.load %arg10[%239, %c0_58] : memref<64x128xf32, #tpu.memory_space<vmem>>, vector<8x128xf32>
    tpu.vector_store %arg10[%239, %c0_58], %238 {strides = array<i32>} : memref<64x128xf32, #tpu.memory_space<vmem>>, vector<8x128xf32>,
    %c7_i32 = arith.constant 7 : i32
    %c8_i32_59 = arith.constant 8 : i32
    %241 = arith.muli %c7_i32, %c8_i32_59 : i32
    %242 = tpu.assume_multiple %241, 8 : i32
    %243 = arith.index_cast %242 : i32 to index
    %c0_60 = arith.constant 0 : index
    %244 = vector.load %arg11[%243, %c0_60] : memref<64x512xf32, #tpu.memory_space<vmem>>, vector<8x512xf32>
    %cst_61 = arith.constant dense<0.000000e+00> : vector<8x512xf32>
    %245 = tpu.matmul %238, %7, %cst_61 {dimension_numbers = #tpu.dot_dimension_numbers<[1], [0], [0], [1], [0, 0, 1, 1], [], []>} : vector<8x128xf32>, vector<128x512xf32>, vector<8x512xf32> -> vector<8x512xf32>
    %246 = arith.addf %244, %245 : vector<8x512xf32>
    %247 = vector.extract_strided_slice %246 {offsets = [0, 0], sizes = [8, 128], strides = [1, 1]} : vector<8x512xf32> to vector<8x128xf32>
    %248 = arith.negf %247 : vector<8x128xf32>
    %249 = math.exp %248 : vector<8x128xf32>
    %cst_62 = arith.constant 1.000000e+00 : f32
    %250 = vector.broadcast %cst_62 : f32 to vector<8x128xf32>
    %251 = arith.addf %250, %249 : vector<8x128xf32>
    %252 = arith.divf %250, %251 : vector<8x128xf32>
    %253 = vector.extract_strided_slice %246 {offsets = [0, 128], sizes = [8, 128], strides = [1, 1]} : vector<8x512xf32> to vector<8x128xf32>
    %254 = arith.negf %253 : vector<8x128xf32>
    %255 = math.exp %254 : vector<8x128xf32>
    %cst_63 = arith.constant 1.000000e+00 : f32
    %256 = vector.broadcast %cst_63 : f32 to vector<8x128xf32>
    %257 = arith.addf %256, %255 : vector<8x128xf32>
    %258 = arith.divf %256, %257 : vector<8x128xf32>
    %259 = vector.extract_strided_slice %246 {offsets = [0, 256], sizes = [8, 128], strides = [1, 1]} : vector<8x512xf32> to vector<8x128xf32>
    %260 = math.tanh %259 : vector<8x128xf32>
    %261 = vector.extract_strided_slice %246 {offsets = [0, 384], sizes = [8, 128], strides = [1, 1]} : vector<8x512xf32> to vector<8x128xf32>
    %262 = arith.negf %261 : vector<8x128xf32>
    %263 = math.exp %262 : vector<8x128xf32>
    %cst_64 = arith.constant 1.000000e+00 : f32
    %264 = vector.broadcast %cst_64 : f32 to vector<8x128xf32>
    %265 = arith.addf %264, %263 : vector<8x128xf32>
    %266 = arith.divf %264, %265 : vector<8x128xf32>
    %267 = arith.mulf %258, %236 : vector<8x128xf32>
    %268 = arith.mulf %252, %260 : vector<8x128xf32>
    %269 = arith.addf %267, %268 : vector<8x128xf32>
    %270 = math.tanh %269 : vector<8x128xf32>
    %271 = arith.mulf %266, %270 : vector<8x128xf32>
    %272 = arith.index_cast %242 : i32 to index
    %c0_65 = arith.constant 0 : index
    %273 = vector.load %arg10[%272, %c0_65] : memref<64x128xf32, #tpu.memory_space<vmem>>, vector<8x128xf32>
    tpu.vector_store %arg10[%272, %c0_65], %271 {strides = array<i32>} : memref<64x128xf32, #tpu.memory_space<vmem>>, vector<8x128xf32>,
    %c8_i32_66 = arith.constant 8 : i32
    %c0_67 = arith.constant 0 : index
    %c0_68 = arith.constant 0 : index
    %274 = vector.load %arg10[%c0_67, %c0_68] : memref<64x128xf32, #tpu.memory_space<vmem>>, vector<64x128xf32>
    %c0_69 = arith.constant 0 : index
    %c0_70 = arith.constant 0 : index
    %275 = vector.load %arg4[%c0_69, %c0_70] : memref<128x512xf32, #tpu.memory_space<vmem>>, vector<128x512xf32>
    %cst_71 = arith.constant dense<0.000000e+00> : vector<64x512xf32>
    %276 = tpu.matmul %274, %275, %cst_71 {dimension_numbers = #tpu.dot_dimension_numbers<[1], [0], [0], [1], [0, 0, 1, 1], [], []>} : vector<64x128xf32>, vector<128x512xf32>, vector<64x512xf32> -> vector<64x512xf32>
    %c0_72 = arith.constant 0 : index
    %c0_73 = arith.constant 0 : index
    %277 = vector.load %arg6[%c0_72, %c0_73] : memref<1x512xf32, #tpu.memory_space<vmem>>, vector<1x512xf32>
    %278 = vector.broadcast %277 : vector<1x512xf32> to vector<64x512xf32>
    %279 = arith.addf %276, %278 : vector<64x512xf32>
    %c0_74 = arith.constant 0 : index
    %c0_75 = arith.constant 0 : index
    %280 = vector.load %arg11[%c0_74, %c0_75] : memref<64x512xf32, #tpu.memory_space<vmem>>, vector<64x512xf32>
    tpu.vector_store %arg11[%c0_74, %c0_75], %279 {strides = array<i32>} : memref<64x512xf32, #tpu.memory_space<vmem>>, vector<64x512xf32>,
    %c0_76 = arith.constant 0 : index
    %c0_77 = arith.constant 0 : index
    %281 = vector.load %arg5[%c0_76, %c0_77] : memref<128x512xf32, #tpu.memory_space<vmem>>, vector<128x512xf32>
    %cst_78 = arith.constant 0.000000e+00 : f32
    %282 = vector.broadcast %cst_78 : f32 to vector<8x128xf32>
    %cst_79 = arith.constant 0.000000e+00 : f32
    %283 = vector.broadcast %cst_79 : f32 to vector<8x128xf32>
    %c0_i32_80 = arith.constant 0 : i32
    %c8_i32_81 = arith.constant 8 : i32
    %284 = arith.muli %c0_i32_80, %c8_i32_81 : i32
    %285 = tpu.assume_multiple %284, 8 : i32
    %286 = arith.index_cast %285 : i32 to index
    %c0_82 = arith.constant 0 : index
    %287 = vector.load %arg11[%286, %c0_82] : memref<64x512xf32, #tpu.memory_space<vmem>>, vector<8x512xf32>
    %cst_83 = arith.constant dense<0.000000e+00> : vector<8x512xf32>
    %288 = tpu.matmul %282, %281, %cst_83 {dimension_numbers = #tpu.dot_dimension_numbers<[1], [0], [0], [1], [0, 0, 1, 1], [], []>} : vector<8x128xf32>, vector<128x512xf32>, vector<8x512xf32> -> vector<8x512xf32>
    %289 = arith.addf %287, %288 : vector<8x512xf32>
    %290 = vector.extract_strided_slice %289 {offsets = [0, 0], sizes = [8, 128], strides = [1, 1]} : vector<8x512xf32> to vector<8x128xf32>
    %291 = arith.negf %290 : vector<8x128xf32>
    %292 = math.exp %291 : vector<8x128xf32>
    %cst_84 = arith.constant 1.000000e+00 : f32
    %293 = vector.broadcast %cst_84 : f32 to vector<8x128xf32>
    %294 = arith.addf %293, %292 : vector<8x128xf32>
    %295 = arith.divf %293, %294 : vector<8x128xf32>
    %296 = vector.extract_strided_slice %289 {offsets = [0, 128], sizes = [8, 128], strides = [1, 1]} : vector<8x512xf32> to vector<8x128xf32>
    %297 = arith.negf %296 : vector<8x128xf32>
    %298 = math.exp %297 : vector<8x128xf32>
    %cst_85 = arith.constant 1.000000e+00 : f32
    %299 = vector.broadcast %cst_85 : f32 to vector<8x128xf32>
    %300 = arith.addf %299, %298 : vector<8x128xf32>
    %301 = arith.divf %299, %300 : vector<8x128xf32>
    %302 = vector.extract_strided_slice %289 {offsets = [0, 256], sizes = [8, 128], strides = [1, 1]} : vector<8x512xf32> to vector<8x128xf32>
    %303 = math.tanh %302 : vector<8x128xf32>
    %304 = vector.extract_strided_slice %289 {offsets = [0, 384], sizes = [8, 128], strides = [1, 1]} : vector<8x512xf32> to vector<8x128xf32>
    %305 = arith.negf %304 : vector<8x128xf32>
    %306 = math.exp %305 : vector<8x128xf32>
    %cst_86 = arith.constant 1.000000e+00 : f32
    %307 = vector.broadcast %cst_86 : f32 to vector<8x128xf32>
    %308 = arith.addf %307, %306 : vector<8x128xf32>
    %309 = arith.divf %307, %308 : vector<8x128xf32>
    %310 = arith.mulf %301, %283 : vector<8x128xf32>
    %311 = arith.mulf %295, %303 : vector<8x128xf32>
    %312 = arith.addf %310, %311 : vector<8x128xf32>
    %313 = math.tanh %312 : vector<8x128xf32>
    %314 = arith.mulf %309, %313 : vector<8x128xf32>
    %c1_i32_87 = arith.constant 1 : i32
    %c8_i32_88 = arith.constant 8 : i32
    %315 = arith.muli %c1_i32_87, %c8_i32_88 : i32
    %316 = tpu.assume_multiple %315, 8 : i32
    %317 = arith.index_cast %316 : i32 to index
    %c0_89 = arith.constant 0 : index
    %318 = vector.load %arg11[%317, %c0_89] : memref<64x512xf32, #tpu.memory_space<vmem>>, vector<8x512xf32>
    %cst_90 = arith.constant dense<0.000000e+00> : vector<8x512xf32>
    %319 = tpu.matmul %314, %281, %cst_90 {dimension_numbers = #tpu.dot_dimension_numbers<[1], [0], [0], [1], [0, 0, 1, 1], [], []>} : vector<8x128xf32>, vector<128x512xf32>, vector<8x512xf32> -> vector<8x512xf32>
    %320 = arith.addf %318, %319 : vector<8x512xf32>
    %321 = vector.extract_strided_slice %320 {offsets = [0, 0], sizes = [8, 128], strides = [1, 1]} : vector<8x512xf32> to vector<8x128xf32>
    %322 = arith.negf %321 : vector<8x128xf32>
    %323 = math.exp %322 : vector<8x128xf32>
    %cst_91 = arith.constant 1.000000e+00 : f32
    %324 = vector.broadcast %cst_91 : f32 to vector<8x128xf32>
    %325 = arith.addf %324, %323 : vector<8x128xf32>
    %326 = arith.divf %324, %325 : vector<8x128xf32>
    %327 = vector.extract_strided_slice %320 {offsets = [0, 128], sizes = [8, 128], strides = [1, 1]} : vector<8x512xf32> to vector<8x128xf32>
    %328 = arith.negf %327 : vector<8x128xf32>
    %329 = math.exp %328 : vector<8x128xf32>
    %cst_92 = arith.constant 1.000000e+00 : f32
    %330 = vector.broadcast %cst_92 : f32 to vector<8x128xf32>
    %331 = arith.addf %330, %329 : vector<8x128xf32>
    %332 = arith.divf %330, %331 : vector<8x128xf32>
    %333 = vector.extract_strided_slice %320 {offsets = [0, 256], sizes = [8, 128], strides = [1, 1]} : vector<8x512xf32> to vector<8x128xf32>
    %334 = math.tanh %333 : vector<8x128xf32>
    %335 = vector.extract_strided_slice %320 {offsets = [0, 384], sizes = [8, 128], strides = [1, 1]} : vector<8x512xf32> to vector<8x128xf32>
    %336 = arith.negf %335 : vector<8x128xf32>
    %337 = math.exp %336 : vector<8x128xf32>
    %cst_93 = arith.constant 1.000000e+00 : f32
    %338 = vector.broadcast %cst_93 : f32 to vector<8x128xf32>
    %339 = arith.addf %338, %337 : vector<8x128xf32>
    %340 = arith.divf %338, %339 : vector<8x128xf32>
    %341 = arith.mulf %332, %312 : vector<8x128xf32>
    %342 = arith.mulf %326, %334 : vector<8x128xf32>
    %343 = arith.addf %341, %342 : vector<8x128xf32>
    %344 = math.tanh %343 : vector<8x128xf32>
    %345 = arith.mulf %340, %344 : vector<8x128xf32>
    %c2_i32_94 = arith.constant 2 : i32
    %c8_i32_95 = arith.constant 8 : i32
    %346 = arith.muli %c2_i32_94, %c8_i32_95 : i32
    %347 = tpu.assume_multiple %346, 8 : i32
    %348 = arith.index_cast %347 : i32 to index
    %c0_96 = arith.constant 0 : index
    %349 = vector.load %arg11[%348, %c0_96] : memref<64x512xf32, #tpu.memory_space<vmem>>, vector<8x512xf32>
    %cst_97 = arith.constant dense<0.000000e+00> : vector<8x512xf32>
    %350 = tpu.matmul %345, %281, %cst_97 {dimension_numbers = #tpu.dot_dimension_numbers<[1], [0], [0], [1], [0, 0, 1, 1], [], []>} : vector<8x128xf32>, vector<128x512xf32>, vector<8x512xf32> -> vector<8x512xf32>
    %351 = arith.addf %349, %350 : vector<8x512xf32>
    %352 = vector.extract_strided_slice %351 {offsets = [0, 0], sizes = [8, 128], strides = [1, 1]} : vector<8x512xf32> to vector<8x128xf32>
    %353 = arith.negf %352 : vector<8x128xf32>
    %354 = math.exp %353 : vector<8x128xf32>
    %cst_98 = arith.constant 1.000000e+00 : f32
    %355 = vector.broadcast %cst_98 : f32 to vector<8x128xf32>
    %356 = arith.addf %355, %354 : vector<8x128xf32>
    %357 = arith.divf %355, %356 : vector<8x128xf32>
    %358 = vector.extract_strided_slice %351 {offsets = [0, 128], sizes = [8, 128], strides = [1, 1]} : vector<8x512xf32> to vector<8x128xf32>
    %359 = arith.negf %358 : vector<8x128xf32>
    %360 = math.exp %359 : vector<8x128xf32>
    %cst_99 = arith.constant 1.000000e+00 : f32
    %361 = vector.broadcast %cst_99 : f32 to vector<8x128xf32>
    %362 = arith.addf %361, %360 : vector<8x128xf32>
    %363 = arith.divf %361, %362 : vector<8x128xf32>
    %364 = vector.extract_strided_slice %351 {offsets = [0, 256], sizes = [8, 128], strides = [1, 1]} : vector<8x512xf32> to vector<8x128xf32>
    %365 = math.tanh %364 : vector<8x128xf32>
    %366 = vector.extract_strided_slice %351 {offsets = [0, 384], sizes = [8, 128], strides = [1, 1]} : vector<8x512xf32> to vector<8x128xf32>
    %367 = arith.negf %366 : vector<8x128xf32>
    %368 = math.exp %367 : vector<8x128xf32>
    %cst_100 = arith.constant 1.000000e+00 : f32
    %369 = vector.broadcast %cst_100 : f32 to vector<8x128xf32>
    %370 = arith.addf %369, %368 : vector<8x128xf32>
    %371 = arith.divf %369, %370 : vector<8x128xf32>
    %372 = arith.mulf %363, %343 : vector<8x128xf32>
    %373 = arith.mulf %357, %365 : vector<8x128xf32>
    %374 = arith.addf %372, %373 : vector<8x128xf32>
    %375 = math.tanh %374 : vector<8x128xf32>
    %376 = arith.mulf %371, %375 : vector<8x128xf32>
    %c3_i32_101 = arith.constant 3 : i32
    %c8_i32_102 = arith.constant 8 : i32
    %377 = arith.muli %c3_i32_101, %c8_i32_102 : i32
    %378 = tpu.assume_multiple %377, 8 : i32
    %379 = arith.index_cast %378 : i32 to index
    %c0_103 = arith.constant 0 : index
    %380 = vector.load %arg11[%379, %c0_103] : memref<64x512xf32, #tpu.memory_space<vmem>>, vector<8x512xf32>
    %cst_104 = arith.constant dense<0.000000e+00> : vector<8x512xf32>
    %381 = tpu.matmul %376, %281, %cst_104 {dimension_numbers = #tpu.dot_dimension_numbers<[1], [0], [0], [1], [0, 0, 1, 1], [], []>} : vector<8x128xf32>, vector<128x512xf32>, vector<8x512xf32> -> vector<8x512xf32>
    %382 = arith.addf %380, %381 : vector<8x512xf32>
    %383 = vector.extract_strided_slice %382 {offsets = [0, 0], sizes = [8, 128], strides = [1, 1]} : vector<8x512xf32> to vector<8x128xf32>
    %384 = arith.negf %383 : vector<8x128xf32>
    %385 = math.exp %384 : vector<8x128xf32>
    %cst_105 = arith.constant 1.000000e+00 : f32
    %386 = vector.broadcast %cst_105 : f32 to vector<8x128xf32>
    %387 = arith.addf %386, %385 : vector<8x128xf32>
    %388 = arith.divf %386, %387 : vector<8x128xf32>
    %389 = vector.extract_strided_slice %382 {offsets = [0, 128], sizes = [8, 128], strides = [1, 1]} : vector<8x512xf32> to vector<8x128xf32>
    %390 = arith.negf %389 : vector<8x128xf32>
    %391 = math.exp %390 : vector<8x128xf32>
    %cst_106 = arith.constant 1.000000e+00 : f32
    %392 = vector.broadcast %cst_106 : f32 to vector<8x128xf32>
    %393 = arith.addf %392, %391 : vector<8x128xf32>
    %394 = arith.divf %392, %393 : vector<8x128xf32>
    %395 = vector.extract_strided_slice %382 {offsets = [0, 256], sizes = [8, 128], strides = [1, 1]} : vector<8x512xf32> to vector<8x128xf32>
    %396 = math.tanh %395 : vector<8x128xf32>
    %397 = vector.extract_strided_slice %382 {offsets = [0, 384], sizes = [8, 128], strides = [1, 1]} : vector<8x512xf32> to vector<8x128xf32>
    %398 = arith.negf %397 : vector<8x128xf32>
    %399 = math.exp %398 : vector<8x128xf32>
    %cst_107 = arith.constant 1.000000e+00 : f32
    %400 = vector.broadcast %cst_107 : f32 to vector<8x128xf32>
    %401 = arith.addf %400, %399 : vector<8x128xf32>
    %402 = arith.divf %400, %401 : vector<8x128xf32>
    %403 = arith.mulf %394, %374 : vector<8x128xf32>
    %404 = arith.mulf %388, %396 : vector<8x128xf32>
    %405 = arith.addf %403, %404 : vector<8x128xf32>
    %406 = math.tanh %405 : vector<8x128xf32>
    %407 = arith.mulf %402, %406 : vector<8x128xf32>
    %c4_i32_108 = arith.constant 4 : i32
    %c8_i32_109 = arith.constant 8 : i32
    %408 = arith.muli %c4_i32_108, %c8_i32_109 : i32
    %409 = tpu.assume_multiple %408, 8 : i32
    %410 = arith.index_cast %409 : i32 to index
    %c0_110 = arith.constant 0 : index
    %411 = vector.load %arg11[%410, %c0_110] : memref<64x512xf32, #tpu.memory_space<vmem>>, vector<8x512xf32>
    %cst_111 = arith.constant dense<0.000000e+00> : vector<8x512xf32>
    %412 = tpu.matmul %407, %281, %cst_111 {dimension_numbers = #tpu.dot_dimension_numbers<[1], [0], [0], [1], [0, 0, 1, 1], [], []>} : vector<8x128xf32>, vector<128x512xf32>, vector<8x512xf32> -> vector<8x512xf32>
    %413 = arith.addf %411, %412 : vector<8x512xf32>
    %414 = vector.extract_strided_slice %413 {offsets = [0, 0], sizes = [8, 128], strides = [1, 1]} : vector<8x512xf32> to vector<8x128xf32>
    %415 = arith.negf %414 : vector<8x128xf32>
    %416 = math.exp %415 : vector<8x128xf32>
    %cst_112 = arith.constant 1.000000e+00 : f32
    %417 = vector.broadcast %cst_112 : f32 to vector<8x128xf32>
    %418 = arith.addf %417, %416 : vector<8x128xf32>
    %419 = arith.divf %417, %418 : vector<8x128xf32>
    %420 = vector.extract_strided_slice %413 {offsets = [0, 128], sizes = [8, 128], strides = [1, 1]} : vector<8x512xf32> to vector<8x128xf32>
    %421 = arith.negf %420 : vector<8x128xf32>
    %422 = math.exp %421 : vector<8x128xf32>
    %cst_113 = arith.constant 1.000000e+00 : f32
    %423 = vector.broadcast %cst_113 : f32 to vector<8x128xf32>
    %424 = arith.addf %423, %422 : vector<8x128xf32>
    %425 = arith.divf %423, %424 : vector<8x128xf32>
    %426 = vector.extract_strided_slice %413 {offsets = [0, 256], sizes = [8, 128], strides = [1, 1]} : vector<8x512xf32> to vector<8x128xf32>
    %427 = math.tanh %426 : vector<8x128xf32>
    %428 = vector.extract_strided_slice %413 {offsets = [0, 384], sizes = [8, 128], strides = [1, 1]} : vector<8x512xf32> to vector<8x128xf32>
    %429 = arith.negf %428 : vector<8x128xf32>
    %430 = math.exp %429 : vector<8x128xf32>
    %cst_114 = arith.constant 1.000000e+00 : f32
    %431 = vector.broadcast %cst_114 : f32 to vector<8x128xf32>
    %432 = arith.addf %431, %430 : vector<8x128xf32>
    %433 = arith.divf %431, %432 : vector<8x128xf32>
    %434 = arith.mulf %425, %405 : vector<8x128xf32>
    %435 = arith.mulf %419, %427 : vector<8x128xf32>
    %436 = arith.addf %434, %435 : vector<8x128xf32>
    %437 = math.tanh %436 : vector<8x128xf32>
    %438 = arith.mulf %433, %437 : vector<8x128xf32>
    %c5_i32_115 = arith.constant 5 : i32
    %c8_i32_116 = arith.constant 8 : i32
    %439 = arith.muli %c5_i32_115, %c8_i32_116 : i32
    %440 = tpu.assume_multiple %439, 8 : i32
    %441 = arith.index_cast %440 : i32 to index
    %c0_117 = arith.constant 0 : index
    %442 = vector.load %arg11[%441, %c0_117] : memref<64x512xf32, #tpu.memory_space<vmem>>, vector<8x512xf32>
    %cst_118 = arith.constant dense<0.000000e+00> : vector<8x512xf32>
    %443 = tpu.matmul %438, %281, %cst_118 {dimension_numbers = #tpu.dot_dimension_numbers<[1], [0], [0], [1], [0, 0, 1, 1], [], []>} : vector<8x128xf32>, vector<128x512xf32>, vector<8x512xf32> -> vector<8x512xf32>
    %444 = arith.addf %442, %443 : vector<8x512xf32>
    %445 = vector.extract_strided_slice %444 {offsets = [0, 0], sizes = [8, 128], strides = [1, 1]} : vector<8x512xf32> to vector<8x128xf32>
    %446 = arith.negf %445 : vector<8x128xf32>
    %447 = math.exp %446 : vector<8x128xf32>
    %cst_119 = arith.constant 1.000000e+00 : f32
    %448 = vector.broadcast %cst_119 : f32 to vector<8x128xf32>
    %449 = arith.addf %448, %447 : vector<8x128xf32>
    %450 = arith.divf %448, %449 : vector<8x128xf32>
    %451 = vector.extract_strided_slice %444 {offsets = [0, 128], sizes = [8, 128], strides = [1, 1]} : vector<8x512xf32> to vector<8x128xf32>
    %452 = arith.negf %451 : vector<8x128xf32>
    %453 = math.exp %452 : vector<8x128xf32>
    %cst_120 = arith.constant 1.000000e+00 : f32
    %454 = vector.broadcast %cst_120 : f32 to vector<8x128xf32>
    %455 = arith.addf %454, %453 : vector<8x128xf32>
    %456 = arith.divf %454, %455 : vector<8x128xf32>
    %457 = vector.extract_strided_slice %444 {offsets = [0, 256], sizes = [8, 128], strides = [1, 1]} : vector<8x512xf32> to vector<8x128xf32>
    %458 = math.tanh %457 : vector<8x128xf32>
    %459 = vector.extract_strided_slice %444 {offsets = [0, 384], sizes = [8, 128], strides = [1, 1]} : vector<8x512xf32> to vector<8x128xf32>
    %460 = arith.negf %459 : vector<8x128xf32>
    %461 = math.exp %460 : vector<8x128xf32>
    %cst_121 = arith.constant 1.000000e+00 : f32
    %462 = vector.broadcast %cst_121 : f32 to vector<8x128xf32>
    %463 = arith.addf %462, %461 : vector<8x128xf32>
    %464 = arith.divf %462, %463 : vector<8x128xf32>
    %465 = arith.mulf %456, %436 : vector<8x128xf32>
    %466 = arith.mulf %450, %458 : vector<8x128xf32>
    %467 = arith.addf %465, %466 : vector<8x128xf32>
    %468 = math.tanh %467 : vector<8x128xf32>
    %469 = arith.mulf %464, %468 : vector<8x128xf32>
    %c6_i32_122 = arith.constant 6 : i32
    %c8_i32_123 = arith.constant 8 : i32
    %470 = arith.muli %c6_i32_122, %c8_i32_123 : i32
    %471 = tpu.assume_multiple %470, 8 : i32
    %472 = arith.index_cast %471 : i32 to index
    %c0_124 = arith.constant 0 : index
    %473 = vector.load %arg11[%472, %c0_124] : memref<64x512xf32, #tpu.memory_space<vmem>>, vector<8x512xf32>
    %cst_125 = arith.constant dense<0.000000e+00> : vector<8x512xf32>
    %474 = tpu.matmul %469, %281, %cst_125 {dimension_numbers = #tpu.dot_dimension_numbers<[1], [0], [0], [1], [0, 0, 1, 1], [], []>} : vector<8x128xf32>, vector<128x512xf32>, vector<8x512xf32> -> vector<8x512xf32>
    %475 = arith.addf %473, %474 : vector<8x512xf32>
    %476 = vector.extract_strided_slice %475 {offsets = [0, 0], sizes = [8, 128], strides = [1, 1]} : vector<8x512xf32> to vector<8x128xf32>
    %477 = arith.negf %476 : vector<8x128xf32>
    %478 = math.exp %477 : vector<8x128xf32>
    %cst_126 = arith.constant 1.000000e+00 : f32
    %479 = vector.broadcast %cst_126 : f32 to vector<8x128xf32>
    %480 = arith.addf %479, %478 : vector<8x128xf32>
    %481 = arith.divf %479, %480 : vector<8x128xf32>
    %482 = vector.extract_strided_slice %475 {offsets = [0, 128], sizes = [8, 128], strides = [1, 1]} : vector<8x512xf32> to vector<8x128xf32>
    %483 = arith.negf %482 : vector<8x128xf32>
    %484 = math.exp %483 : vector<8x128xf32>
    %cst_127 = arith.constant 1.000000e+00 : f32
    %485 = vector.broadcast %cst_127 : f32 to vector<8x128xf32>
    %486 = arith.addf %485, %484 : vector<8x128xf32>
    %487 = arith.divf %485, %486 : vector<8x128xf32>
    %488 = vector.extract_strided_slice %475 {offsets = [0, 256], sizes = [8, 128], strides = [1, 1]} : vector<8x512xf32> to vector<8x128xf32>
    %489 = math.tanh %488 : vector<8x128xf32>
    %490 = vector.extract_strided_slice %475 {offsets = [0, 384], sizes = [8, 128], strides = [1, 1]} : vector<8x512xf32> to vector<8x128xf32>
    %491 = arith.negf %490 : vector<8x128xf32>
    %492 = math.exp %491 : vector<8x128xf32>
    %cst_128 = arith.constant 1.000000e+00 : f32
    %493 = vector.broadcast %cst_128 : f32 to vector<8x128xf32>
    %494 = arith.addf %493, %492 : vector<8x128xf32>
    %495 = arith.divf %493, %494 : vector<8x128xf32>
    %496 = arith.mulf %487, %467 : vector<8x128xf32>
    %497 = arith.mulf %481, %489 : vector<8x128xf32>
    %498 = arith.addf %496, %497 : vector<8x128xf32>
    %499 = math.tanh %498 : vector<8x128xf32>
    %500 = arith.mulf %495, %499 : vector<8x128xf32>
    %c7_i32_129 = arith.constant 7 : i32
    %c8_i32_130 = arith.constant 8 : i32
    %501 = arith.muli %c7_i32_129, %c8_i32_130 : i32
    %502 = tpu.assume_multiple %501, 8 : i32
    %503 = arith.index_cast %502 : i32 to index
    %c0_131 = arith.constant 0 : index
    %504 = vector.load %arg11[%503, %c0_131] : memref<64x512xf32, #tpu.memory_space<vmem>>, vector<8x512xf32>
    %cst_132 = arith.constant dense<0.000000e+00> : vector<8x512xf32>
    %505 = tpu.matmul %500, %281, %cst_132 {dimension_numbers = #tpu.dot_dimension_numbers<[1], [0], [0], [1], [0, 0, 1, 1], [], []>} : vector<8x128xf32>, vector<128x512xf32>, vector<8x512xf32> -> vector<8x512xf32>
    %506 = arith.addf %504, %505 : vector<8x512xf32>
    %507 = vector.extract_strided_slice %506 {offsets = [0, 0], sizes = [8, 128], strides = [1, 1]} : vector<8x512xf32> to vector<8x128xf32>
    %508 = arith.negf %507 : vector<8x128xf32>
    %509 = math.exp %508 : vector<8x128xf32>
    %cst_133 = arith.constant 1.000000e+00 : f32
    %510 = vector.broadcast %cst_133 : f32 to vector<8x128xf32>
    %511 = arith.addf %510, %509 : vector<8x128xf32>
    %512 = arith.divf %510, %511 : vector<8x128xf32>
    %513 = vector.extract_strided_slice %506 {offsets = [0, 128], sizes = [8, 128], strides = [1, 1]} : vector<8x512xf32> to vector<8x128xf32>
    %514 = arith.negf %513 : vector<8x128xf32>
    %515 = math.exp %514 : vector<8x128xf32>
    %cst_134 = arith.constant 1.000000e+00 : f32
    %516 = vector.broadcast %cst_134 : f32 to vector<8x128xf32>
    %517 = arith.addf %516, %515 : vector<8x128xf32>
    %518 = arith.divf %516, %517 : vector<8x128xf32>
    %519 = vector.extract_strided_slice %506 {offsets = [0, 256], sizes = [8, 128], strides = [1, 1]} : vector<8x512xf32> to vector<8x128xf32>
    %520 = math.tanh %519 : vector<8x128xf32>
    %521 = vector.extract_strided_slice %506 {offsets = [0, 384], sizes = [8, 128], strides = [1, 1]} : vector<8x512xf32> to vector<8x128xf32>
    %522 = arith.negf %521 : vector<8x128xf32>
    %523 = math.exp %522 : vector<8x128xf32>
    %cst_135 = arith.constant 1.000000e+00 : f32
    %524 = vector.broadcast %cst_135 : f32 to vector<8x128xf32>
    %525 = arith.addf %524, %523 : vector<8x128xf32>
    %526 = arith.divf %524, %525 : vector<8x128xf32>
    %527 = arith.mulf %518, %498 : vector<8x128xf32>
    %528 = arith.mulf %512, %520 : vector<8x128xf32>
    %529 = arith.addf %527, %528 : vector<8x128xf32>
    %530 = math.tanh %529 : vector<8x128xf32>
    %531 = arith.mulf %526, %530 : vector<8x128xf32>
    %c8_i32_136 = arith.constant 8 : i32
    %c0_137 = arith.constant 0 : index
    %c0_138 = arith.constant 0 : index
    %532 = vector.load %arg7[%c0_137, %c0_138] : memref<128x4xf32, #tpu.memory_space<vmem>>, vector<128x4xf32>
    %cst_139 = arith.constant dense<0.000000e+00> : vector<8x4xf32>
    %533 = tpu.matmul %531, %532, %cst_139 {dimension_numbers = #tpu.dot_dimension_numbers<[1], [0], [0], [1], [0, 0, 1, 1], [], []>} : vector<8x128xf32>, vector<128x4xf32>, vector<8x4xf32> -> vector<8x4xf32>
    %c0_140 = arith.constant 0 : index
    %c0_141 = arith.constant 0 : index
    %534 = vector.load %arg8[%c0_140, %c0_141] : memref<1x4xf32, #tpu.memory_space<vmem>>, vector<1x4xf32>
    %535 = vector.broadcast %534 : vector<1x4xf32> to vector<8x4xf32>
    %536 = arith.addf %533, %535 : vector<8x4xf32>
    %c0_142 = arith.constant 0 : index
    %c0_143 = arith.constant 0 : index
    %537 = vector.load %arg9[%c0_142, %c0_143] : memref<8x4xf32, #tpu.memory_space<vmem>>, vector<8x4xf32>
    tpu.vector_store %arg9[%c0_142, %c0_143], %536 {strides = array<i32>} : memref<8x4xf32, #tpu.memory_space<vmem>>, vector<8x4xf32>,
    return
  }
}

</mosaic_0001>

<llo_original>
// kernel: lstm_model_forward.1
$region0: #{lstm_model_forward.1}
  #allocation0 [shape = 'u32[]', space=smem, size = 0x4, offset = 0x4, fixed_abs, tag = 'smem constant byte address 0x4 - core index']
  #allocation1 [shape = 'u32[72,128]{1,0:T(1,128)}', space=vmem, size = 0x9000, scoped, tag = 'internal scratch']
  #allocation2 [shape = 'f32[64,128]{1,0:T(8,128)}', space=vmem, size = 0x8000, scoped, tag = 'scratch operand']
  #allocation3 [shape = 'f32[64,512]{1,0:T(8,128)}', space=vmem, size = 0x20000, scoped, tag = 'scratch operand']
  %s0 = inlined_call_operand.vmem [shape: f32[64,16], index: 0, kind: input, shape index: {}]
  %s1 = inlined_call_operand.vmem [shape: f32[16,512], index: 1, kind: input, shape index: {}]
  %s2 = inlined_call_operand.hbm [shape: f32[128,512], index: 2, kind: input, shape index: {}]
  %s3 = inlined_call_operand.vmem [shape: f32[1,512], index: 3, kind: input, shape index: {}]
  %s4 = inlined_call_operand.hbm [shape: f32[128,512], index: 4, kind: input, shape index: {}]
  %s5 = inlined_call_operand.hbm [shape: f32[128,512], index: 5, kind: input, shape index: {}]
  %s6 = inlined_call_operand.vmem [shape: f32[1,512], index: 6, kind: input, shape index: {}]
  %s7 = inlined_call_operand.vmem [shape: f32[128,4], index: 7, kind: input, shape index: {}]
  %s8 = inlined_call_operand.vmem [shape: f32[1,4], index: 8, kind: input, shape index: {}]
  %s9 = inlined_call_operand.vmem [shape: f32[8,4], index: 9, kind: output, shape index: {}]
  %s10 = sld [smem:[#allocation0]]
  $region58: #{lstm_model_forward.1} parent=0
    _
  %s12 = ssub.s32 1, %s10
  %s13 = scalar_select 0, %s12, %s10
  $region1: #{lstm_model_forward.1} parent=0
    #allocation4 [shape = 'u8[262144]{0}', space=vmem, size = 0x40000, scoped, tag = 'input window, operand 2, single buffered']
    #allocation5 [shape = 's32[1]{0}', space=sflag, size = 0x4, scoped, tag = 'scoped memory for lstm_model_forward.1']
    #allocation6 [shape = 'u8[262144]{0}', space=vmem, size = 0x40000, scoped, tag = 'input window, operand 4, single buffered']
    #allocation7 [shape = 's32[1]{0}', space=sflag, size = 0x4, scoped, tag = 'scoped memory for lstm_model_forward.1']
    #allocation8 [shape = 'u8[262144]{0}', space=vmem, size = 0x40000, scoped, tag = 'input window, operand 5, single buffered']
    %14 = vsyncpa [#allocation5], 0
    %15 = vsyncpa [#allocation7], 0
    // Predicated region
    $region2: #{lstm_model_forward.1} parent=1 // pred_check
      _
    $region3: #{lstm_model_forward.1} parent=1 // pred_check_branch
      %17 = sbr.rel (0) target = $region5
    $region4: #{lstm_model_forward.1} parent=1 // pred_region
      _
    $region5: #{lstm_model_forward.1} parent=1 // pred_fallthru
      _
    // Predicated region
    $region6: #{lstm_model_forward.1} parent=1 // pred_check
      _
    $region7: #{lstm_model_forward.1} parent=1 // pred_check_branch
      %19 = sbr.rel (0) target = $region9
    $region8: #{lstm_model_forward.1} parent=1 // pred_region
      _
    $region9: #{lstm_model_forward.1} parent=1 // pred_fallthru
      _
    // Predicated region
    $region10: #{lstm_model_forward.1} parent=1 // pred_check
      _
    $region11: #{lstm_model_forward.1} parent=1 // pred_check_branch
      %21 = sbr.rel (0) target = $region13
    $region12: #{lstm_model_forward.1} parent=1 // pred_region
      %23 = vsyncadd [#allocation5], 0
      %s24 = sshll.u32 %s2, 4
      %s25 = int_to_ptr.hbm [resolvable:$true] %s24
      %s26 = sshll.u32 [#allocation4], 4
      %s27 = int_to_ptr.vmem [resolvable:$true] %s26
      %32 = dma.hbm_to_vmem [thread:$0]  %s25, 8192, %s27, [#allocation5], 512, 512, 32
    $region13: #{lstm_model_forward.1} parent=1 // pred_fallthru
      _
    // Predicated region
    $region14: #{lstm_model_forward.1} parent=1 // pred_check
      _
    $region15: #{lstm_model_forward.1} parent=1 // pred_check_branch
      %34 = sbr.rel (0) target = $region17
    $region16: #{lstm_model_forward.1} parent=1 // pred_region
      _
    $region17: #{lstm_model_forward.1} parent=1 // pred_fallthru
      _
    // Predicated region
    $region18: #{lstm_model_forward.1} parent=1 // pred_check
      _
    $region19: #{lstm_model_forward.1} parent=1 // pred_check_branch
      %36 = sbr.rel (0) target = $region21
    $region20: #{lstm_model_forward.1} parent=1 // pred_region
      %38 = vsyncadd [#allocation7], 0
      %s39 = sshll.u32 %s4, 4
      %s40 = int_to_ptr.hbm [resolvable:$true] %s39
      %s41 = sshll.u32 [#allocation6], 4
      %s42 = int_to_ptr.vmem [resolvable:$true] %s41
      %47 = dma.hbm_to_vmem [thread:$0]  %s40, 8192, %s42, [#allocation7], 512, 512, 32
    $region21: #{lstm_model_forward.1} parent=1 // pred_fallthru
      _
    // Predicated region
    $region22: #{lstm_model_forward.1} parent=1 // pred_check
      _
    $region23: #{lstm_model_forward.1} parent=1 // pred_check_branch
      %49 = sbr.rel (0) target = $region25
    $region24: #{lstm_model_forward.1} parent=1 // pred_region
      %51 = vsyncadd [#allocation7], 0
      %s52 = sshll.u32 %s5, 4
      %s53 = int_to_ptr.hbm [resolvable:$true] %s52
      %s54 = sshll.u32 [#allocation8], 4
      %s55 = int_to_ptr.vmem [resolvable:$true] %s54
      %60 = dma.hbm_to_vmem [thread:$0]  %s53, 8192, %s55, [#allocation7], 512, 512, 32
    $region25: #{lstm_model_forward.1} parent=1 // pred_fallthru
      _
    // Predicated region
    $region26: #{lstm_model_forward.1} parent=1 // pred_check
      _
    $region27: #{lstm_model_forward.1} parent=1 // pred_check_branch
      %62 = sbr.rel (0) target = $region29
    $region28: #{lstm_model_forward.1} parent=1 // pred_region
      _
    $region29: #{lstm_model_forward.1} parent=1 // pred_fallthru
      _
    // Predicated region
    $region30: #{lstm_model_forward.1} parent=1 // pred_check
      _
    $region31: #{lstm_model_forward.1} parent=1 // pred_check_branch
      %64 = sbr.rel (0) target = $region33
    $region32: #{lstm_model_forward.1} parent=1 // pred_region
      _
    $region33: #{lstm_model_forward.1} parent=1 // pred_fallthru
      _
    // Predicated region
    $region34: #{lstm_model_forward.1} parent=1 // pred_check
      _
    $region35: #{lstm_model_forward.1} parent=1 // pred_check_branch
      %66 = sbr.rel (0) target = $region37
    $region36: #{lstm_model_forward.1} parent=1 // pred_region
      _
    $region37: #{lstm_model_forward.1} parent=1 // pred_fallthru
      _
    // Predicated region
    $region38: #{lstm_model_forward.1} parent=1 // pred_check
      _
    $region39: #{lstm_model_forward.1} parent=1 // pred_check_branch
      %68 = sbr.rel (0) target = $region41
    $region40: #{lstm_model_forward.1} parent=1 // pred_region
      %70 = dma.done [#allocation5], 8192
    $region41: #{lstm_model_forward.1} parent=1 // pred_fallthru
      _
    // Predicated region
    $region42: #{lstm_model_forward.1} parent=1 // pred_check
      _
    $region43: #{lstm_model_forward.1} parent=1 // pred_check_branch
      %72 = sbr.rel (0) target = $region45
    $region44: #{lstm_model_forward.1} parent=1 // pred_region
      %74 = dma.done [#allocation7], 8192
    $region45: #{lstm_model_forward.1} parent=1 // pred_fallthru
      _
    // Predicated region
    $region46: #{lstm_model_forward.1} parent=1 // pred_check
      _
    $region47: #{lstm_model_forward.1} parent=1 // pred_check_branch
      %76 = sbr.rel (0) target = $region49
    $region48: #{lstm_model_forward.1} parent=1 // pred_region
      %78 = dma.done [#allocation7], 8192
    $region49: #{lstm_model_forward.1} parent=1 // pred_fallthru
      _
    %v79 = vld [vmem:[%s0] sm:$0xff]
    %v80 = vld [vmem:[%s0 + $0x8] sm:$0xff]
    %v81 = vld [vmem:[%s0 + $0x10] sm:$0xff]
    %v82 = vld [vmem:[%s0 + $0x18] sm:$0xff]
    %v83 = vld [vmem:[%s0 + $0x20] sm:$0xff]
    %v84 = vld [vmem:[%s0 + $0x28] sm:$0xff]
    %v85 = vld [vmem:[%s0 + $0x30] sm:$0xff]
    %v86 = vld [vmem:[%s0 + $0x38] sm:$0xff]
    %v87 = vld [vmem:[%s1] sm:$0xff]
    %v88 = vld [vmem:[%s1 + $0x8] sm:$0xff]
    %v89 = vld [vmem:[%s1 + $0x10] sm:$0xff]
    %v90 = vld [vmem:[%s1 + $0x18] sm:$0xff]
    %v91 = vld [vmem:[%s1 + $0x20] sm:$0xff]
    %v92 = vld [vmem:[%s1 + $0x28] sm:$0xff]
    %v93 = vld [vmem:[%s1 + $0x30] sm:$0xff]
    %v94 = vld [vmem:[%s1 + $0x38] sm:$0xff]
    %v95 = vld [vmem:[%s3] sm:$0xf]
    %v97 = vperm.slane %v95, 0
    %v98 = vperm.slane %v95, 1
    %v99 = vperm.slane %v95, 2
    %v100 = vperm.slane %v95, 3
    %vm105 = vcmask 130048
    %v107 = vsel %vm105, %v79, 0
    %v110 = vsel %vm105, %v80, 0
    %v113 = vsel %vm105, %v81, 0
    %v116 = vsel %vm105, %v82, 0
    %v119 = vsel %vm105, %v83, 0
    %v122 = vsel %vm105, %v84, 0
    %v125 = vsel %vm105, %v85, 0
    %v128 = vsel %vm105, %v86, 0
    %130 = vmatpush.msra.mxu0 0.0
    %131 = vmatpush.msra.mxu0 0.0
    %132 = vmatpush.msra.mxu0 0.0
    %133 = vmatpush.msra.mxu0 0.0
    %134 = vmatpush.msra.mxu0 0.0
    %135 = vmatpush.msra.mxu0 0.0
    %136 = vmatpush.msra.mxu0 0.0
    %137 = vmatpush.msra.mxu0 0.0
    %138 = vmatpush.msra.mxu0 0.0
    %139 = vmatpush.msra.mxu0 0.0
    %140 = vmatpush.msra.mxu0 0.0
    %141 = vmatpush.msra.mxu0 0.0
    %142 = vmatpush.msra.mxu0 0.0
    %143 = vmatpush.msra.mxu0 0.0
    %144 = vmatpush.msra.mxu0 %v91
    %145 = vmatpush.msra.mxu0 %v87
    %146 = vmatmul.f32.gmra.mxu0 %v107
    %v147 = vpop.f32.mrf.mxu0
    %v148 = vadd.f32 %v97, %v147
    %149 = vmatmul.f32.gmra.mxu0 %v110
    %v150 = vpop.f32.mrf.mxu0
    %v151 = vadd.f32 %v97, %v150
    %152 = vmatmul.f32.gmra.mxu0 %v113
    %v153 = vpop.f32.mrf.mxu0
    %v154 = vadd.f32 %v97, %v153
    %155 = vmatmul.f32.gmra.mxu0 %v116
    %v156 = vpop.f32.mrf.mxu0
    %v157 = vadd.f32 %v97, %v156
    %158 = vmatmul.f32.gmra.mxu0 %v119
    %v159 = vpop.f32.mrf.mxu0
    %v160 = vadd.f32 %v97, %v159
    %161 = vmatmul.f32.gmra.mxu0 %v122
    %v162 = vpop.f32.mrf.mxu0
    %v163 = vadd.f32 %v97, %v162
    %164 = vmatmul.f32.gmra.mxu0 %v125
    %v165 = vpop.f32.mrf.mxu0
    %v166 = vadd.f32 %v97, %v165
    %167 = vmatmul.f32.gmra.mxu0 %v128
    %v168 = vpop.f32.mrf.mxu0
    %v169 = vadd.f32 %v97, %v168
    %170 = vdwg.mxu0
    %171 = vmatpush.msra.mxu0 0.0
    %172 = vmatpush.msra.mxu0 0.0
    %173 = vmatpush.msra.mxu0 0.0
    %174 = vmatpush.msra.mxu0 0.0
    %175 = vmatpush.msra.mxu0 0.0
    %176 = vmatpush.msra.mxu0 0.0
    %177 = vmatpush.msra.mxu0 0.0
    %178 = vmatpush.msra.mxu0 0.0
    %179 = vmatpush.msra.mxu0 0.0
    %180 = vmatpush.msra.mxu0 0.0
    %181 = vmatpush.msra.mxu0 0.0
    %182 = vmatpush.msra.mxu0 0.0
    %183 = vmatpush.msra.mxu0 0.0
    %184 = vmatpush.msra.mxu0 0.0
    %185 = vmatpush.msra.mxu0 %v92
    %186 = vmatpush.msra.mxu0 %v88
    %187 = vmatmul.f32.gmra.mxu0 %v107
    %v188 = vpop.f32.mrf.mxu0
    %v189 = vadd.f32 %v98, %v188
    %190 = vmatmul.f32.gmra.mxu0 %v110
    %v191 = vpop.f32.mrf.mxu0
    %v192 = vadd.f32 %v98, %v191
    %193 = vmatmul.f32.gmra.mxu0 %v113
    %v194 = vpop.f32.mrf.mxu0
    %v195 = vadd.f32 %v98, %v194
    %196 = vmatmul.f32.gmra.mxu0 %v116
    %v197 = vpop.f32.mrf.mxu0
    %v198 = vadd.f32 %v98, %v197
    %199 = vmatmul.f32.gmra.mxu0 %v119
    %v200 = vpop.f32.mrf.mxu0
    %v201 = vadd.f32 %v98, %v200
    %202 = vmatmul.f32.gmra.mxu0 %v122
    %v203 = vpop.f32.mrf.mxu0
    %v204 = vadd.f32 %v98, %v203
    %205 = vmatmul.f32.gmra.mxu0 %v125
    %v206 = vpop.f32.mrf.mxu0
    %v207 = vadd.f32 %v98, %v206
    %208 = vmatmul.f32.gmra.mxu0 %v128
    %v209 = vpop.f32.mrf.mxu0
    %v210 = vadd.f32 %v98, %v209
    %211 = vdwg.mxu0
    %212 = vmatpush.msra.mxu0 0.0
    %213 = vmatpush.msra.mxu0 0.0
    %214 = vmatpush.msra.mxu0 0.0
    %215 = vmatpush.msra.mxu0 0.0
    %216 = vmatpush.msra.mxu0 0.0
    %217 = vmatpush.msra.mxu0 0.0
    %218 = vmatpush.msra.mxu0 0.0
    %219 = vmatpush.msra.mxu0 0.0
    %220 = vmatpush.msra.mxu0 0.0
    %221 = vmatpush.msra.mxu0 0.0
    %222 = vmatpush.msra.mxu0 0.0
    %223 = vmatpush.msra.mxu0 0.0
    %224 = vmatpush.msra.mxu0 0.0
    %225 = vmatpush.msra.mxu0 0.0
    %226 = vmatpush.msra.mxu0 %v93
    %227 = vmatpush.msra.mxu0 %v89
    %228 = vmatmul.f32.gmra.mxu0 %v107
    %v229 = vpop.f32.mrf.mxu0
    %v230 = vadd.f32 %v99, %v229
    %231 = vmatmul.f32.gmra.mxu0 %v110
    %v232 = vpop.f32.mrf.mxu0
    %v233 = vadd.f32 %v99, %v232
    %234 = vmatmul.f32.gmra.mxu0 %v113
    %v235 = vpop.f32.mrf.mxu0
    %v236 = vadd.f32 %v99, %v235
    %237 = vmatmul.f32.gmra.mxu0 %v116
    %v238 = vpop.f32.mrf.mxu0
    %v239 = vadd.f32 %v99, %v238
    %240 = vmatmul.f32.gmra.mxu0 %v119
    %v241 = vpop.f32.mrf.mxu0
    %v242 = vadd.f32 %v99, %v241
    %243 = vmatmul.f32.gmra.mxu0 %v122
    %v244 = vpop.f32.mrf.mxu0
    %v245 = vadd.f32 %v99, %v244
    %246 = vmatmul.f32.gmra.mxu0 %v125
    %v247 = vpop.f32.mrf.mxu0
    %v248 = vadd.f32 %v99, %v247
    %249 = vmatmul.f32.gmra.mxu0 %v128
    %v250 = vpop.f32.mrf.mxu0
    %v251 = vadd.f32 %v99, %v250
    %252 = vdwg.mxu0
    %253 = vmatpush.msra.mxu0 0.0
    %254 = vmatpush.msra.mxu0 0.0
    %255 = vmatpush.msra.mxu0 0.0
    %256 = vmatpush.msra.mxu0 0.0
    %257 = vmatpush.msra.mxu0 0.0
    %258 = vmatpush.msra.mxu0 0.0
    %259 = vmatpush.msra.mxu0 0.0
    %260 = vmatpush.msra.mxu0 0.0
    %261 = vmatpush.msra.mxu0 0.0
    %262 = vmatpush.msra.mxu0 0.0
    %263 = vmatpush.msra.mxu0 0.0
    %264 = vmatpush.msra.mxu0 0.0
    %265 = vmatpush.msra.mxu0 0.0
    %266 = vmatpush.msra.mxu0 0.0
    %267 = vmatpush.msra.mxu0 %v94
    %268 = vmatpush.msra.mxu0 %v90
    %269 = vmatmul.f32.gmra.mxu0 %v107
    %v270 = vpop.f32.mrf.mxu0
    %v271 = vadd.f32 %v100, %v270
    %272 = vmatmul.f32.gmra.mxu0 %v110
    %v273 = vpop.f32.mrf.mxu0
    %v274 = vadd.f32 %v100, %v273
    %275 = vmatmul.f32.gmra.mxu0 %v113
    %v276 = vpop.f32.mrf.mxu0
    %v277 = vadd.f32 %v100, %v276
    %278 = vmatmul.f32.gmra.mxu0 %v116
    %v279 = vpop.f32.mrf.mxu0
    %v280 = vadd.f32 %v100, %v279
    %281 = vmatmul.f32.gmra.mxu0 %v119
    %v282 = vpop.f32.mrf.mxu0
    %v283 = vadd.f32 %v100, %v282
    %284 = vmatmul.f32.gmra.mxu0 %v122
    %v285 = vpop.f32.mrf.mxu0
    %v286 = vadd.f32 %v100, %v285
    %287 = vmatmul.f32.gmra.mxu0 %v125
    %v288 = vpop.f32.mrf.mxu0
    %v289 = vadd.f32 %v100, %v288
    %290 = vmatmul.f32.gmra.mxu0 %v128
    %v291 = vpop.f32.mrf.mxu0
    %v292 = vadd.f32 %v100, %v291
    %293 = vdwg.mxu0
    %294 = vst [vmem:[#allocation3] sm:$0xff] %v148
    %295 = vst [vmem:[#allocation3 + $0x8] sm:$0xff] %v189
    %296 = vst [vmem:[#allocation3 + $0x10] sm:$0xff] %v230
    %297 = vst [vmem:[#allocation3 + $0x18] sm:$0xff] %v271
    %298 = vst [vmem:[#allocation3 + $0x20] sm:$0xff] %v151
    %299 = vst [vmem:[#allocation3 + $0x28] sm:$0xff] %v192
    %300 = vst [vmem:[#allocation3 + $0x30] sm:$0xff] %v233
    %301 = vst [vmem:[#allocation3 + $0x38] sm:$0xff] %v274
    %302 = vst [vmem:[#allocation3 + $0x40] sm:$0xff] %v154
    %303 = vst [vmem:[#allocation3 + $0x48] sm:$0xff] %v195
    %304 = vst [vmem:[#allocation3 + $0x50] sm:$0xff] %v236
    %305 = vst [vmem:[#allocation3 + $0x58] sm:$0xff] %v277
    %306 = vst [vmem:[#allocation3 + $0x60] sm:$0xff] %v157
    %307 = vst [vmem:[#allocation3 + $0x68] sm:$0xff] %v198
    %308 = vst [vmem:[#allocation3 + $0x70] sm:$0xff] %v239
    %309 = vst [vmem:[#allocation3 + $0x78] sm:$0xff] %v280
    %310 = vst [vmem:[#allocation3 + $0x80] sm:$0xff] %v160
    %311 = vst [vmem:[#allocation3 + $0x88] sm:$0xff] %v201
    %312 = vst [vmem:[#allocation3 + $0x90] sm:$0xff] %v242
    %313 = vst [vmem:[#allocation3 + $0x98] sm:$0xff] %v283
    %314 = vst [vmem:[#allocation3 + $0xa0] sm:$0xff] %v163
    %315 = vst [vmem:[#allocation3 + $0xa8] sm:$0xff] %v204
    %316 = vst [vmem:[#allocation3 + $0xb0] sm:$0xff] %v245
    %317 = vst [vmem:[#allocation3 + $0xb8] sm:$0xff] %v286
    %318 = vst [vmem:[#allocation3 + $0xc0] sm:$0xff] %v166
    %319 = vst [vmem:[#allocation3 + $0xc8] sm:$0xff] %v207
    %320 = vst [vmem:[#allocation3 + $0xd0] sm:$0xff] %v248
    %321 = vst [vmem:[#allocation3 + $0xd8] sm:$0xff] %v289
    %322 = vst [vmem:[#allocation3 + $0xe0] sm:$0xff] %v169
    %323 = vst [vmem:[#allocation3 + $0xe8] sm:$0xff] %v210
    %324 = vst [vmem:[#allocation3 + $0xf0] sm:$0xff] %v251
    %325 = vst [vmem:[#allocation3 + $0xf8] sm:$0xff] %v292
    %v326 = vld [vmem:[#allocation4] sm:$0xff]
    %v327 = vld [vmem:[#allocation4 + $0x8] sm:$0xff]
    %v328 = vld [vmem:[#allocation4 + $0x10] sm:$0xff]
    %v329 = vld [vmem:[#allocation4 + $0x18] sm:$0xff]
    %v330 = vld [vmem:[#allocation4 + $0x20] sm:$0xff]
    %v331 = vld [vmem:[#allocation4 + $0x28] sm:$0xff]
    %v332 = vld [vmem:[#allocation4 + $0x30] sm:$0xff]
    %v333 = vld [vmem:[#allocation4 + $0x38] sm:$0xff]
    %v334 = vld [vmem:[#allocation4 + $0x40] sm:$0xff]
    %v335 = vld [vmem:[#allocation4 + $0x48] sm:$0xff]
    %v336 = vld [vmem:[#allocation4 + $0x50] sm:$0xff]
    %v337 = vld [vmem:[#allocation4 + $0x58] sm:$0xff]
    %v338 = vld [vmem:[#allocation4 + $0x60] sm:$0xff]
    %v339 = vld [vmem:[#allocation4 + $0x68] sm:$0xff]
    %v340 = vld [vmem:[#allocation4 + $0x70] sm:$0xff]
    %v341 = vld [vmem:[#allocation4 + $0x78] sm:$0xff]
    %v342 = vld [vmem:[#allocation4 + $0x80] sm:$0xff]
    %v343 = vld [vmem:[#allocation4 + $0x88] sm:$0xff]
    %v344 = vld [vmem:[#allocation4 + $0x90] sm:$0xff]
    %v345 = vld [vmem:[#allocation4 + $0x98] sm:$0xff]
    %v346 = vld [vmem:[#allocation4 + $0xa0] sm:$0xff]
    %v347 = vld [vmem:[#allocation4 + $0xa8] sm:$0xff]
    %v348 = vld [vmem:[#allocation4 + $0xb0] sm:$0xff]
    %v349 = vld [vmem:[#allocation4 + $0xb8] sm:$0xff]
    %v350 = vld [vmem:[#allocation4 + $0xc0] sm:$0xff]
    %v351 = vld [vmem:[#allocation4 + $0xc8] sm:$0xff]
    %v352 = vld [vmem:[#allocation4 + $0xd0] sm:$0xff]
    %v353 = vld [vmem:[#allocation4 + $0xd8] sm:$0xff]
    %v354 = vld [vmem:[#allocation4 + $0xe0] sm:$0xff]
    %v355 = vld [vmem:[#allocation4 + $0xe8] sm:$0xff]
    %v356 = vld [vmem:[#allocation4 + $0xf0] sm:$0xff]
    %v357 = vld [vmem:[#allocation4 + $0xf8] sm:$0xff]
    %v358 = vld [vmem:[#allocation4 + $0x100] sm:$0xff]
    %v359 = vld [vmem:[#allocation4 + $0x108] sm:$0xff]
    %v360 = vld [vmem:[#allocation4 + $0x110] sm:$0xff]
    %v361 = vld [vmem:[#allocation4 + $0x118] sm:$0xff]
    %v362 = vld [vmem:[#allocation4 + $0x120] sm:$0xff]
    %v363 = vld [vmem:[#allocation4 + $0x128] sm:$0xff]
    %v364 = vld [vmem:[#allocation4 + $0x130] sm:$0xff]
    %v365 = vld [vmem:[#allocation4 + $0x138] sm:$0xff]
    %v366 = vld [vmem:[#allocation4 + $0x140] sm:$0xff]
    %v367 = vld [vmem:[#allocation4 + $0x148] sm:$0xff]
    %v368 = vld [vmem:[#allocation4 + $0x150] sm:$0xff]
    %v369 = vld [vmem:[#allocation4 + $0x158] sm:$0xff]
    %v370 = vld [vmem:[#allocation4 + $0x160] sm:$0xff]
    %v371 = vld [vmem:[#allocation4 + $0x168] sm:$0xff]
    %v372 = vld [vmem:[#allocation4 + $0x170] sm:$0xff]
    %v373 = vld [vmem:[#allocation4 + $0x178] sm:$0xff]
    %v374 = vld [vmem:[#allocation4 + $0x180] sm:$0xff]
    %v375 = vld [vmem:[#allocation4 + $0x188] sm:$0xff]
    %v376 = vld [vmem:[#allocation4 + $0x190] sm:$0xff]
    %v377 = vld [vmem:[#allocation4 + $0x198] sm:$0xff]
    %v378 = vld [vmem:[#allocation4 + $0x1a0] sm:$0xff]
    %v379 = vld [vmem:[#allocation4 + $0x1a8] sm:$0xff]
    %v380 = vld [vmem:[#allocation4 + $0x1b0] sm:$0xff]
    %v381 = vld [vmem:[#allocation4 + $0x1b8] sm:$0xff]
    %v382 = vld [vmem:[#allocation4 + $0x1c0] sm:$0xff]
    %v383 = vld [vmem:[#allocation4 + $0x1c8] sm:$0xff]
    %v384 = vld [vmem:[#allocation4 + $0x1d0] sm:$0xff]
    %v385 = vld [vmem:[#allocation4 + $0x1d8] sm:$0xff]
    %v386 = vld [vmem:[#allocation4 + $0x1e0] sm:$0xff]
    %v387 = vld [vmem:[#allocation4 + $0x1e8] sm:$0xff]
    %v388 = vld [vmem:[#allocation4 + $0x1f0] sm:$0xff]
    %v389 = vld [vmem:[#allocation4 + $0x1f8] sm:$0xff]
    %s390 = smul.u32 0, 4
    %s391 = smul.addr %s390, 8
    %s392 = scalar_lea.vmem [#allocation3], %s391
    %v393 = vld [vmem:[%s392] sm:$0xff]
    %v394 = vld [vmem:[%s392 + $0x8] sm:$0xff]
    %v395 = vld [vmem:[%s392 + $0x10] sm:$0xff]
    %v396 = vld [vmem:[%s392 + $0x18] sm:$0xff]
    %397 = vmatpush.msra.mxu0 %v386
    %398 = vmatpush.msra.mxu0 %v382
    %399 = vmatpush.msra.mxu0 %v378
    %400 = vmatpush.msra.mxu0 %v374
    %401 = vmatpush.msra.mxu0 %v370
    %402 = vmatpush.msra.mxu0 %v366
    %403 = vmatpush.msra.mxu0 %v362
    %404 = vmatpush.msra.mxu0 %v358
    %405 = vmatpush.msra.mxu0 %v354
    %406 = vmatpush.msra.mxu0 %v350
    %407 = vmatpush.msra.mxu0 %v346
    %408 = vmatpush.msra.mxu0 %v342
    %409 = vmatpush.msra.mxu0 %v338
    %410 = vmatpush.msra.mxu0 %v334
    %411 = vmatpush.msra.mxu0 %v330
    %412 = vmatpush.msra.mxu0 %v326
    %413 = vmatmul.f32.gmra.mxu0 0.0
    %v414 = vpop.f32.mrf.mxu0
    %v415 = vadd.f32 0.0, %v414
    %416 = vdwg.mxu0
    %417 = vmatpush.msra.mxu0 %v387
    %418 = vmatpush.msra.mxu0 %v383
    %419 = vmatpush.msra.mxu0 %v379
    %420 = vmatpush.msra.mxu0 %v375
    %421 = vmatpush.msra.mxu0 %v371
    %422 = vmatpush.msra.mxu0 %v367
    %423 = vmatpush.msra.mxu0 %v363
    %424 = vmatpush.msra.mxu0 %v359
    %425 = vmatpush.msra.mxu0 %v355
    %426 = vmatpush.msra.mxu0 %v351
    %427 = vmatpush.msra.mxu0 %v347
    %428 = vmatpush.msra.mxu0 %v343
    %429 = vmatpush.msra.mxu0 %v339
    %430 = vmatpush.msra.mxu0 %v335
    %431 = vmatpush.msra.mxu0 %v331
    %432 = vmatpush.msra.mxu0 %v327
    %433 = vmatmul.f32.gmra.mxu0 0.0
    %v434 = vpop.f32.mrf.mxu0
    %v435 = vadd.f32 0.0, %v434
    %436 = vdwg.mxu0
    %437 = vmatpush.msra.mxu0 %v388
    %438 = vmatpush.msra.mxu0 %v384
    %439 = vmatpush.msra.mxu0 %v380
    %440 = vmatpush.msra.mxu0 %v376
    %441 = vmatpush.msra.mxu0 %v372
    %442 = vmatpush.msra.mxu0 %v368
    %443 = vmatpush.msra.mxu0 %v364
    %444 = vmatpush.msra.mxu0 %v360
    %445 = vmatpush.msra.mxu0 %v356
    %446 = vmatpush.msra.mxu0 %v352
    %447 = vmatpush.msra.mxu0 %v348
    %448 = vmatpush.msra.mxu0 %v344
    %449 = vmatpush.msra.mxu0 %v340
    %450 = vmatpush.msra.mxu0 %v336
    %451 = vmatpush.msra.mxu0 %v332
    %452 = vmatpush.msra.mxu0 %v328
    %453 = vmatmul.f32.gmra.mxu0 0.0
    %v454 = vpop.f32.mrf.mxu0
    %v455 = vadd.f32 0.0, %v454
    %456 = vdwg.mxu0
    %457 = vmatpush.msra.mxu0 %v389
    %458 = vmatpush.msra.mxu0 %v385
    %459 = vmatpush.msra.mxu0 %v381
    %460 = vmatpush.msra.mxu0 %v377
    %461 = vmatpush.msra.mxu0 %v373
    %462 = vmatpush.msra.mxu0 %v369
    %463 = vmatpush.msra.mxu0 %v365
    %464 = vmatpush.msra.mxu0 %v361
    %465 = vmatpush.msra.mxu0 %v357
    %466 = vmatpush.msra.mxu0 %v353
    %467 = vmatpush.msra.mxu0 %v349
    %468 = vmatpush.msra.mxu0 %v345
    %469 = vmatpush.msra.mxu0 %v341
    %470 = vmatpush.msra.mxu0 %v337
    %471 = vmatpush.msra.mxu0 %v333
    %472 = vmatpush.msra.mxu0 %v329
    %473 = vmatmul.f32.gmra.mxu0 0.0
    %v474 = vpop.f32.mrf.mxu0
    %v475 = vadd.f32 0.0, %v474
    %476 = vdwg.mxu0
    %v477 = vadd.f32 %v393, %v415
    %v478 = vadd.f32 %v394, %v435
    %v479 = vadd.f32 %v395, %v455
    %v480 = vadd.f32 %v396, %v475
    %v481 = vxor.u32 %v477, 2147483648
    %v482 = vmul.f32 %v481, 1.442695
    %v483 = vpow.pop %v482
    %v484 = vadd.f32 %v483, 1.0
    %v485 = vrcp.pop %v484
    %v486 = vmul.f32 %v484, %v485
    %v487 = vsub.f32 1.0, %v486
    %v488 = vmul.f32 %v485, %v487
    %v489 = vadd.f32 %v485, %v488
    %vm490 = vweird.f32 %v484
    %vm491 = vweird.f32 %v485
    %vm492 = vmor %vm490, %vm491
    %v493 = vsel %vm492, %v485, %v489
    %v494 = vand.u32 2147483647, %v484
    %vm495 = vcmp.eq.f32.partialorder %v494, 8.507059e+37
    %v496 = vand.u32 %v484, 2147483648
    %v497 = vor.u32 1.1754944e-38, %v496
    %v498 = vsel %vm495, %v497, %v493
    %v499 = vmul.f32 1.0, %v498
    %v500 = vxor.u32 %v478, 2147483648
    %v501 = vmul.f32 %v500, 1.442695
    %v502 = vpow.pop %v501
    %v503 = vadd.f32 %v502, 1.0
    %v504 = vrcp.pop %v503
    %v505 = vmul.f32 %v503, %v504
    %v506 = vsub.f32 1.0, %v505
    %v507 = vmul.f32 %v504, %v506
    %v508 = vadd.f32 %v504, %v507
    %vm509 = vweird.f32 %v503
    %vm510 = vweird.f32 %v504
    %vm511 = vmor %vm509, %vm510
    %v512 = vsel %vm511, %v504, %v508
    %v513 = vand.u32 2147483647, %v503
    %vm514 = vcmp.eq.f32.partialorder %v513, 8.507059e+37
    %v515 = vand.u32 %v503, 2147483648
    %v516 = vor.u32 1.1754944e-38, %v515
    %v517 = vsel %vm514, %v516, %v512
    %v518 = vmul.f32 1.0, %v517
    %v519 = vtanh.pop %v479
    %v520 = vxor.u32 %v480, 2147483648
    %v521 = vmul.f32 %v520, 1.442695
    %v522 = vpow.pop %v521
    %v523 = vadd.f32 %v522, 1.0
    %v524 = vrcp.pop %v523
    %v525 = vmul.f32 %v523, %v524
    %v526 = vsub.f32 1.0, %v525
    %v527 = vmul.f32 %v524, %v526
    %v528 = vadd.f32 %v524, %v527
    %vm529 = vweird.f32 %v523
    %vm530 = vweird.f32 %v524
    %vm531 = vmor %vm529, %vm530
    %v532 = vsel %vm531, %v524, %v528
    %v533 = vand.u32 2147483647, %v523
    %vm534 = vcmp.eq.f32.partialorder %v533, 8.507059e+37
    %v535 = vand.u32 %v523, 2147483648
    %v536 = vor.u32 1.1754944e-38, %v535
    %v537 = vsel %vm534, %v536, %v532
    %v538 = vmul.f32 1.0, %v537
    %v539 = vmul.f32 %v518, 0.0
    %v540 = vmul.f32 %v499, %v519
    %v541 = vadd.f32 %v539, %v540
    %v542 = vtanh.pop %v541
    %v543 = vmul.f32 %v538, %v542
    %544 = vst [vmem:[#allocation2] sm:$0xff] %v543
    %s545 = smul.u32 1, 4
    %s546 = smul.addr %s545, 8
    %s547 = scalar_lea.vmem [#allocation3], %s546
    %v548 = vld [vmem:[%s547] sm:$0xff]
    %v549 = vld [vmem:[%s547 + $0x8] sm:$0xff]
    %v550 = vld [vmem:[%s547 + $0x10] sm:$0xff]
    %v551 = vld [vmem:[%s547 + $0x18] sm:$0xff]
    %552 = vmatpush.msra.mxu0 %v386
    %553 = vmatpush.msra.mxu0 %v382
    %554 = vmatpush.msra.mxu0 %v378
    %555 = vmatpush.msra.mxu0 %v374
    %556 = vmatpush.msra.mxu0 %v370
    %557 = vmatpush.msra.mxu0 %v366
    %558 = vmatpush.msra.mxu0 %v362
    %559 = vmatpush.msra.mxu0 %v358
    %560 = vmatpush.msra.mxu0 %v354
    %561 = vmatpush.msra.mxu0 %v350
    %562 = vmatpush.msra.mxu0 %v346
    %563 = vmatpush.msra.mxu0 %v342
    %564 = vmatpush.msra.mxu0 %v338
    %565 = vmatpush.msra.mxu0 %v334
    %566 = vmatpush.msra.mxu0 %v330
    %567 = vmatpush.msra.mxu0 %v326
    %568 = vmatmul.f32.gmra.mxu0 %v543
    %v569 = vpop.f32.mrf.mxu0
    %v570 = vadd.f32 0.0, %v569
    %571 = vdwg.mxu0
    %572 = vmatpush.msra.mxu0 %v387
    %573 = vmatpush.msra.mxu0 %v383
    %574 = vmatpush.msra.mxu0 %v379
    %575 = vmatpush.msra.mxu0 %v375
    %576 = vmatpush.msra.mxu0 %v371
    %577 = vmatpush.msra.mxu0 %v367
    %578 = vmatpush.msra.mxu0 %v363
    %579 = vmatpush.msra.mxu0 %v359
    %580 = vmatpush.msra.mxu0 %v355
    %581 = vmatpush.msra.mxu0 %v351
    %582 = vmatpush.msra.mxu0 %v347
    %583 = vmatpush.msra.mxu0 %v343
    %584 = vmatpush.msra.mxu0 %v339
    %585 = vmatpush.msra.mxu0 %v335
    %586 = vmatpush.msra.mxu0 %v331
    %587 = vmatpush.msra.mxu0 %v327
    %588 = vmatmul.f32.gmra.mxu0 %v543
    %v589 = vpop.f32.mrf.mxu0
    %v590 = vadd.f32 0.0, %v589
    %591 = vdwg.mxu0
    %592 = vmatpush.msra.mxu0 %v388
    %593 = vmatpush.msra.mxu0 %v384
    %594 = vmatpush.msra.mxu0 %v380
    %595 = vmatpush.msra.mxu0 %v376
    %596 = vmatpush.msra.mxu0 %v372
    %597 = vmatpush.msra.mxu0 %v368
    %598 = vmatpush.msra.mxu0 %v364
    %599 = vmatpush.msra.mxu0 %v360
    %600 = vmatpush.msra.mxu0 %v356
    %601 = vmatpush.msra.mxu0 %v352
    %602 = vmatpush.msra.mxu0 %v348
    %603 = vmatpush.msra.mxu0 %v344
    %604 = vmatpush.msra.mxu0 %v340
    %605 = vmatpush.msra.mxu0 %v336
    %606 = vmatpush.msra.mxu0 %v332
    %607 = vmatpush.msra.mxu0 %v328
    %608 = vmatmul.f32.gmra.mxu0 %v543
    %v609 = vpop.f32.mrf.mxu0
    %v610 = vadd.f32 0.0, %v609
    %611 = vdwg.mxu0
    %612 = vmatpush.msra.mxu0 %v389
    %613 = vmatpush.msra.mxu0 %v385
    %614 = vmatpush.msra.mxu0 %v381
    %615 = vmatpush.msra.mxu0 %v377
    %616 = vmatpush.msra.mxu0 %v373
    %617 = vmatpush.msra.mxu0 %v369
    %618 = vmatpush.msra.mxu0 %v365
    %619 = vmatpush.msra.mxu0 %v361
    %620 = vmatpush.msra.mxu0 %v357
    %621 = vmatpush.msra.mxu0 %v353
    %622 = vmatpush.msra.mxu0 %v349
    %623 = vmatpush.msra.mxu0 %v345
    %624 = vmatpush.msra.mxu0 %v341
    %625 = vmatpush.msra.mxu0 %v337
    %626 = vmatpush.msra.mxu0 %v333
    %627 = vmatpush.msra.mxu0 %v329
    %628 = vmatmul.f32.gmra.mxu0 %v543
    %v629 = vpop.f32.mrf.mxu0
    %v630 = vadd.f32 0.0, %v629
    %631 = vdwg.mxu0
    %v632 = vadd.f32 %v548, %v570
    %v633 = vadd.f32 %v549, %v590
    %v634 = vadd.f32 %v550, %v610
    %v635 = vadd.f32 %v551, %v630
    %v636 = vxor.u32 %v632, 2147483648
    %v637 = vmul.f32 %v636, 1.442695
    %v638 = vpow.pop %v637
    %v639 = vadd.f32 %v638, 1.0
    %v640 = vrcp.pop %v639
    %v641 = vmul.f32 %v639, %v640
    %v642 = vsub.f32 1.0, %v641
    %v643 = vmul.f32 %v640, %v642
    %v644 = vadd.f32 %v640, %v643
    %vm645 = vweird.f32 %v639
    %vm646 = vweird.f32 %v640
    %vm647 = vmor %vm645, %vm646
    %v648 = vsel %vm647, %v640, %v644
    %v649 = vand.u32 2147483647, %v639
    %vm650 = vcmp.eq.f32.partialorder %v649, 8.507059e+37
    %v651 = vand.u32 %v639, 2147483648
    %v652 = vor.u32 1.1754944e-38, %v651
    %v653 = vsel %vm650, %v652, %v648
    %v654 = vmul.f32 1.0, %v653
    %v655 = vxor.u32 %v633, 2147483648
    %v656 = vmul.f32 %v655, 1.442695
    %v657 = vpow.pop %v656
    %v658 = vadd.f32 %v657, 1.0
    %v659 = vrcp.pop %v658
    %v660 = vmul.f32 %v658, %v659
    %v661 = vsub.f32 1.0, %v660
    %v662 = vmul.f32 %v659, %v661
    %v663 = vadd.f32 %v659, %v662
    %vm664 = vweird.f32 %v658
    %vm665 = vweird.f32 %v659
    %vm666 = vmor %vm664, %vm665
    %v667 = vsel %vm666, %v659, %v663
    %v668 = vand.u32 2147483647, %v658
    %vm669 = vcmp.eq.f32.partialorder %v668, 8.507059e+37
    %v670 = vand.u32 %v658, 2147483648
    %v671 = vor.u32 1.1754944e-38, %v670
    %v672 = vsel %vm669, %v671, %v667
    %v673 = vmul.f32 1.0, %v672
    %v674 = vtanh.pop %v634
    %v675 = vxor.u32 %v635, 2147483648
    %v676 = vmul.f32 %v675, 1.442695
    %v677 = vpow.pop %v676
    %v678 = vadd.f32 %v677, 1.0
    %v679 = vrcp.pop %v678
    %v680 = vmul.f32 %v678, %v679
    %v681 = vsub.f32 1.0, %v680
    %v682 = vmul.f32 %v679, %v681
    %v683 = vadd.f32 %v679, %v682
    %vm684 = vweird.f32 %v678
    %vm685 = vweird.f32 %v679
    %vm686 = vmor %vm684, %vm685
    %v687 = vsel %vm686, %v679, %v683
    %v688 = vand.u32 2147483647, %v678
    %vm689 = vcmp.eq.f32.partialorder %v688, 8.507059e+37
    %v690 = vand.u32 %v678, 2147483648
    %v691 = vor.u32 1.1754944e-38, %v690
    %v692 = vsel %vm689, %v691, %v687
    %v693 = vmul.f32 1.0, %v692
    %v694 = vmul.f32 %v673, %v541
    %v695 = vmul.f32 %v654, %v674
    %v696 = vadd.f32 %v694, %v695
    %v697 = vtanh.pop %v696
    %v698 = vmul.f32 %v693, %v697
    %s699 = scalar_lea.vmem [#allocation2], 8
    %700 = vst [vmem:[%s699] sm:$0xff] %v698
    %s701 = smul.u32 2, 4
    %s702 = smul.addr %s701, 8
    %s703 = scalar_lea.vmem [#allocation3], %s702
    %v704 = vld [vmem:[%s703] sm:$0xff]
    %v705 = vld [vmem:[%s703 + $0x8] sm:$0xff]
    %v706 = vld [vmem:[%s703 + $0x10] sm:$0xff]
    %v707 = vld [vmem:[%s703 + $0x18] sm:$0xff]
    %708 = vmatpush.msra.mxu0 %v386
    %709 = vmatpush.msra.mxu0 %v382
    %710 = vmatpush.msra.mxu0 %v378
    %711 = vmatpush.msra.mxu0 %v374
    %712 = vmatpush.msra.mxu0 %v370
    %713 = vmatpush.msra.mxu0 %v366
    %714 = vmatpush.msra.mxu0 %v362
    %715 = vmatpush.msra.mxu0 %v358
    %716 = vmatpush.msra.mxu0 %v354
    %717 = vmatpush.msra.mxu0 %v350
    %718 = vmatpush.msra.mxu0 %v346
    %719 = vmatpush.msra.mxu0 %v342
    %720 = vmatpush.msra.mxu0 %v338
    %721 = vmatpush.msra.mxu0 %v334
    %722 = vmatpush.msra.mxu0 %v330
    %723 = vmatpush.msra.mxu0 %v326
    %724 = vmatmul.f32.gmra.mxu0 %v698
    %v725 = vpop.f32.mrf.mxu0
    %v726 = vadd.f32 0.0, %v725
    %727 = vdwg.mxu0
    %728 = vmatpush.msra.mxu0 %v387
    %729 = vmatpush.msra.mxu0 %v383
    %730 = vmatpush.msra.mxu0 %v379
    %731 = vmatpush.msra.mxu0 %v375
    %732 = vmatpush.msra.mxu0 %v371
    %733 = vmatpush.msra.mxu0 %v367
    %734 = vmatpush.msra.mxu0 %v363
    %735 = vmatpush.msra.mxu0 %v359
    %736 = vmatpush.msra.mxu0 %v355
    %737 = vmatpush.msra.mxu0 %v351
    %738 = vmatpush.msra.mxu0 %v347
    %739 = vmatpush.msra.mxu0 %v343
    %740 = vmatpush.msra.mxu0 %v339
    %741 = vmatpush.msra.mxu0 %v335
    %742 = vmatpush.msra.mxu0 %v331
    %743 = vmatpush.msra.mxu0 %v327
    %744 = vmatmul.f32.gmra.mxu0 %v698
    %v745 = vpop.f32.mrf.mxu0
    %v746 = vadd.f32 0.0, %v745
    %747 = vdwg.mxu0
    %748 = vmatpush.msra.mxu0 %v388
    %749 = vmatpush.msra.mxu0 %v384
    %750 = vmatpush.msra.mxu0 %v380
    %751 = vmatpush.msra.mxu0 %v376
    %752 = vmatpush.msra.mxu0 %v372
    %753 = vmatpush.msra.mxu0 %v368
    %754 = vmatpush.msra.mxu0 %v364
    %755 = vmatpush.msra.mxu0 %v360
    %756 = vmatpush.msra.mxu0 %v356
    %757 = vmatpush.msra.mxu0 %v352
    %758 = vmatpush.msra.mxu0 %v348
    %759 = vmatpush.msra.mxu0 %v344
    %760 = vmatpush.msra.mxu0 %v340
    %761 = vmatpush.msra.mxu0 %v336
    %762 = vmatpush.msra.mxu0 %v332
    %763 = vmatpush.msra.mxu0 %v328
    %764 = vmatmul.f32.gmra.mxu0 %v698
    %v765 = vpop.f32.mrf.mxu0
    %v766 = vadd.f32 0.0, %v765
    %767 = vdwg.mxu0
    %768 = vmatpush.msra.mxu0 %v389
    %769 = vmatpush.msra.mxu0 %v385
    %770 = vmatpush.msra.mxu0 %v381
    %771 = vmatpush.msra.mxu0 %v377
    %772 = vmatpush.msra.mxu0 %v373
    %773 = vmatpush.msra.mxu0 %v369
    %774 = vmatpush.msra.mxu0 %v365
    %775 = vmatpush.msra.mxu0 %v361
    %776 = vmatpush.msra.mxu0 %v357
    %777 = vmatpush.msra.mxu0 %v353
    %778 = vmatpush.msra.mxu0 %v349
    %779 = vmatpush.msra.mxu0 %v345
    %780 = vmatpush.msra.mxu0 %v341
    %781 = vmatpush.msra.mxu0 %v337
    %782 = vmatpush.msra.mxu0 %v333
    %783 = vmatpush.msra.mxu0 %v329
    %784 = vmatmul.f32.gmra.mxu0 %v698
    %v785 = vpop.f32.mrf.mxu0
    %v786 = vadd.f32 0.0, %v785
    %787 = vdwg.mxu0
    %v788 = vadd.f32 %v704, %v726
    %v789 = vadd.f32 %v705, %v746
    %v790 = vadd.f32 %v706, %v766
    %v791 = vadd.f32 %v707, %v786
    %v792 = vxor.u32 %v788, 2147483648
    %v793 = vmul.f32 %v792, 1.442695
    %v794 = vpow.pop %v793
    %v795 = vadd.f32 %v794, 1.0
    %v796 = vrcp.pop %v795
    %v797 = vmul.f32 %v795, %v796
    %v798 = vsub.f32 1.0, %v797
    %v799 = vmul.f32 %v796, %v798
    %v800 = vadd.f32 %v796, %v799
    %vm801 = vweird.f32 %v795
    %vm802 = vweird.f32 %v796
    %vm803 = vmor %vm801, %vm802
    %v804 = vsel %vm803, %v796, %v800
    %v805 = vand.u32 2147483647, %v795
    %vm806 = vcmp.eq.f32.partialorder %v805, 8.507059e+37
    %v807 = vand.u32 %v795, 2147483648
    %v808 = vor.u32 1.1754944e-38, %v807
    %v809 = vsel %vm806, %v808, %v804
    %v810 = vmul.f32 1.0, %v809
    %v811 = vxor.u32 %v789, 2147483648
    %v812 = vmul.f32 %v811, 1.442695
    %v813 = vpow.pop %v812
    %v814 = vadd.f32 %v813, 1.0
    %v815 = vrcp.pop %v814
    %v816 = vmul.f32 %v814, %v815
    %v817 = vsub.f32 1.0, %v816
    %v818 = vmul.f32 %v815, %v817
    %v819 = vadd.f32 %v815, %v818
    %vm820 = vweird.f32 %v814
    %vm821 = vweird.f32 %v815
    %vm822 = vmor %vm820, %vm821
    %v823 = vsel %vm822, %v815, %v819
    %v824 = vand.u32 2147483647, %v814
    %vm825 = vcmp.eq.f32.partialorder %v824, 8.507059e+37
    %v826 = vand.u32 %v814, 2147483648
    %v827 = vor.u32 1.1754944e-38, %v826
    %v828 = vsel %vm825, %v827, %v823
    %v829 = vmul.f32 1.0, %v828
    %v830 = vtanh.pop %v790
    %v831 = vxor.u32 %v791, 2147483648
    %v832 = vmul.f32 %v831, 1.442695
    %v833 = vpow.pop %v832
    %v834 = vadd.f32 %v833, 1.0
    %v835 = vrcp.pop %v834
    %v836 = vmul.f32 %v834, %v835
    %v837 = vsub.f32 1.0, %v836
    %v838 = vmul.f32 %v835, %v837
    %v839 = vadd.f32 %v835, %v838
    %vm840 = vweird.f32 %v834
    %vm841 = vweird.f32 %v835
    %vm842 = vmor %vm840, %vm841
    %v843 = vsel %vm842, %v835, %v839
    %v844 = vand.u32 2147483647, %v834
    %vm845 = vcmp.eq.f32.partialorder %v844, 8.507059e+37
    %v846 = vand.u32 %v834, 2147483648
    %v847 = vor.u32 1.1754944e-38, %v846
    %v848 = vsel %vm845, %v847, %v843
    %v849 = vmul.f32 1.0, %v848
    %v850 = vmul.f32 %v829, %v696
    %v851 = vmul.f32 %v810, %v830
    %v852 = vadd.f32 %v850, %v851
    %v853 = vtanh.pop %v852
    %v854 = vmul.f32 %v849, %v853
    %s855 = scalar_lea.vmem [#allocation2], 16
    %856 = vst [vmem:[%s855] sm:$0xff] %v854
    %s857 = smul.u32 3, 4
    %s858 = smul.addr %s857, 8
    %s859 = scalar_lea.vmem [#allocation3], %s858
    %v860 = vld [vmem:[%s859] sm:$0xff]
    %v861 = vld [vmem:[%s859 + $0x8] sm:$0xff]
    %v862 = vld [vmem:[%s859 + $0x10] sm:$0xff]
    %v863 = vld [vmem:[%s859 + $0x18] sm:$0xff]
    %864 = vmatpush.msra.mxu0 %v386
    %865 = vmatpush.msra.mxu0 %v382
    %866 = vmatpush.msra.mxu0 %v378
    %867 = vmatpush.msra.mxu0 %v374
    %868 = vmatpush.msra.mxu0 %v370
    %869 = vmatpush.msra.mxu0 %v366
    %870 = vmatpush.msra.mxu0 %v362
    %871 = vmatpush.msra.mxu0 %v358
    %872 = vmatpush.msra.mxu0 %v354
    %873 = vmatpush.msra.mxu0 %v350
    %874 = vmatpush.msra.mxu0 %v346
    %875 = vmatpush.msra.mxu0 %v342
    %876 = vmatpush.msra.mxu0 %v338
    %877 = vmatpush.msra.mxu0 %v334
    %878 = vmatpush.msra.mxu0 %v330
    %879 = vmatpush.msra.mxu0 %v326
    %880 = vmatmul.f32.gmra.mxu0 %v854
    %v881 = vpop.f32.mrf.mxu0
    %v882 = vadd.f32 0.0, %v881
    %883 = vdwg.mxu0
    %884 = vmatpush.msra.mxu0 %v387
    %885 = vmatpush.msra.mxu0 %v383
    %886 = vmatpush.msra.mxu0 %v379
    %887 = vmatpush.msra.mxu0 %v375
    %888 = vmatpush.msra.mxu0 %v371
    %889 = vmatpush.msra.mxu0 %v367
    %890 = vmatpush.msra.mxu0 %v363
    %891 = vmatpush.msra.mxu0 %v359
    %892 = vmatpush.msra.mxu0 %v355
    %893 = vmatpush.msra.mxu0 %v351
    %894 = vmatpush.msra.mxu0 %v347
    %895 = vmatpush.msra.mxu0 %v343
    %896 = vmatpush.msra.mxu0 %v339
    %897 = vmatpush.msra.mxu0 %v335
    %898 = vmatpush.msra.mxu0 %v331
    %899 = vmatpush.msra.mxu0 %v327
    %900 = vmatmul.f32.gmra.mxu0 %v854
    %v901 = vpop.f32.mrf.mxu0
    %v902 = vadd.f32 0.0, %v901
    %903 = vdwg.mxu0
    %904 = vmatpush.msra.mxu0 %v388
    %905 = vmatpush.msra.mxu0 %v384
    %906 = vmatpush.msra.mxu0 %v380
    %907 = vmatpush.msra.mxu0 %v376
    %908 = vmatpush.msra.mxu0 %v372
    %909 = vmatpush.msra.mxu0 %v368
    %910 = vmatpush.msra.mxu0 %v364
    %911 = vmatpush.msra.mxu0 %v360
    %912 = vmatpush.msra.mxu0 %v356
    %913 = vmatpush.msra.mxu0 %v352
    %914 = vmatpush.msra.mxu0 %v348
    %915 = vmatpush.msra.mxu0 %v344
    %916 = vmatpush.msra.mxu0 %v340
    %917 = vmatpush.msra.mxu0 %v336
    %918 = vmatpush.msra.mxu0 %v332
    %919 = vmatpush.msra.mxu0 %v328
    %920 = vmatmul.f32.gmra.mxu0 %v854
    %v921 = vpop.f32.mrf.mxu0
    %v922 = vadd.f32 0.0, %v921
    %923 = vdwg.mxu0
    %924 = vmatpush.msra.mxu0 %v389
    %925 = vmatpush.msra.mxu0 %v385
    %926 = vmatpush.msra.mxu0 %v381
    %927 = vmatpush.msra.mxu0 %v377
    %928 = vmatpush.msra.mxu0 %v373
    %929 = vmatpush.msra.mxu0 %v369
    %930 = vmatpush.msra.mxu0 %v365
    %931 = vmatpush.msra.mxu0 %v361
    %932 = vmatpush.msra.mxu0 %v357
    %933 = vmatpush.msra.mxu0 %v353
    %934 = vmatpush.msra.mxu0 %v349
    %935 = vmatpush.msra.mxu0 %v345
    %936 = vmatpush.msra.mxu0 %v341
    %937 = vmatpush.msra.mxu0 %v337
    %938 = vmatpush.msra.mxu0 %v333
    %939 = vmatpush.msra.mxu0 %v329
    %940 = vmatmul.f32.gmra.mxu0 %v854
    %v941 = vpop.f32.mrf.mxu0
    %v942 = vadd.f32 0.0, %v941
    %943 = vdwg.mxu0
    %v944 = vadd.f32 %v860, %v882
    %v945 = vadd.f32 %v861, %v902
    %v946 = vadd.f32 %v862, %v922
    %v947 = vadd.f32 %v863, %v942
    %v948 = vxor.u32 %v944, 2147483648
    %v949 = vmul.f32 %v948, 1.442695
    %v950 = vpow.pop %v949
    %v951 = vadd.f32 %v950, 1.0
    %v952 = vrcp.pop %v951
    %v953 = vmul.f32 %v951, %v952
    %v954 = vsub.f32 1.0, %v953
    %v955 = vmul.f32 %v952, %v954
    %v956 = vadd.f32 %v952, %v955
    %vm957 = vweird.f32 %v951
    %vm958 = vweird.f32 %v952
    %vm959 = vmor %vm957, %vm958
    %v960 = vsel %vm959, %v952, %v956
    %v961 = vand.u32 2147483647, %v951
    %vm962 = vcmp.eq.f32.partialorder %v961, 8.507059e+37
    %v963 = vand.u32 %v951, 2147483648
    %v964 = vor.u32 1.1754944e-38, %v963
    %v965 = vsel %vm962, %v964, %v960
    %v966 = vmul.f32 1.0, %v965
    %v967 = vxor.u32 %v945, 2147483648
    %v968 = vmul.f32 %v967, 1.442695
    %v969 = vpow.pop %v968
    %v970 = vadd.f32 %v969, 1.0
    %v971 = vrcp.pop %v970
    %v972 = vmul.f32 %v970, %v971
    %v973 = vsub.f32 1.0, %v972
    %v974 = vmul.f32 %v971, %v973
    %v975 = vadd.f32 %v971, %v974
    %vm976 = vweird.f32 %v970
    %vm977 = vweird.f32 %v971
    %vm978 = vmor %vm976, %vm977
    %v979 = vsel %vm978, %v971, %v975
    %v980 = vand.u32 2147483647, %v970
    %vm981 = vcmp.eq.f32.partialorder %v980, 8.507059e+37
    %v982 = vand.u32 %v970, 2147483648
    %v983 = vor.u32 1.1754944e-38, %v982
    %v984 = vsel %vm981, %v983, %v979
    %v985 = vmul.f32 1.0, %v984
    %v986 = vtanh.pop %v946
    %v987 = vxor.u32 %v947, 2147483648
    %v988 = vmul.f32 %v987, 1.442695
    %v989 = vpow.pop %v988
    %v990 = vadd.f32 %v989, 1.0
    %v991 = vrcp.pop %v990
    %v992 = vmul.f32 %v990, %v991
    %v993 = vsub.f32 1.0, %v992
    %v994 = vmul.f32 %v991, %v993
    %v995 = vadd.f32 %v991, %v994
    %vm996 = vweird.f32 %v990
    %vm997 = vweird.f32 %v991
    %vm998 = vmor %vm996, %vm997
    %v999 = vsel %vm998, %v991, %v995
    %v1000 = vand.u32 2147483647, %v990
    %vm1001 = vcmp.eq.f32.partialorder %v1000, 8.507059e+37
    %v1002 = vand.u32 %v990, 2147483648
    %v1003 = vor.u32 1.1754944e-38, %v1002
    %v1004 = vsel %vm1001, %v1003, %v999
    %v1005 = vmul.f32 1.0, %v1004
    %v1006 = vmul.f32 %v985, %v852
    %v1007 = vmul.f32 %v966, %v986
    %v1008 = vadd.f32 %v1006, %v1007
    %v1009 = vtanh.pop %v1008
    %v1010 = vmul.f32 %v1005, %v1009
    %s1011 = scalar_lea.vmem [#allocation2], 24
    %1012 = vst [vmem:[%s1011] sm:$0xff] %v1010
    %s1013 = smul.u32 4, 4
    %s1014 = smul.addr %s1013, 8
    %s1015 = scalar_lea.vmem [#allocation3], %s1014
    %v1016 = vld [vmem:[%s1015] sm:$0xff]
    %v1017 = vld [vmem:[%s1015 + $0x8] sm:$0xff]
    %v1018 = vld [vmem:[%s1015 + $0x10] sm:$0xff]
    %v1019 = vld [vmem:[%s1015 + $0x18] sm:$0xff]
    %1020 = vmatpush.msra.mxu0 %v386
    %1021 = vmatpush.msra.mxu0 %v382
    %1022 = vmatpush.msra.mxu0 %v378
    %1023 = vmatpush.msra.mxu0 %v374
    %1024 = vmatpush.msra.mxu0 %v370
    %1025 = vmatpush.msra.mxu0 %v366
    %1026 = vmatpush.msra.mxu0 %v362
    %1027 = vmatpush.msra.mxu0 %v358
    %1028 = vmatpush.msra.mxu0 %v354
    %1029 = vmatpush.msra.mxu0 %v350
    %1030 = vmatpush.msra.mxu0 %v346
    %1031 = vmatpush.msra.mxu0 %v342
    %1032 = vmatpush.msra.mxu0 %v338
    %1033 = vmatpush.msra.mxu0 %v334
    %1034 = vmatpush.msra.mxu0 %v330
    %1035 = vmatpush.msra.mxu0 %v326
    %1036 = vmatmul.f32.gmra.mxu0 %v1010
    %v1037 = vpop.f32.mrf.mxu0
    %v1038 = vadd.f32 0.0, %v1037
    %1039 = vdwg.mxu0
    %1040 = vmatpush.msra.mxu0 %v387
    %1041 = vmatpush.msra.mxu0 %v383
    %1042 = vmatpush.msra.mxu0 %v379
    %1043 = vmatpush.msra.mxu0 %v375
    %1044 = vmatpush.msra.mxu0 %v371
    %1045 = vmatpush.msra.mxu0 %v367
    %1046 = vmatpush.msra.mxu0 %v363
    %1047 = vmatpush.msra.mxu0 %v359
    %1048 = vmatpush.msra.mxu0 %v355
    %1049 = vmatpush.msra.mxu0 %v351
    %1050 = vmatpush.msra.mxu0 %v347
    %1051 = vmatpush.msra.mxu0 %v343
    %1052 = vmatpush.msra.mxu0 %v339
    %1053 = vmatpush.msra.mxu0 %v335
    %1054 = vmatpush.msra.mxu0 %v331
    %1055 = vmatpush.msra.mxu0 %v327
    %1056 = vmatmul.f32.gmra.mxu0 %v1010
    %v1057 = vpop.f32.mrf.mxu0
    %v1058 = vadd.f32 0.0, %v1057
    %1059 = vdwg.mxu0
    %1060 = vmatpush.msra.mxu0 %v388
    %1061 = vmatpush.msra.mxu0 %v384
    %1062 = vmatpush.msra.mxu0 %v380
    %1063 = vmatpush.msra.mxu0 %v376
    %1064 = vmatpush.msra.mxu0 %v372
    %1065 = vmatpush.msra.mxu0 %v368
    %1066 = vmatpush.msra.mxu0 %v364
    %1067 = vmatpush.msra.mxu0 %v360
    %1068 = vmatpush.msra.mxu0 %v356
    %1069 = vmatpush.msra.mxu0 %v352
    %1070 = vmatpush.msra.mxu0 %v348
    %1071 = vmatpush.msra.mxu0 %v344
    %1072 = vmatpush.msra.mxu0 %v340
    %1073 = vmatpush.msra.mxu0 %v336
    %1074 = vmatpush.msra.mxu0 %v332
    %1075 = vmatpush.msra.mxu0 %v328
    %1076 = vmatmul.f32.gmra.mxu0 %v1010
    %v1077 = vpop.f32.mrf.mxu0
    %v1078 = vadd.f32 0.0, %v1077
    %1079 = vdwg.mxu0
    %1080 = vmatpush.msra.mxu0 %v389
    %1081 = vmatpush.msra.mxu0 %v385
    %1082 = vmatpush.msra.mxu0 %v381
    %1083 = vmatpush.msra.mxu0 %v377
    %1084 = vmatpush.msra.mxu0 %v373
    %1085 = vmatpush.msra.mxu0 %v369
    %1086 = vmatpush.msra.mxu0 %v365
    %1087 = vmatpush.msra.mxu0 %v361
    %1088 = vmatpush.msra.mxu0 %v357
    %1089 = vmatpush.msra.mxu0 %v353
    %1090 = vmatpush.msra.mxu0 %v349
    %1091 = vmatpush.msra.mxu0 %v345
    %1092 = vmatpush.msra.mxu0 %v341
    %1093 = vmatpush.msra.mxu0 %v337
    %1094 = vmatpush.msra.mxu0 %v333
    %1095 = vmatpush.msra.mxu0 %v329
    %1096 = vmatmul.f32.gmra.mxu0 %v1010
    %v1097 = vpop.f32.mrf.mxu0
    %v1098 = vadd.f32 0.0, %v1097
    %1099 = vdwg.mxu0
    %v1100 = vadd.f32 %v1016, %v1038
    %v1101 = vadd.f32 %v1017, %v1058
    %v1102 = vadd.f32 %v1018, %v1078
    %v1103 = vadd.f32 %v1019, %v1098
    %v1104 = vxor.u32 %v1100, 2147483648
    %v1105 = vmul.f32 %v1104, 1.442695
    %v1106 = vpow.pop %v1105
    %v1107 = vadd.f32 %v1106, 1.0
    %v1108 = vrcp.pop %v1107
    %v1109 = vmul.f32 %v1107, %v1108
    %v1110 = vsub.f32 1.0, %v1109
    %v1111 = vmul.f32 %v1108, %v1110
    %v1112 = vadd.f32 %v1108, %v1111
    %vm1113 = vweird.f32 %v1107
    %vm1114 = vweird.f32 %v1108
    %vm1115 = vmor %vm1113, %vm1114
    %v1116 = vsel %vm1115, %v1108, %v1112
    %v1117 = vand.u32 2147483647, %v1107
    %vm1118 = vcmp.eq.f32.partialorder %v1117, 8.507059e+37
    %v1119 = vand.u32 %v1107, 2147483648
    %v1120 = vor.u32 1.1754944e-38, %v1119
    %v1121 = vsel %vm1118, %v1120, %v1116
    %v1122 = vmul.f32 1.0, %v1121
    %v1123 = vxor.u32 %v1101, 2147483648
    %v1124 = vmul.f32 %v1123, 1.442695
    %v1125 = vpow.pop %v1124
    %v1126 = vadd.f32 %v1125, 1.0
    %v1127 = vrcp.pop %v1126
    %v1128 = vmul.f32 %v1126, %v1127
    %v1129 = vsub.f32 1.0, %v1128
    %v1130 = vmul.f32 %v1127, %v1129
    %v1131 = vadd.f32 %v1127, %v1130
    %vm1132 = vweird.f32 %v1126
    %vm1133 = vweird.f32 %v1127
    %vm1134 = vmor %vm1132, %vm1133
    %v1135 = vsel %vm1134, %v1127, %v1131
    %v1136 = vand.u32 2147483647, %v1126
    %vm1137 = vcmp.eq.f32.partialorder %v1136, 8.507059e+37
    %v1138 = vand.u32 %v1126, 2147483648
    %v1139 = vor.u32 1.1754944e-38, %v1138
    %v1140 = vsel %vm1137, %v1139, %v1135
    %v1141 = vmul.f32 1.0, %v1140
    %v1142 = vtanh.pop %v1102
    %v1143 = vxor.u32 %v1103, 2147483648
    %v1144 = vmul.f32 %v1143, 1.442695
    %v1145 = vpow.pop %v1144
    %v1146 = vadd.f32 %v1145, 1.0
    %v1147 = vrcp.pop %v1146
    %v1148 = vmul.f32 %v1146, %v1147
    %v1149 = vsub.f32 1.0, %v1148
    %v1150 = vmul.f32 %v1147, %v1149
    %v1151 = vadd.f32 %v1147, %v1150
    %vm1152 = vweird.f32 %v1146
    %vm1153 = vweird.f32 %v1147
    %vm1154 = vmor %vm1152, %vm1153
    %v1155 = vsel %vm1154, %v1147, %v1151
    %v1156 = vand.u32 2147483647, %v1146
    %vm1157 = vcmp.eq.f32.partialorder %v1156, 8.507059e+37
    %v1158 = vand.u32 %v1146, 2147483648
    %v1159 = vor.u32 1.1754944e-38, %v1158
    %v1160 = vsel %vm1157, %v1159, %v1155
    %v1161 = vmul.f32 1.0, %v1160
    %v1162 = vmul.f32 %v1141, %v1008
    %v1163 = vmul.f32 %v1122, %v1142
    %v1164 = vadd.f32 %v1162, %v1163
    %v1165 = vtanh.pop %v1164
    %v1166 = vmul.f32 %v1161, %v1165
    %s1167 = scalar_lea.vmem [#allocation2], 32
    %1168 = vst [vmem:[%s1167] sm:$0xff] %v1166
    %s1169 = smul.u32 5, 4
    %s1170 = smul.addr %s1169, 8
    %s1171 = scalar_lea.vmem [#allocation3], %s1170
    %v1172 = vld [vmem:[%s1171] sm:$0xff]
    %v1173 = vld [vmem:[%s1171 + $0x8] sm:$0xff]
    %v1174 = vld [vmem:[%s1171 + $0x10] sm:$0xff]
    %v1175 = vld [vmem:[%s1171 + $0x18] sm:$0xff]
    %1176 = vmatpush.msra.mxu0 %v386
    %1177 = vmatpush.msra.mxu0 %v382
    %1178 = vmatpush.msra.mxu0 %v378
    %1179 = vmatpush.msra.mxu0 %v374
    %1180 = vmatpush.msra.mxu0 %v370
    %1181 = vmatpush.msra.mxu0 %v366
    %1182 = vmatpush.msra.mxu0 %v362
    %1183 = vmatpush.msra.mxu0 %v358
    %1184 = vmatpush.msra.mxu0 %v354
    %1185 = vmatpush.msra.mxu0 %v350
    %1186 = vmatpush.msra.mxu0 %v346
    %1187 = vmatpush.msra.mxu0 %v342
    %1188 = vmatpush.msra.mxu0 %v338
    %1189 = vmatpush.msra.mxu0 %v334
    %1190 = vmatpush.msra.mxu0 %v330
    %1191 = vmatpush.msra.mxu0 %v326
    %1192 = vmatmul.f32.gmra.mxu0 %v1166
    %v1193 = vpop.f32.mrf.mxu0
    %v1194 = vadd.f32 0.0, %v1193
    %1195 = vdwg.mxu0
    %1196 = vmatpush.msra.mxu0 %v387
    %1197 = vmatpush.msra.mxu0 %v383
    %1198 = vmatpush.msra.mxu0 %v379
    %1199 = vmatpush.msra.mxu0 %v375
    %1200 = vmatpush.msra.mxu0 %v371
    %1201 = vmatpush.msra.mxu0 %v367
    %1202 = vmatpush.msra.mxu0 %v363
    %1203 = vmatpush.msra.mxu0 %v359
    %1204 = vmatpush.msra.mxu0 %v355
    %1205 = vmatpush.msra.mxu0 %v351
    %1206 = vmatpush.msra.mxu0 %v347
    %1207 = vmatpush.msra.mxu0 %v343
    %1208 = vmatpush.msra.mxu0 %v339
    %1209 = vmatpush.msra.mxu0 %v335
    %1210 = vmatpush.msra.mxu0 %v331
    %1211 = vmatpush.msra.mxu0 %v327
    %1212 = vmatmul.f32.gmra.mxu0 %v1166
    %v1213 = vpop.f32.mrf.mxu0
    %v1214 = vadd.f32 0.0, %v1213
    %1215 = vdwg.mxu0
    %1216 = vmatpush.msra.mxu0 %v388
    %1217 = vmatpush.msra.mxu0 %v384
    %1218 = vmatpush.msra.mxu0 %v380
    %1219 = vmatpush.msra.mxu0 %v376
    %1220 = vmatpush.msra.mxu0 %v372
    %1221 = vmatpush.msra.mxu0 %v368
    %1222 = vmatpush.msra.mxu0 %v364
    %1223 = vmatpush.msra.mxu0 %v360
    %1224 = vmatpush.msra.mxu0 %v356
    %1225 = vmatpush.msra.mxu0 %v352
    %1226 = vmatpush.msra.mxu0 %v348
    %1227 = vmatpush.msra.mxu0 %v344
    %1228 = vmatpush.msra.mxu0 %v340
    %1229 = vmatpush.msra.mxu0 %v336
    %1230 = vmatpush.msra.mxu0 %v332
    %1231 = vmatpush.msra.mxu0 %v328
    %1232 = vmatmul.f32.gmra.mxu0 %v1166
    %v1233 = vpop.f32.mrf.mxu0
    %v1234 = vadd.f32 0.0, %v1233
    %1235 = vdwg.mxu0
    %1236 = vmatpush.msra.mxu0 %v389
    %1237 = vmatpush.msra.mxu0 %v385
    %1238 = vmatpush.msra.mxu0 %v381
    %1239 = vmatpush.msra.mxu0 %v377
    %1240 = vmatpush.msra.mxu0 %v373
    %1241 = vmatpush.msra.mxu0 %v369
    %1242 = vmatpush.msra.mxu0 %v365
    %1243 = vmatpush.msra.mxu0 %v361
    %1244 = vmatpush.msra.mxu0 %v357
    %1245 = vmatpush.msra.mxu0 %v353
    %1246 = vmatpush.msra.mxu0 %v349
    %1247 = vmatpush.msra.mxu0 %v345
    %1248 = vmatpush.msra.mxu0 %v341
    %1249 = vmatpush.msra.mxu0 %v337
    %1250 = vmatpush.msra.mxu0 %v333
    %1251 = vmatpush.msra.mxu0 %v329
    %1252 = vmatmul.f32.gmra.mxu0 %v1166
    %v1253 = vpop.f32.mrf.mxu0
    %v1254 = vadd.f32 0.0, %v1253
    %1255 = vdwg.mxu0
    %v1256 = vadd.f32 %v1172, %v1194
    %v1257 = vadd.f32 %v1173, %v1214
    %v1258 = vadd.f32 %v1174, %v1234
    %v1259 = vadd.f32 %v1175, %v1254
    %v1260 = vxor.u32 %v1256, 2147483648
    %v1261 = vmul.f32 %v1260, 1.442695
    %v1262 = vpow.pop %v1261
    %v1263 = vadd.f32 %v1262, 1.0
    %v1264 = vrcp.pop %v1263
    %v1265 = vmul.f32 %v1263, %v1264
    %v1266 = vsub.f32 1.0, %v1265
    %v1267 = vmul.f32 %v1264, %v1266
    %v1268 = vadd.f32 %v1264, %v1267
    %vm1269 = vweird.f32 %v1263
    %vm1270 = vweird.f32 %v1264
    %vm1271 = vmor %vm1269, %vm1270
    %v1272 = vsel %vm1271, %v1264, %v1268
    %v1273 = vand.u32 2147483647, %v1263
    %vm1274 = vcmp.eq.f32.partialorder %v1273, 8.507059e+37
    %v1275 = vand.u32 %v1263, 2147483648
    %v1276 = vor.u32 1.1754944e-38, %v1275
    %v1277 = vsel %vm1274, %v1276, %v1272
    %v1278 = vmul.f32 1.0, %v1277
    %v1279 = vxor.u32 %v1257, 2147483648
    %v1280 = vmul.f32 %v1279, 1.442695
    %v1281 = vpow.pop %v1280
    %v1282 = vadd.f32 %v1281, 1.0
    %v1283 = vrcp.pop %v1282
    %v1284 = vmul.f32 %v1282, %v1283
    %v1285 = vsub.f32 1.0, %v1284
    %v1286 = vmul.f32 %v1283, %v1285
    %v1287 = vadd.f32 %v1283, %v1286
    %vm1288 = vweird.f32 %v1282
    %vm1289 = vweird.f32 %v1283
    %vm1290 = vmor %vm1288, %vm1289
    %v1291 = vsel %vm1290, %v1283, %v1287
    %v1292 = vand.u32 2147483647, %v1282
    %vm1293 = vcmp.eq.f32.partialorder %v1292, 8.507059e+37
    %v1294 = vand.u32 %v1282, 2147483648
    %v1295 = vor.u32 1.1754944e-38, %v1294
    %v1296 = vsel %vm1293, %v1295, %v1291
    %v1297 = vmul.f32 1.0, %v1296
    %v1298 = vtanh.pop %v1258
    %v1299 = vxor.u32 %v1259, 2147483648
    %v1300 = vmul.f32 %v1299, 1.442695
    %v1301 = vpow.pop %v1300
    %v1302 = vadd.f32 %v1301, 1.0
    %v1303 = vrcp.pop %v1302
    %v1304 = vmul.f32 %v1302, %v1303
    %v1305 = vsub.f32 1.0, %v1304
    %v1306 = vmul.f32 %v1303, %v1305
    %v1307 = vadd.f32 %v1303, %v1306
    %vm1308 = vweird.f32 %v1302
    %vm1309 = vweird.f32 %v1303
    %vm1310 = vmor %vm1308, %vm1309
    %v1311 = vsel %vm1310, %v1303, %v1307
    %v1312 = vand.u32 2147483647, %v1302
    %vm1313 = vcmp.eq.f32.partialorder %v1312, 8.507059e+37
    %v1314 = vand.u32 %v1302, 2147483648
    %v1315 = vor.u32 1.1754944e-38, %v1314
    %v1316 = vsel %vm1313, %v1315, %v1311
    %v1317 = vmul.f32 1.0, %v1316
    %v1318 = vmul.f32 %v1297, %v1164
    %v1319 = vmul.f32 %v1278, %v1298
    %v1320 = vadd.f32 %v1318, %v1319
    %v1321 = vtanh.pop %v1320
    %v1322 = vmul.f32 %v1317, %v1321
    %s1323 = scalar_lea.vmem [#allocation2], 40
    %1324 = vst [vmem:[%s1323] sm:$0xff] %v1322
    %s1325 = smul.u32 6, 4
    %s1326 = smul.addr %s1325, 8
    %s1327 = scalar_lea.vmem [#allocation3], %s1326
    %v1328 = vld [vmem:[%s1327] sm:$0xff]
    %v1329 = vld [vmem:[%s1327 + $0x8] sm:$0xff]
    %v1330 = vld [vmem:[%s1327 + $0x10] sm:$0xff]
    %v1331 = vld [vmem:[%s1327 + $0x18] sm:$0xff]
    %1332 = vmatpush.msra.mxu0 %v386
    %1333 = vmatpush.msra.mxu0 %v382
    %1334 = vmatpush.msra.mxu0 %v378
    %1335 = vmatpush.msra.mxu0 %v374
    %1336 = vmatpush.msra.mxu0 %v370
    %1337 = vmatpush.msra.mxu0 %v366
    %1338 = vmatpush.msra.mxu0 %v362
    %1339 = vmatpush.msra.mxu0 %v358
    %1340 = vmatpush.msra.mxu0 %v354
    %1341 = vmatpush.msra.mxu0 %v350
    %1342 = vmatpush.msra.mxu0 %v346
    %1343 = vmatpush.msra.mxu0 %v342
    %1344 = vmatpush.msra.mxu0 %v338
    %1345 = vmatpush.msra.mxu0 %v334
    %1346 = vmatpush.msra.mxu0 %v330
    %1347 = vmatpush.msra.mxu0 %v326
    %1348 = vmatmul.f32.gmra.mxu0 %v1322
    %v1349 = vpop.f32.mrf.mxu0
    %v1350 = vadd.f32 0.0, %v1349
    %1351 = vdwg.mxu0
    %1352 = vmatpush.msra.mxu0 %v387
    %1353 = vmatpush.msra.mxu0 %v383
    %1354 = vmatpush.msra.mxu0 %v379
    %1355 = vmatpush.msra.mxu0 %v375
    %1356 = vmatpush.msra.mxu0 %v371
    %1357 = vmatpush.msra.mxu0 %v367
    %1358 = vmatpush.msra.mxu0 %v363
    %1359 = vmatpush.msra.mxu0 %v359
    %1360 = vmatpush.msra.mxu0 %v355
    %1361 = vmatpush.msra.mxu0 %v351
    %1362 = vmatpush.msra.mxu0 %v347
    %1363 = vmatpush.msra.mxu0 %v343
    %1364 = vmatpush.msra.mxu0 %v339
    %1365 = vmatpush.msra.mxu0 %v335
    %1366 = vmatpush.msra.mxu0 %v331
    %1367 = vmatpush.msra.mxu0 %v327
    %1368 = vmatmul.f32.gmra.mxu0 %v1322
    %v1369 = vpop.f32.mrf.mxu0
    %v1370 = vadd.f32 0.0, %v1369
    %1371 = vdwg.mxu0
    %1372 = vmatpush.msra.mxu0 %v388
    %1373 = vmatpush.msra.mxu0 %v384
    %1374 = vmatpush.msra.mxu0 %v380
    %1375 = vmatpush.msra.mxu0 %v376
    %1376 = vmatpush.msra.mxu0 %v372
    %1377 = vmatpush.msra.mxu0 %v368
    %1378 = vmatpush.msra.mxu0 %v364
    %1379 = vmatpush.msra.mxu0 %v360
    %1380 = vmatpush.msra.mxu0 %v356
    %1381 = vmatpush.msra.mxu0 %v352
    %1382 = vmatpush.msra.mxu0 %v348
    %1383 = vmatpush.msra.mxu0 %v344
    %1384 = vmatpush.msra.mxu0 %v340
    %1385 = vmatpush.msra.mxu0 %v336
    %1386 = vmatpush.msra.mxu0 %v332
    %1387 = vmatpush.msra.mxu0 %v328
    %1388 = vmatmul.f32.gmra.mxu0 %v1322
    %v1389 = vpop.f32.mrf.mxu0
    %v1390 = vadd.f32 0.0, %v1389
    %1391 = vdwg.mxu0
    %1392 = vmatpush.msra.mxu0 %v389
    %1393 = vmatpush.msra.mxu0 %v385
    %1394 = vmatpush.msra.mxu0 %v381
    %1395 = vmatpush.msra.mxu0 %v377
    %1396 = vmatpush.msra.mxu0 %v373
    %1397 = vmatpush.msra.mxu0 %v369
    %1398 = vmatpush.msra.mxu0 %v365
    %1399 = vmatpush.msra.mxu0 %v361
    %1400 = vmatpush.msra.mxu0 %v357
    %1401 = vmatpush.msra.mxu0 %v353
    %1402 = vmatpush.msra.mxu0 %v349
    %1403 = vmatpush.msra.mxu0 %v345
    %1404 = vmatpush.msra.mxu0 %v341
    %1405 = vmatpush.msra.mxu0 %v337
    %1406 = vmatpush.msra.mxu0 %v333
    %1407 = vmatpush.msra.mxu0 %v329
    %1408 = vmatmul.f32.gmra.mxu0 %v1322
    %v1409 = vpop.f32.mrf.mxu0
    %v1410 = vadd.f32 0.0, %v1409
    %1411 = vdwg.mxu0
    %v1412 = vadd.f32 %v1328, %v1350
    %v1413 = vadd.f32 %v1329, %v1370
    %v1414 = vadd.f32 %v1330, %v1390
    %v1415 = vadd.f32 %v1331, %v1410
    %v1416 = vxor.u32 %v1412, 2147483648
    %v1417 = vmul.f32 %v1416, 1.442695
    %v1418 = vpow.pop %v1417
    %v1419 = vadd.f32 %v1418, 1.0
    %v1420 = vrcp.pop %v1419
    %v1421 = vmul.f32 %v1419, %v1420
    %v1422 = vsub.f32 1.0, %v1421
    %v1423 = vmul.f32 %v1420, %v1422
    %v1424 = vadd.f32 %v1420, %v1423
    %vm1425 = vweird.f32 %v1419
    %vm1426 = vweird.f32 %v1420
    %vm1427 = vmor %vm1425, %vm1426
    %v1428 = vsel %vm1427, %v1420, %v1424
    %v1429 = vand.u32 2147483647, %v1419
    %vm1430 = vcmp.eq.f32.partialorder %v1429, 8.507059e+37
    %v1431 = vand.u32 %v1419, 2147483648
    %v1432 = vor.u32 1.1754944e-38, %v1431
    %v1433 = vsel %vm1430, %v1432, %v1428
    %v1434 = vmul.f32 1.0, %v1433
    %v1435 = vxor.u32 %v1413, 2147483648
    %v1436 = vmul.f32 %v1435, 1.442695
    %v1437 = vpow.pop %v1436
    %v1438 = vadd.f32 %v1437, 1.0
    %v1439 = vrcp.pop %v1438
    %v1440 = vmul.f32 %v1438, %v1439
    %v1441 = vsub.f32 1.0, %v1440
    %v1442 = vmul.f32 %v1439, %v1441
    %v1443 = vadd.f32 %v1439, %v1442
    %vm1444 = vweird.f32 %v1438
    %vm1445 = vweird.f32 %v1439
    %vm1446 = vmor %vm1444, %vm1445
    %v1447 = vsel %vm1446, %v1439, %v1443
    %v1448 = vand.u32 2147483647, %v1438
    %vm1449 = vcmp.eq.f32.partialorder %v1448, 8.507059e+37
    %v1450 = vand.u32 %v1438, 2147483648
    %v1451 = vor.u32 1.1754944e-38, %v1450
    %v1452 = vsel %vm1449, %v1451, %v1447
    %v1453 = vmul.f32 1.0, %v1452
    %v1454 = vtanh.pop %v1414
    %v1455 = vxor.u32 %v1415, 2147483648
    %v1456 = vmul.f32 %v1455, 1.442695
    %v1457 = vpow.pop %v1456
    %v1458 = vadd.f32 %v1457, 1.0
    %v1459 = vrcp.pop %v1458
    %v1460 = vmul.f32 %v1458, %v1459
    %v1461 = vsub.f32 1.0, %v1460
    %v1462 = vmul.f32 %v1459, %v1461
    %v1463 = vadd.f32 %v1459, %v1462
    %vm1464 = vweird.f32 %v1458
    %vm1465 = vweird.f32 %v1459
    %vm1466 = vmor %vm1464, %vm1465
    %v1467 = vsel %vm1466, %v1459, %v1463
    %v1468 = vand.u32 2147483647, %v1458
    %vm1469 = vcmp.eq.f32.partialorder %v1468, 8.507059e+37
    %v1470 = vand.u32 %v1458, 2147483648
    %v1471 = vor.u32 1.1754944e-38, %v1470
    %v1472 = vsel %vm1469, %v1471, %v1467
    %v1473 = vmul.f32 1.0, %v1472
    %v1474 = vmul.f32 %v1453, %v1320
    %v1475 = vmul.f32 %v1434, %v1454
    %v1476 = vadd.f32 %v1474, %v1475
    %v1477 = vtanh.pop %v1476
    %v1478 = vmul.f32 %v1473, %v1477
    %s1479 = scalar_lea.vmem [#allocation2], 48
    %1480 = vst [vmem:[%s1479] sm:$0xff] %v1478
    %s1481 = smul.u32 7, 4
    %s1482 = smul.addr %s1481, 8
    %s1483 = scalar_lea.vmem [#allocation3], %s1482
    %v1484 = vld [vmem:[%s1483] sm:$0xff]
    %v1485 = vld [vmem:[%s1483 + $0x8] sm:$0xff]
    %v1486 = vld [vmem:[%s1483 + $0x10] sm:$0xff]
    %v1487 = vld [vmem:[%s1483 + $0x18] sm:$0xff]
    %1488 = vmatpush.msra.mxu0 %v386
    %1489 = vmatpush.msra.mxu0 %v382
    %1490 = vmatpush.msra.mxu0 %v378
    %1491 = vmatpush.msra.mxu0 %v374
    %1492 = vmatpush.msra.mxu0 %v370
    %1493 = vmatpush.msra.mxu0 %v366
    %1494 = vmatpush.msra.mxu0 %v362
    %1495 = vmatpush.msra.mxu0 %v358
    %1496 = vmatpush.msra.mxu0 %v354
    %1497 = vmatpush.msra.mxu0 %v350
    %1498 = vmatpush.msra.mxu0 %v346
    %1499 = vmatpush.msra.mxu0 %v342
    %1500 = vmatpush.msra.mxu0 %v338
    %1501 = vmatpush.msra.mxu0 %v334
    %1502 = vmatpush.msra.mxu0 %v330
    %1503 = vmatpush.msra.mxu0 %v326
    %1504 = vmatmul.f32.gmra.mxu0 %v1478
    %v1505 = vpop.f32.mrf.mxu0
    %v1506 = vadd.f32 0.0, %v1505
    %1507 = vdwg.mxu0
    %1508 = vmatpush.msra.mxu0 %v387
    %1509 = vmatpush.msra.mxu0 %v383
    %1510 = vmatpush.msra.mxu0 %v379
    %1511 = vmatpush.msra.mxu0 %v375
    %1512 = vmatpush.msra.mxu0 %v371
    %1513 = vmatpush.msra.mxu0 %v367
    %1514 = vmatpush.msra.mxu0 %v363
    %1515 = vmatpush.msra.mxu0 %v359
    %1516 = vmatpush.msra.mxu0 %v355
    %1517 = vmatpush.msra.mxu0 %v351
    %1518 = vmatpush.msra.mxu0 %v347
    %1519 = vmatpush.msra.mxu0 %v343
    %1520 = vmatpush.msra.mxu0 %v339
    %1521 = vmatpush.msra.mxu0 %v335
    %1522 = vmatpush.msra.mxu0 %v331
    %1523 = vmatpush.msra.mxu0 %v327
    %1524 = vmatmul.f32.gmra.mxu0 %v1478
    %v1525 = vpop.f32.mrf.mxu0
    %v1526 = vadd.f32 0.0, %v1525
    %1527 = vdwg.mxu0
    %1528 = vmatpush.msra.mxu0 %v388
    %1529 = vmatpush.msra.mxu0 %v384
    %1530 = vmatpush.msra.mxu0 %v380
    %1531 = vmatpush.msra.mxu0 %v376
    %1532 = vmatpush.msra.mxu0 %v372
    %1533 = vmatpush.msra.mxu0 %v368
    %1534 = vmatpush.msra.mxu0 %v364
    %1535 = vmatpush.msra.mxu0 %v360
    %1536 = vmatpush.msra.mxu0 %v356
    %1537 = vmatpush.msra.mxu0 %v352
    %1538 = vmatpush.msra.mxu0 %v348
    %1539 = vmatpush.msra.mxu0 %v344
    %1540 = vmatpush.msra.mxu0 %v340
    %1541 = vmatpush.msra.mxu0 %v336
    %1542 = vmatpush.msra.mxu0 %v332
    %1543 = vmatpush.msra.mxu0 %v328
    %1544 = vmatmul.f32.gmra.mxu0 %v1478
    %v1545 = vpop.f32.mrf.mxu0
    %v1546 = vadd.f32 0.0, %v1545
    %1547 = vdwg.mxu0
    %1548 = vmatpush.msra.mxu0 %v389
    %1549 = vmatpush.msra.mxu0 %v385
    %1550 = vmatpush.msra.mxu0 %v381
    %1551 = vmatpush.msra.mxu0 %v377
    %1552 = vmatpush.msra.mxu0 %v373
    %1553 = vmatpush.msra.mxu0 %v369
    %1554 = vmatpush.msra.mxu0 %v365
    %1555 = vmatpush.msra.mxu0 %v361
    %1556 = vmatpush.msra.mxu0 %v357
    %1557 = vmatpush.msra.mxu0 %v353
    %1558 = vmatpush.msra.mxu0 %v349
    %1559 = vmatpush.msra.mxu0 %v345
    %1560 = vmatpush.msra.mxu0 %v341
    %1561 = vmatpush.msra.mxu0 %v337
    %1562 = vmatpush.msra.mxu0 %v333
    %1563 = vmatpush.msra.mxu0 %v329
    %1564 = vmatmul.f32.gmra.mxu0 %v1478
    %v1565 = vpop.f32.mrf.mxu0
    %v1566 = vadd.f32 0.0, %v1565
    %1567 = vdwg.mxu0
    %v1568 = vadd.f32 %v1484, %v1506
    %v1569 = vadd.f32 %v1485, %v1526
    %v1570 = vadd.f32 %v1486, %v1546
    %v1571 = vadd.f32 %v1487, %v1566
    %v1572 = vxor.u32 %v1568, 2147483648
    %v1573 = vmul.f32 %v1572, 1.442695
    %v1574 = vpow.pop %v1573
    %v1575 = vadd.f32 %v1574, 1.0
    %v1576 = vrcp.pop %v1575
    %v1577 = vmul.f32 %v1575, %v1576
    %v1578 = vsub.f32 1.0, %v1577
    %v1579 = vmul.f32 %v1576, %v1578
    %v1580 = vadd.f32 %v1576, %v1579
    %vm1581 = vweird.f32 %v1575
    %vm1582 = vweird.f32 %v1576
    %vm1583 = vmor %vm1581, %vm1582
    %v1584 = vsel %vm1583, %v1576, %v1580
    %v1585 = vand.u32 2147483647, %v1575
    %vm1586 = vcmp.eq.f32.partialorder %v1585, 8.507059e+37
    %v1587 = vand.u32 %v1575, 2147483648
    %v1588 = vor.u32 1.1754944e-38, %v1587
    %v1589 = vsel %vm1586, %v1588, %v1584
    %v1590 = vmul.f32 1.0, %v1589
    %v1591 = vxor.u32 %v1569, 2147483648
    %v1592 = vmul.f32 %v1591, 1.442695
    %v1593 = vpow.pop %v1592
    %v1594 = vadd.f32 %v1593, 1.0
    %v1595 = vrcp.pop %v1594
    %v1596 = vmul.f32 %v1594, %v1595
    %v1597 = vsub.f32 1.0, %v1596
    %v1598 = vmul.f32 %v1595, %v1597
    %v1599 = vadd.f32 %v1595, %v1598
    %vm1600 = vweird.f32 %v1594
    %vm1601 = vweird.f32 %v1595
    %vm1602 = vmor %vm1600, %vm1601
    %v1603 = vsel %vm1602, %v1595, %v1599
    %v1604 = vand.u32 2147483647, %v1594
    %vm1605 = vcmp.eq.f32.partialorder %v1604, 8.507059e+37
    %v1606 = vand.u32 %v1594, 2147483648
    %v1607 = vor.u32 1.1754944e-38, %v1606
    %v1608 = vsel %vm1605, %v1607, %v1603
    %v1609 = vmul.f32 1.0, %v1608
    %v1610 = vtanh.pop %v1570
    %v1611 = vxor.u32 %v1571, 2147483648
    %v1612 = vmul.f32 %v1611, 1.442695
    %v1613 = vpow.pop %v1612
    %v1614 = vadd.f32 %v1613, 1.0
    %v1615 = vrcp.pop %v1614
    %v1616 = vmul.f32 %v1614, %v1615
    %v1617 = vsub.f32 1.0, %v1616
    %v1618 = vmul.f32 %v1615, %v1617
    %v1619 = vadd.f32 %v1615, %v1618
    %vm1620 = vweird.f32 %v1614
    %vm1621 = vweird.f32 %v1615
    %vm1622 = vmor %vm1620, %vm1621
    %v1623 = vsel %vm1622, %v1615, %v1619
    %v1624 = vand.u32 2147483647, %v1614
    %vm1625 = vcmp.eq.f32.partialorder %v1624, 8.507059e+37
    %v1626 = vand.u32 %v1614, 2147483648
    %v1627 = vor.u32 1.1754944e-38, %v1626
    %v1628 = vsel %vm1625, %v1627, %v1623
    %v1629 = vmul.f32 1.0, %v1628
    %v1630 = vmul.f32 %v1609, %v1476
    %v1631 = vmul.f32 %v1590, %v1610
    %v1632 = vadd.f32 %v1630, %v1631
    %v1633 = vtanh.pop %v1632
    %v1634 = vmul.f32 %v1629, %v1633
    %s1635 = scalar_lea.vmem [#allocation2], 56
    %1636 = vst [vmem:[%s1635] sm:$0xff] %v1634
    %v1637 = vld [vmem:[#allocation2] sm:$0xff]
    %v1638 = vld [vmem:[#allocation2 + $0x8] sm:$0xff]
    %v1639 = vld [vmem:[#allocation2 + $0x10] sm:$0xff]
    %v1640 = vld [vmem:[#allocation2 + $0x18] sm:$0xff]
    %v1641 = vld [vmem:[#allocation2 + $0x20] sm:$0xff]
    %v1642 = vld [vmem:[#allocation2 + $0x28] sm:$0xff]
    %v1643 = vld [vmem:[#allocation2 + $0x30] sm:$0xff]
    %v1644 = vld [vmem:[#allocation2 + $0x38] sm:$0xff]
    %v1645 = vld [vmem:[#allocation6] sm:$0xff]
    %v1646 = vld [vmem:[#allocation6 + $0x8] sm:$0xff]
    %v1647 = vld [vmem:[#allocation6 + $0x10] sm:$0xff]
    %v1648 = vld [vmem:[#allocation6 + $0x18] sm:$0xff]
    %v1649 = vld [vmem:[#allocation6 + $0x20] sm:$0xff]
    %v1650 = vld [vmem:[#allocation6 + $0x28] sm:$0xff]
    %v1651 = vld [vmem:[#allocation6 + $0x30] sm:$0xff]
    %v1652 = vld [vmem:[#allocation6 + $0x38] sm:$0xff]
    %v1653 = vld [vmem:[#allocation6 + $0x40] sm:$0xff]
    %v1654 = vld [vmem:[#allocation6 + $0x48] sm:$0xff]
    %v1655 = vld [vmem:[#allocation6 + $0x50] sm:$0xff]
    %v1656 = vld [vmem:[#allocation6 + $0x58] sm:$0xff]
    %v1657 = vld [vmem:[#allocation6 + $0x60] sm:$0xff]
    %v1658 = vld [vmem:[#allocation6 + $0x68] sm:$0xff]
    %v1659 = vld [vmem:[#allocation6 + $0x70] sm:$0xff]
    %v1660 = vld [vmem:[#allocation6 + $0x78] sm:$0xff]
    %v1661 = vld [vmem:[#allocation6 + $0x80] sm:$0xff]
    %v1662 = vld [vmem:[#allocation6 + $0x88] sm:$0xff]
    %v1663 = vld [vmem:[#allocation6 + $0x90] sm:$0xff]
    %v1664 = vld [vmem:[#allocation6 + $0x98] sm:$0xff]
    %v1665 = vld [vmem:[#allocation6 + $0xa0] sm:$0xff]
    %v1666 = vld [vmem:[#allocation6 + $0xa8] sm:$0xff]
    %v1667 = vld [vmem:[#allocation6 + $0xb0] sm:$0xff]
    %v1668 = vld [vmem:[#allocation6 + $0xb8] sm:$0xff]
    %v1669 = vld [vmem:[#allocation6 + $0xc0] sm:$0xff]
    %v1670 = vld [vmem:[#allocation6 + $0xc8] sm:$0xff]
    %v1671 = vld [vmem:[#allocation6 + $0xd0] sm:$0xff]
    %v1672 = vld [vmem:[#allocation6 + $0xd8] sm:$0xff]
    %v1673 = vld [vmem:[#allocation6 + $0xe0] sm:$0xff]
    %v1674 = vld [vmem:[#allocation6 + $0xe8] sm:$0xff]
    %v1675 = vld [vmem:[#allocation6 + $0xf0] sm:$0xff]
    %v1676 = vld [vmem:[#allocation6 + $0xf8] sm:$0xff]
    %v1677 = vld [vmem:[#allocation6 + $0x100] sm:$0xff]
    %v1678 = vld [vmem:[#allocation6 + $0x108] sm:$0xff]
    %v1679 = vld [vmem:[#allocation6 + $0x110] sm:$0xff]
    %v1680 = vld [vmem:[#allocation6 + $0x118] sm:$0xff]
    %v1681 = vld [vmem:[#allocation6 + $0x120] sm:$0xff]
    %v1682 = vld [vmem:[#allocation6 + $0x128] sm:$0xff]
    %v1683 = vld [vmem:[#allocation6 + $0x130] sm:$0xff]
    %v1684 = vld [vmem:[#allocation6 + $0x138] sm:$0xff]
    %v1685 = vld [vmem:[#allocation6 + $0x140] sm:$0xff]
    %v1686 = vld [vmem:[#allocation6 + $0x148] sm:$0xff]
    %v1687 = vld [vmem:[#allocation6 + $0x150] sm:$0xff]
    %v1688 = vld [vmem:[#allocation6 + $0x158] sm:$0xff]
    %v1689 = vld [vmem:[#allocation6 + $0x160] sm:$0xff]
    %v1690 = vld [vmem:[#allocation6 + $0x168] sm:$0xff]
    %v1691 = vld [vmem:[#allocation6 + $0x170] sm:$0xff]
    %v1692 = vld [vmem:[#allocation6 + $0x178] sm:$0xff]
    %v1693 = vld [vmem:[#allocation6 + $0x180] sm:$0xff]
    %v1694 = vld [vmem:[#allocation6 + $0x188] sm:$0xff]
    %v1695 = vld [vmem:[#allocation6 + $0x190] sm:$0xff]
    %v1696 = vld [vmem:[#allocation6 + $0x198] sm:$0xff]
    %v1697 = vld [vmem:[#allocation6 + $0x1a0] sm:$0xff]
    %v1698 = vld [vmem:[#allocation6 + $0x1a8] sm:$0xff]
    %v1699 = vld [vmem:[#allocation6 + $0x1b0] sm:$0xff]
    %v1700 = vld [vmem:[#allocation6 + $0x1b8] sm:$0xff]
    %v1701 = vld [vmem:[#allocation6 + $0x1c0] sm:$0xff]
    %v1702 = vld [vmem:[#allocation6 + $0x1c8] sm:$0xff]
    %v1703 = vld [vmem:[#allocation6 + $0x1d0] sm:$0xff]
    %v1704 = vld [vmem:[#allocation6 + $0x1d8] sm:$0xff]
    %v1705 = vld [vmem:[#allocation6 + $0x1e0] sm:$0xff]
    %v1706 = vld [vmem:[#allocation6 + $0x1e8] sm:$0xff]
    %v1707 = vld [vmem:[#allocation6 + $0x1f0] sm:$0xff]
    %v1708 = vld [vmem:[#allocation6 + $0x1f8] sm:$0xff]
    %v1709 = vld [vmem:[%s6] sm:$0xf]
    %v1711 = vperm.slane %v1709, 0
    %v1712 = vperm.slane %v1709, 1
    %v1713 = vperm.slane %v1709, 2
    %v1714 = vperm.slane %v1709, 3
    %1719 = vmatpush.msra.mxu0 %v1705
    %1720 = vmatpush.msra.mxu0 %v1701
    %1721 = vmatpush.msra.mxu0 %v1697
    %1722 = vmatpush.msra.mxu0 %v1693
    %1723 = vmatpush.msra.mxu0 %v1689
    %1724 = vmatpush.msra.mxu0 %v1685
    %1725 = vmatpush.msra.mxu0 %v1681
    %1726 = vmatpush.msra.mxu0 %v1677
    %1727 = vmatpush.msra.mxu0 %v1673
    %1728 = vmatpush.msra.mxu0 %v1669
    %1729 = vmatpush.msra.mxu0 %v1665
    %1730 = vmatpush.msra.mxu0 %v1661
    %1731 = vmatpush.msra.mxu0 %v1657
    %1732 = vmatpush.msra.mxu0 %v1653
    %1733 = vmatpush.msra.mxu0 %v1649
    %1734 = vmatpush.msra.mxu0 %v1645
    %1735 = vmatmul.f32.gmra.mxu0 %v1637
    %v1736 = vpop.f32.mrf.mxu0
    %v1737 = vadd.f32 %v1711, %v1736
    %1738 = vmatmul.f32.gmra.mxu0 %v1638
    %v1739 = vpop.f32.mrf.mxu0
    %v1740 = vadd.f32 %v1711, %v1739
    %1741 = vmatmul.f32.gmra.mxu0 %v1639
    %v1742 = vpop.f32.mrf.mxu0
    %v1743 = vadd.f32 %v1711, %v1742
    %1744 = vmatmul.f32.gmra.mxu0 %v1640
    %v1745 = vpop.f32.mrf.mxu0
    %v1746 = vadd.f32 %v1711, %v1745
    %1747 = vmatmul.f32.gmra.mxu0 %v1641
    %v1748 = vpop.f32.mrf.mxu0
    %v1749 = vadd.f32 %v1711, %v1748
    %1750 = vmatmul.f32.gmra.mxu0 %v1642
    %v1751 = vpop.f32.mrf.mxu0
    %v1752 = vadd.f32 %v1711, %v1751
    %1753 = vmatmul.f32.gmra.mxu0 %v1643
    %v1754 = vpop.f32.mrf.mxu0
    %v1755 = vadd.f32 %v1711, %v1754
    %1756 = vmatmul.f32.gmra.mxu0 %v1644
    %v1757 = vpop.f32.mrf.mxu0
    %v1758 = vadd.f32 %v1711, %v1757
    %1759 = vdwg.mxu0
    %1760 = vmatpush.msra.mxu0 %v1706
    %1761 = vmatpush.msra.mxu0 %v1702
    %1762 = vmatpush.msra.mxu0 %v1698
    %1763 = vmatpush.msra.mxu0 %v1694
    %1764 = vmatpush.msra.mxu0 %v1690
    %1765 = vmatpush.msra.mxu0 %v1686
    %1766 = vmatpush.msra.mxu0 %v1682
    %1767 = vmatpush.msra.mxu0 %v1678
    %1768 = vmatpush.msra.mxu0 %v1674
    %1769 = vmatpush.msra.mxu0 %v1670
    %1770 = vmatpush.msra.mxu0 %v1666
    %1771 = vmatpush.msra.mxu0 %v1662
    %1772 = vmatpush.msra.mxu0 %v1658
    %1773 = vmatpush.msra.mxu0 %v1654
    %1774 = vmatpush.msra.mxu0 %v1650
    %1775 = vmatpush.msra.mxu0 %v1646
    %1776 = vmatmul.f32.gmra.mxu0 %v1637
    %v1777 = vpop.f32.mrf.mxu0
    %v1778 = vadd.f32 %v1712, %v1777
    %1779 = vmatmul.f32.gmra.mxu0 %v1638
    %v1780 = vpop.f32.mrf.mxu0
    %v1781 = vadd.f32 %v1712, %v1780
    %1782 = vmatmul.f32.gmra.mxu0 %v1639
    %v1783 = vpop.f32.mrf.mxu0
    %v1784 = vadd.f32 %v1712, %v1783
    %1785 = vmatmul.f32.gmra.mxu0 %v1640
    %v1786 = vpop.f32.mrf.mxu0
    %v1787 = vadd.f32 %v1712, %v1786
    %1788 = vmatmul.f32.gmra.mxu0 %v1641
    %v1789 = vpop.f32.mrf.mxu0
    %v1790 = vadd.f32 %v1712, %v1789
    %1791 = vmatmul.f32.gmra.mxu0 %v1642
    %v1792 = vpop.f32.mrf.mxu0
    %v1793 = vadd.f32 %v1712, %v1792
    %1794 = vmatmul.f32.gmra.mxu0 %v1643
    %v1795 = vpop.f32.mrf.mxu0
    %v1796 = vadd.f32 %v1712, %v1795
    %1797 = vmatmul.f32.gmra.mxu0 %v1644
    %v1798 = vpop.f32.mrf.mxu0
    %v1799 = vadd.f32 %v1712, %v1798
    %1800 = vdwg.mxu0
    %1801 = vmatpush.msra.mxu0 %v1707
    %1802 = vmatpush.msra.mxu0 %v1703
    %1803 = vmatpush.msra.mxu0 %v1699
    %1804 = vmatpush.msra.mxu0 %v1695
    %1805 = vmatpush.msra.mxu0 %v1691
    %1806 = vmatpush.msra.mxu0 %v1687
    %1807 = vmatpush.msra.mxu0 %v1683
    %1808 = vmatpush.msra.mxu0 %v1679
    %1809 = vmatpush.msra.mxu0 %v1675
    %1810 = vmatpush.msra.mxu0 %v1671
    %1811 = vmatpush.msra.mxu0 %v1667
    %1812 = vmatpush.msra.mxu0 %v1663
    %1813 = vmatpush.msra.mxu0 %v1659
    %1814 = vmatpush.msra.mxu0 %v1655
    %1815 = vmatpush.msra.mxu0 %v1651
    %1816 = vmatpush.msra.mxu0 %v1647
    %1817 = vmatmul.f32.gmra.mxu0 %v1637
    %v1818 = vpop.f32.mrf.mxu0
    %v1819 = vadd.f32 %v1713, %v1818
    %1820 = vmatmul.f32.gmra.mxu0 %v1638
    %v1821 = vpop.f32.mrf.mxu0
    %v1822 = vadd.f32 %v1713, %v1821
    %1823 = vmatmul.f32.gmra.mxu0 %v1639
    %v1824 = vpop.f32.mrf.mxu0
    %v1825 = vadd.f32 %v1713, %v1824
    %1826 = vmatmul.f32.gmra.mxu0 %v1640
    %v1827 = vpop.f32.mrf.mxu0
    %v1828 = vadd.f32 %v1713, %v1827
    %1829 = vmatmul.f32.gmra.mxu0 %v1641
    %v1830 = vpop.f32.mrf.mxu0
    %v1831 = vadd.f32 %v1713, %v1830
    %1832 = vmatmul.f32.gmra.mxu0 %v1642
    %v1833 = vpop.f32.mrf.mxu0
    %v1834 = vadd.f32 %v1713, %v1833
    %1835 = vmatmul.f32.gmra.mxu0 %v1643
    %v1836 = vpop.f32.mrf.mxu0
    %v1837 = vadd.f32 %v1713, %v1836
    %1838 = vmatmul.f32.gmra.mxu0 %v1644
    %v1839 = vpop.f32.mrf.mxu0
    %v1840 = vadd.f32 %v1713, %v1839
    %1841 = vdwg.mxu0
    %1842 = vmatpush.msra.mxu0 %v1708
    %1843 = vmatpush.msra.mxu0 %v1704
    %1844 = vmatpush.msra.mxu0 %v1700
    %1845 = vmatpush.msra.mxu0 %v1696
    %1846 = vmatpush.msra.mxu0 %v1692
    %1847 = vmatpush.msra.mxu0 %v1688
    %1848 = vmatpush.msra.mxu0 %v1684
    %1849 = vmatpush.msra.mxu0 %v1680
    %1850 = vmatpush.msra.mxu0 %v1676
    %1851 = vmatpush.msra.mxu0 %v1672
    %1852 = vmatpush.msra.mxu0 %v1668
    %1853 = vmatpush.msra.mxu0 %v1664
    %1854 = vmatpush.msra.mxu0 %v1660
    %1855 = vmatpush.msra.mxu0 %v1656
    %1856 = vmatpush.msra.mxu0 %v1652
    %1857 = vmatpush.msra.mxu0 %v1648
    %1858 = vmatmul.f32.gmra.mxu0 %v1637
    %v1859 = vpop.f32.mrf.mxu0
    %v1860 = vadd.f32 %v1714, %v1859
    %1861 = vmatmul.f32.gmra.mxu0 %v1638
    %v1862 = vpop.f32.mrf.mxu0
    %v1863 = vadd.f32 %v1714, %v1862
    %1864 = vmatmul.f32.gmra.mxu0 %v1639
    %v1865 = vpop.f32.mrf.mxu0
    %v1866 = vadd.f32 %v1714, %v1865
    %1867 = vmatmul.f32.gmra.mxu0 %v1640
    %v1868 = vpop.f32.mrf.mxu0
    %v1869 = vadd.f32 %v1714, %v1868
    %1870 = vmatmul.f32.gmra.mxu0 %v1641
    %v1871 = vpop.f32.mrf.mxu0
    %v1872 = vadd.f32 %v1714, %v1871
    %1873 = vmatmul.f32.gmra.mxu0 %v1642
    %v1874 = vpop.f32.mrf.mxu0
    %v1875 = vadd.f32 %v1714, %v1874
    %1876 = vmatmul.f32.gmra.mxu0 %v1643
    %v1877 = vpop.f32.mrf.mxu0
    %v1878 = vadd.f32 %v1714, %v1877
    %1879 = vmatmul.f32.gmra.mxu0 %v1644
    %v1880 = vpop.f32.mrf.mxu0
    %v1881 = vadd.f32 %v1714, %v1880
    %1882 = vdwg.mxu0
    %1883 = vst [vmem:[#allocation3] sm:$0xff] %v1737
    %1884 = vst [vmem:[#allocation3 + $0x8] sm:$0xff] %v1778
    %1885 = vst [vmem:[#allocation3 + $0x10] sm:$0xff] %v1819
    %1886 = vst [vmem:[#allocation3 + $0x18] sm:$0xff] %v1860
    %1887 = vst [vmem:[#allocation3 + $0x20] sm:$0xff] %v1740
    %1888 = vst [vmem:[#allocation3 + $0x28] sm:$0xff] %v1781
    %1889 = vst [vmem:[#allocation3 + $0x30] sm:$0xff] %v1822
    %1890 = vst [vmem:[#allocation3 + $0x38] sm:$0xff] %v1863
    %1891 = vst [vmem:[#allocation3 + $0x40] sm:$0xff] %v1743
    %1892 = vst [vmem:[#allocation3 + $0x48] sm:$0xff] %v1784
    %1893 = vst [vmem:[#allocation3 + $0x50] sm:$0xff] %v1825
    %1894 = vst [vmem:[#allocation3 + $0x58] sm:$0xff] %v1866
    %1895 = vst [vmem:[#allocation3 + $0x60] sm:$0xff] %v1746
    %1896 = vst [vmem:[#allocation3 + $0x68] sm:$0xff] %v1787
    %1897 = vst [vmem:[#allocation3 + $0x70] sm:$0xff] %v1828
    %1898 = vst [vmem:[#allocation3 + $0x78] sm:$0xff] %v1869
    %1899 = vst [vmem:[#allocation3 + $0x80] sm:$0xff] %v1749
    %1900 = vst [vmem:[#allocation3 + $0x88] sm:$0xff] %v1790
    %1901 = vst [vmem:[#allocation3 + $0x90] sm:$0xff] %v1831
    %1902 = vst [vmem:[#allocation3 + $0x98] sm:$0xff] %v1872
    %1903 = vst [vmem:[#allocation3 + $0xa0] sm:$0xff] %v1752
    %1904 = vst [vmem:[#allocation3 + $0xa8] sm:$0xff] %v1793
    %1905 = vst [vmem:[#allocation3 + $0xb0] sm:$0xff] %v1834
    %1906 = vst [vmem:[#allocation3 + $0xb8] sm:$0xff] %v1875
    %1907 = vst [vmem:[#allocation3 + $0xc0] sm:$0xff] %v1755
    %1908 = vst [vmem:[#allocation3 + $0xc8] sm:$0xff] %v1796
    %1909 = vst [vmem:[#allocation3 + $0xd0] sm:$0xff] %v1837
    %1910 = vst [vmem:[#allocation3 + $0xd8] sm:$0xff] %v1878
    %1911 = vst [vmem:[#allocation3 + $0xe0] sm:$0xff] %v1758
    %1912 = vst [vmem:[#allocation3 + $0xe8] sm:$0xff] %v1799
    %1913 = vst [vmem:[#allocation3 + $0xf0] sm:$0xff] %v1840
    %1914 = vst [vmem:[#allocation3 + $0xf8] sm:$0xff] %v1881
    %v1915 = vld [vmem:[#allocation8] sm:$0xff]
    %v1916 = vld [vmem:[#allocation8 + $0x8] sm:$0xff]
    %v1917 = vld [vmem:[#allocation8 + $0x10] sm:$0xff]
    %v1918 = vld [vmem:[#allocation8 + $0x18] sm:$0xff]
    %v1919 = vld [vmem:[#allocation8 + $0x20] sm:$0xff]
    %v1920 = vld [vmem:[#allocation8 + $0x28] sm:$0xff]
    %v1921 = vld [vmem:[#allocation8 + $0x30] sm:$0xff]
    %v1922 = vld [vmem:[#allocation8 + $0x38] sm:$0xff]
    %v1923 = vld [vmem:[#allocation8 + $0x40] sm:$0xff]
    %v1924 = vld [vmem:[#allocation8 + $0x48] sm:$0xff]
    %v1925 = vld [vmem:[#allocation8 + $0x50] sm:$0xff]
    %v1926 = vld [vmem:[#allocation8 + $0x58] sm:$0xff]
    %v1927 = vld [vmem:[#allocation8 + $0x60] sm:$0xff]
    %v1928 = vld [vmem:[#allocation8 + $0x68] sm:$0xff]
    %v1929 = vld [vmem:[#allocation8 + $0x70] sm:$0xff]
    %v1930 = vld [vmem:[#allocation8 + $0x78] sm:$0xff]
    %v1931 = vld [vmem:[#allocation8 + $0x80] sm:$0xff]
    %v1932 = vld [vmem:[#allocation8 + $0x88] sm:$0xff]
    %v1933 = vld [vmem:[#allocation8 + $0x90] sm:$0xff]
    %v1934 = vld [vmem:[#allocation8 + $0x98] sm:$0xff]
    %v1935 = vld [vmem:[#allocation8 + $0xa0] sm:$0xff]
    %v1936 = vld [vmem:[#allocation8 + $0xa8] sm:$0xff]
    %v1937 = vld [vmem:[#allocation8 + $0xb0] sm:$0xff]
    %v1938 = vld [vmem:[#allocation8 + $0xb8] sm:$0xff]
    %v1939 = vld [vmem:[#allocation8 + $0xc0] sm:$0xff]
    %v1940 = vld [vmem:[#allocation8 + $0xc8] sm:$0xff]
    %v1941 = vld [vmem:[#allocation8 + $0xd0] sm:$0xff]
    %v1942 = vld [vmem:[#allocation8 + $0xd8] sm:$0xff]
    %v1943 = vld [vmem:[#allocation8 + $0xe0] sm:$0xff]
    %v1944 = vld [vmem:[#allocation8 + $0xe8] sm:$0xff]
    %v1945 = vld [vmem:[#allocation8 + $0xf0] sm:$0xff]
    %v1946 = vld [vmem:[#allocation8 + $0xf8] sm:$0xff]
    %v1947 = vld [vmem:[#allocation8 + $0x100] sm:$0xff]
    %v1948 = vld [vmem:[#allocation8 + $0x108] sm:$0xff]
    %v1949 = vld [vmem:[#allocation8 + $0x110] sm:$0xff]
    %v1950 = vld [vmem:[#allocation8 + $0x118] sm:$0xff]
    %v1951 = vld [vmem:[#allocation8 + $0x120] sm:$0xff]
    %v1952 = vld [vmem:[#allocation8 + $0x128] sm:$0xff]
    %v1953 = vld [vmem:[#allocation8 + $0x130] sm:$0xff]
    %v1954 = vld [vmem:[#allocation8 + $0x138] sm:$0xff]
    %v1955 = vld [vmem:[#allocation8 + $0x140] sm:$0xff]
    %v1956 = vld [vmem:[#allocation8 + $0x148] sm:$0xff]
    %v1957 = vld [vmem:[#allocation8 + $0x150] sm:$0xff]
    %v1958 = vld [vmem:[#allocation8 + $0x158] sm:$0xff]
    %v1959 = vld [vmem:[#allocation8 + $0x160] sm:$0xff]
    %v1960 = vld [vmem:[#allocation8 + $0x168] sm:$0xff]
    %v1961 = vld [vmem:[#allocation8 + $0x170] sm:$0xff]
    %v1962 = vld [vmem:[#allocation8 + $0x178] sm:$0xff]
    %v1963 = vld [vmem:[#allocation8 + $0x180] sm:$0xff]
    %v1964 = vld [vmem:[#allocation8 + $0x188] sm:$0xff]
    %v1965 = vld [vmem:[#allocation8 + $0x190] sm:$0xff]
    %v1966 = vld [vmem:[#allocation8 + $0x198] sm:$0xff]
    %v1967 = vld [vmem:[#allocation8 + $0x1a0] sm:$0xff]
    %v1968 = vld [vmem:[#allocation8 + $0x1a8] sm:$0xff]
    %v1969 = vld [vmem:[#allocation8 + $0x1b0] sm:$0xff]
    %v1970 = vld [vmem:[#allocation8 + $0x1b8] sm:$0xff]
    %v1971 = vld [vmem:[#allocation8 + $0x1c0] sm:$0xff]
    %v1972 = vld [vmem:[#allocation8 + $0x1c8] sm:$0xff]
    %v1973 = vld [vmem:[#allocation8 + $0x1d0] sm:$0xff]
    %v1974 = vld [vmem:[#allocation8 + $0x1d8] sm:$0xff]
    %v1975 = vld [vmem:[#allocation8 + $0x1e0] sm:$0xff]
    %v1976 = vld [vmem:[#allocation8 + $0x1e8] sm:$0xff]
    %v1977 = vld [vmem:[#allocation8 + $0x1f0] sm:$0xff]
    %v1978 = vld [vmem:[#allocation8 + $0x1f8] sm:$0xff]
    %v1979 = vld [vmem:[%s392] sm:$0xff]
    %v1980 = vld [vmem:[%s392 + $0x8] sm:$0xff]
    %v1981 = vld [vmem:[%s392 + $0x10] sm:$0xff]
    %v1982 = vld [vmem:[%s392 + $0x18] sm:$0xff]
    %1983 = vmatpush.msra.mxu0 %v1975
    %1984 = vmatpush.msra.mxu0 %v1971
    %1985 = vmatpush.msra.mxu0 %v1967
    %1986 = vmatpush.msra.mxu0 %v1963
    %1987 = vmatpush.msra.mxu0 %v1959
    %1988 = vmatpush.msra.mxu0 %v1955
    %1989 = vmatpush.msra.mxu0 %v1951
    %1990 = vmatpush.msra.mxu0 %v1947
    %1991 = vmatpush.msra.mxu0 %v1943
    %1992 = vmatpush.msra.mxu0 %v1939
    %1993 = vmatpush.msra.mxu0 %v1935
    %1994 = vmatpush.msra.mxu0 %v1931
    %1995 = vmatpush.msra.mxu0 %v1927
    %1996 = vmatpush.msra.mxu0 %v1923
    %1997 = vmatpush.msra.mxu0 %v1919
    %1998 = vmatpush.msra.mxu0 %v1915
    %1999 = vmatmul.f32.gmra.mxu0 0.0
    %v2000 = vpop.f32.mrf.mxu0
    %v2001 = vadd.f32 0.0, %v2000
    %2002 = vdwg.mxu0
    %2003 = vmatpush.msra.mxu0 %v1976
    %2004 = vmatpush.msra.mxu0 %v1972
    %2005 = vmatpush.msra.mxu0 %v1968
    %2006 = vmatpush.msra.mxu0 %v1964
    %2007 = vmatpush.msra.mxu0 %v1960
    %2008 = vmatpush.msra.mxu0 %v1956
    %2009 = vmatpush.msra.mxu0 %v1952
    %2010 = vmatpush.msra.mxu0 %v1948
    %2011 = vmatpush.msra.mxu0 %v1944
    %2012 = vmatpush.msra.mxu0 %v1940
    %2013 = vmatpush.msra.mxu0 %v1936
    %2014 = vmatpush.msra.mxu0 %v1932
    %2015 = vmatpush.msra.mxu0 %v1928
    %2016 = vmatpush.msra.mxu0 %v1924
    %2017 = vmatpush.msra.mxu0 %v1920
    %2018 = vmatpush.msra.mxu0 %v1916
    %2019 = vmatmul.f32.gmra.mxu0 0.0
    %v2020 = vpop.f32.mrf.mxu0
    %v2021 = vadd.f32 0.0, %v2020
    %2022 = vdwg.mxu0
    %2023 = vmatpush.msra.mxu0 %v1977
    %2024 = vmatpush.msra.mxu0 %v1973
    %2025 = vmatpush.msra.mxu0 %v1969
    %2026 = vmatpush.msra.mxu0 %v1965
    %2027 = vmatpush.msra.mxu0 %v1961
    %2028 = vmatpush.msra.mxu0 %v1957
    %2029 = vmatpush.msra.mxu0 %v1953
    %2030 = vmatpush.msra.mxu0 %v1949
    %2031 = vmatpush.msra.mxu0 %v1945
    %2032 = vmatpush.msra.mxu0 %v1941
    %2033 = vmatpush.msra.mxu0 %v1937
    %2034 = vmatpush.msra.mxu0 %v1933
    %2035 = vmatpush.msra.mxu0 %v1929
    %2036 = vmatpush.msra.mxu0 %v1925
    %2037 = vmatpush.msra.mxu0 %v1921
    %2038 = vmatpush.msra.mxu0 %v1917
    %2039 = vmatmul.f32.gmra.mxu0 0.0
    %v2040 = vpop.f32.mrf.mxu0
    %v2041 = vadd.f32 0.0, %v2040
    %2042 = vdwg.mxu0
    %2043 = vmatpush.msra.mxu0 %v1978
    %2044 = vmatpush.msra.mxu0 %v1974
    %2045 = vmatpush.msra.mxu0 %v1970
    %2046 = vmatpush.msra.mxu0 %v1966
    %2047 = vmatpush.msra.mxu0 %v1962
    %2048 = vmatpush.msra.mxu0 %v1958
    %2049 = vmatpush.msra.mxu0 %v1954
    %2050 = vmatpush.msra.mxu0 %v1950
    %2051 = vmatpush.msra.mxu0 %v1946
    %2052 = vmatpush.msra.mxu0 %v1942
    %2053 = vmatpush.msra.mxu0 %v1938
    %2054 = vmatpush.msra.mxu0 %v1934
    %2055 = vmatpush.msra.mxu0 %v1930
    %2056 = vmatpush.msra.mxu0 %v1926
    %2057 = vmatpush.msra.mxu0 %v1922
    %2058 = vmatpush.msra.mxu0 %v1918
    %2059 = vmatmul.f32.gmra.mxu0 0.0
    %v2060 = vpop.f32.mrf.mxu0
    %v2061 = vadd.f32 0.0, %v2060
    %2062 = vdwg.mxu0
    %v2063 = vadd.f32 %v1979, %v2001
    %v2064 = vadd.f32 %v1980, %v2021
    %v2065 = vadd.f32 %v1981, %v2041
    %v2066 = vadd.f32 %v1982, %v2061
    %v2067 = vxor.u32 %v2063, 2147483648
    %v2068 = vmul.f32 %v2067, 1.442695
    %v2069 = vpow.pop %v2068
    %v2070 = vadd.f32 %v2069, 1.0
    %v2071 = vrcp.pop %v2070
    %v2072 = vmul.f32 %v2070, %v2071
    %v2073 = vsub.f32 1.0, %v2072
    %v2074 = vmul.f32 %v2071, %v2073
    %v2075 = vadd.f32 %v2071, %v2074
    %vm2076 = vweird.f32 %v2070
    %vm2077 = vweird.f32 %v2071
    %vm2078 = vmor %vm2076, %vm2077
    %v2079 = vsel %vm2078, %v2071, %v2075
    %v2080 = vand.u32 2147483647, %v2070
    %vm2081 = vcmp.eq.f32.partialorder %v2080, 8.507059e+37
    %v2082 = vand.u32 %v2070, 2147483648
    %v2083 = vor.u32 1.1754944e-38, %v2082
    %v2084 = vsel %vm2081, %v2083, %v2079
    %v2085 = vmul.f32 1.0, %v2084
    %v2086 = vxor.u32 %v2064, 2147483648
    %v2087 = vmul.f32 %v2086, 1.442695
    %v2088 = vpow.pop %v2087
    %v2089 = vadd.f32 %v2088, 1.0
    %v2090 = vrcp.pop %v2089
    %v2091 = vmul.f32 %v2089, %v2090
    %v2092 = vsub.f32 1.0, %v2091
    %v2093 = vmul.f32 %v2090, %v2092
    %v2094 = vadd.f32 %v2090, %v2093
    %vm2095 = vweird.f32 %v2089
    %vm2096 = vweird.f32 %v2090
    %vm2097 = vmor %vm2095, %vm2096
    %v2098 = vsel %vm2097, %v2090, %v2094
    %v2099 = vand.u32 2147483647, %v2089
    %vm2100 = vcmp.eq.f32.partialorder %v2099, 8.507059e+37
    %v2101 = vand.u32 %v2089, 2147483648
    %v2102 = vor.u32 1.1754944e-38, %v2101
    %v2103 = vsel %vm2100, %v2102, %v2098
    %v2104 = vmul.f32 1.0, %v2103
    %v2105 = vtanh.pop %v2065
    %v2106 = vxor.u32 %v2066, 2147483648
    %v2107 = vmul.f32 %v2106, 1.442695
    %v2108 = vpow.pop %v2107
    %v2109 = vadd.f32 %v2108, 1.0
    %v2110 = vrcp.pop %v2109
    %v2111 = vmul.f32 %v2109, %v2110
    %v2112 = vsub.f32 1.0, %v2111
    %v2113 = vmul.f32 %v2110, %v2112
    %v2114 = vadd.f32 %v2110, %v2113
    %vm2115 = vweird.f32 %v2109
    %vm2116 = vweird.f32 %v2110
    %vm2117 = vmor %vm2115, %vm2116
    %v2118 = vsel %vm2117, %v2110, %v2114
    %v2119 = vand.u32 2147483647, %v2109
    %vm2120 = vcmp.eq.f32.partialorder %v2119, 8.507059e+37
    %v2121 = vand.u32 %v2109, 2147483648
    %v2122 = vor.u32 1.1754944e-38, %v2121
    %v2123 = vsel %vm2120, %v2122, %v2118
    %v2124 = vmul.f32 1.0, %v2123
    %v2125 = vmul.f32 %v2104, 0.0
    %v2126 = vmul.f32 %v2085, %v2105
    %v2127 = vadd.f32 %v2125, %v2126
    %v2128 = vtanh.pop %v2127
    %v2129 = vmul.f32 %v2124, %v2128
    %v2130 = vld [vmem:[%s547] sm:$0xff]
    %v2131 = vld [vmem:[%s547 + $0x8] sm:$0xff]
    %v2132 = vld [vmem:[%s547 + $0x10] sm:$0xff]
    %v2133 = vld [vmem:[%s547 + $0x18] sm:$0xff]
    %2134 = vmatpush.msra.mxu0 %v1975
    %2135 = vmatpush.msra.mxu0 %v1971
    %2136 = vmatpush.msra.mxu0 %v1967
    %2137 = vmatpush.msra.mxu0 %v1963
    %2138 = vmatpush.msra.mxu0 %v1959
    %2139 = vmatpush.msra.mxu0 %v1955
    %2140 = vmatpush.msra.mxu0 %v1951
    %2141 = vmatpush.msra.mxu0 %v1947
    %2142 = vmatpush.msra.mxu0 %v1943
    %2143 = vmatpush.msra.mxu0 %v1939
    %2144 = vmatpush.msra.mxu0 %v1935
    %2145 = vmatpush.msra.mxu0 %v1931
    %2146 = vmatpush.msra.mxu0 %v1927
    %2147 = vmatpush.msra.mxu0 %v1923
    %2148 = vmatpush.msra.mxu0 %v1919
    %2149 = vmatpush.msra.mxu0 %v1915
    %2150 = vmatmul.f32.gmra.mxu0 %v2129
    %v2151 = vpop.f32.mrf.mxu0
    %v2152 = vadd.f32 0.0, %v2151
    %2153 = vdwg.mxu0
    %2154 = vmatpush.msra.mxu0 %v1976
    %2155 = vmatpush.msra.mxu0 %v1972
    %2156 = vmatpush.msra.mxu0 %v1968
    %2157 = vmatpush.msra.mxu0 %v1964
    %2158 = vmatpush.msra.mxu0 %v1960
    %2159 = vmatpush.msra.mxu0 %v1956
    %2160 = vmatpush.msra.mxu0 %v1952
    %2161 = vmatpush.msra.mxu0 %v1948
    %2162 = vmatpush.msra.mxu0 %v1944
    %2163 = vmatpush.msra.mxu0 %v1940
    %2164 = vmatpush.msra.mxu0 %v1936
    %2165 = vmatpush.msra.mxu0 %v1932
    %2166 = vmatpush.msra.mxu0 %v1928
    %2167 = vmatpush.msra.mxu0 %v1924
    %2168 = vmatpush.msra.mxu0 %v1920
    %2169 = vmatpush.msra.mxu0 %v1916
    %2170 = vmatmul.f32.gmra.mxu0 %v2129
    %v2171 = vpop.f32.mrf.mxu0
    %v2172 = vadd.f32 0.0, %v2171
    %2173 = vdwg.mxu0
    %2174 = vmatpush.msra.mxu0 %v1977
    %2175 = vmatpush.msra.mxu0 %v1973
    %2176 = vmatpush.msra.mxu0 %v1969
    %2177 = vmatpush.msra.mxu0 %v1965
    %2178 = vmatpush.msra.mxu0 %v1961
    %2179 = vmatpush.msra.mxu0 %v1957
    %2180 = vmatpush.msra.mxu0 %v1953
    %2181 = vmatpush.msra.mxu0 %v1949
    %2182 = vmatpush.msra.mxu0 %v1945
    %2183 = vmatpush.msra.mxu0 %v1941
    %2184 = vmatpush.msra.mxu0 %v1937
    %2185 = vmatpush.msra.mxu0 %v1933
    %2186 = vmatpush.msra.mxu0 %v1929
    %2187 = vmatpush.msra.mxu0 %v1925
    %2188 = vmatpush.msra.mxu0 %v1921
    %2189 = vmatpush.msra.mxu0 %v1917
    %2190 = vmatmul.f32.gmra.mxu0 %v2129
    %v2191 = vpop.f32.mrf.mxu0
    %v2192 = vadd.f32 0.0, %v2191
    %2193 = vdwg.mxu0
    %2194 = vmatpush.msra.mxu0 %v1978
    %2195 = vmatpush.msra.mxu0 %v1974
    %2196 = vmatpush.msra.mxu0 %v1970
    %2197 = vmatpush.msra.mxu0 %v1966
    %2198 = vmatpush.msra.mxu0 %v1962
    %2199 = vmatpush.msra.mxu0 %v1958
    %2200 = vmatpush.msra.mxu0 %v1954
    %2201 = vmatpush.msra.mxu0 %v1950
    %2202 = vmatpush.msra.mxu0 %v1946
    %2203 = vmatpush.msra.mxu0 %v1942
    %2204 = vmatpush.msra.mxu0 %v1938
    %2205 = vmatpush.msra.mxu0 %v1934
    %2206 = vmatpush.msra.mxu0 %v1930
    %2207 = vmatpush.msra.mxu0 %v1926
    %2208 = vmatpush.msra.mxu0 %v1922
    %2209 = vmatpush.msra.mxu0 %v1918
    %2210 = vmatmul.f32.gmra.mxu0 %v2129
    %v2211 = vpop.f32.mrf.mxu0
    %v2212 = vadd.f32 0.0, %v2211
    %2213 = vdwg.mxu0
    %v2214 = vadd.f32 %v2130, %v2152
    %v2215 = vadd.f32 %v2131, %v2172
    %v2216 = vadd.f32 %v2132, %v2192
    %v2217 = vadd.f32 %v2133, %v2212
    %v2218 = vxor.u32 %v2214, 2147483648
    %v2219 = vmul.f32 %v2218, 1.442695
    %v2220 = vpow.pop %v2219
    %v2221 = vadd.f32 %v2220, 1.0
    %v2222 = vrcp.pop %v2221
    %v2223 = vmul.f32 %v2221, %v2222
    %v2224 = vsub.f32 1.0, %v2223
    %v2225 = vmul.f32 %v2222, %v2224
    %v2226 = vadd.f32 %v2222, %v2225
    %vm2227 = vweird.f32 %v2221
    %vm2228 = vweird.f32 %v2222
    %vm2229 = vmor %vm2227, %vm2228
    %v2230 = vsel %vm2229, %v2222, %v2226
    %v2231 = vand.u32 2147483647, %v2221
    %vm2232 = vcmp.eq.f32.partialorder %v2231, 8.507059e+37
    %v2233 = vand.u32 %v2221, 2147483648
    %v2234 = vor.u32 1.1754944e-38, %v2233
    %v2235 = vsel %vm2232, %v2234, %v2230
    %v2236 = vmul.f32 1.0, %v2235
    %v2237 = vxor.u32 %v2215, 2147483648
    %v2238 = vmul.f32 %v2237, 1.442695
    %v2239 = vpow.pop %v2238
    %v2240 = vadd.f32 %v2239, 1.0
    %v2241 = vrcp.pop %v2240
    %v2242 = vmul.f32 %v2240, %v2241
    %v2243 = vsub.f32 1.0, %v2242
    %v2244 = vmul.f32 %v2241, %v2243
    %v2245 = vadd.f32 %v2241, %v2244
    %vm2246 = vweird.f32 %v2240
    %vm2247 = vweird.f32 %v2241
    %vm2248 = vmor %vm2246, %vm2247
    %v2249 = vsel %vm2248, %v2241, %v2245
    %v2250 = vand.u32 2147483647, %v2240
    %vm2251 = vcmp.eq.f32.partialorder %v2250, 8.507059e+37
    %v2252 = vand.u32 %v2240, 2147483648
    %v2253 = vor.u32 1.1754944e-38, %v2252
    %v2254 = vsel %vm2251, %v2253, %v2249
    %v2255 = vmul.f32 1.0, %v2254
    %v2256 = vtanh.pop %v2216
    %v2257 = vxor.u32 %v2217, 2147483648
    %v2258 = vmul.f32 %v2257, 1.442695
    %v2259 = vpow.pop %v2258
    %v2260 = vadd.f32 %v2259, 1.0
    %v2261 = vrcp.pop %v2260
    %v2262 = vmul.f32 %v2260, %v2261
    %v2263 = vsub.f32 1.0, %v2262
    %v2264 = vmul.f32 %v2261, %v2263
    %v2265 = vadd.f32 %v2261, %v2264
    %vm2266 = vweird.f32 %v2260
    %vm2267 = vweird.f32 %v2261
    %vm2268 = vmor %vm2266, %vm2267
    %v2269 = vsel %vm2268, %v2261, %v2265
    %v2270 = vand.u32 2147483647, %v2260
    %vm2271 = vcmp.eq.f32.partialorder %v2270, 8.507059e+37
    %v2272 = vand.u32 %v2260, 2147483648
    %v2273 = vor.u32 1.1754944e-38, %v2272
    %v2274 = vsel %vm2271, %v2273, %v2269
    %v2275 = vmul.f32 1.0, %v2274
    %v2276 = vmul.f32 %v2255, %v2127
    %v2277 = vmul.f32 %v2236, %v2256
    %v2278 = vadd.f32 %v2276, %v2277
    %v2279 = vtanh.pop %v2278
    %v2280 = vmul.f32 %v2275, %v2279
    %v2281 = vld [vmem:[%s703] sm:$0xff]
    %v2282 = vld [vmem:[%s703 + $0x8] sm:$0xff]
    %v2283 = vld [vmem:[%s703 + $0x10] sm:$0xff]
    %v2284 = vld [vmem:[%s703 + $0x18] sm:$0xff]
    %2285 = vmatpush.msra.mxu0 %v1975
    %2286 = vmatpush.msra.mxu0 %v1971
    %2287 = vmatpush.msra.mxu0 %v1967
    %2288 = vmatpush.msra.mxu0 %v1963
    %2289 = vmatpush.msra.mxu0 %v1959
    %2290 = vmatpush.msra.mxu0 %v1955
    %2291 = vmatpush.msra.mxu0 %v1951
    %2292 = vmatpush.msra.mxu0 %v1947
    %2293 = vmatpush.msra.mxu0 %v1943
    %2294 = vmatpush.msra.mxu0 %v1939
    %2295 = vmatpush.msra.mxu0 %v1935
    %2296 = vmatpush.msra.mxu0 %v1931
    %2297 = vmatpush.msra.mxu0 %v1927
    %2298 = vmatpush.msra.mxu0 %v1923
    %2299 = vmatpush.msra.mxu0 %v1919
    %2300 = vmatpush.msra.mxu0 %v1915
    %2301 = vmatmul.f32.gmra.mxu0 %v2280
    %v2302 = vpop.f32.mrf.mxu0
    %v2303 = vadd.f32 0.0, %v2302
    %2304 = vdwg.mxu0
    %2305 = vmatpush.msra.mxu0 %v1976
    %2306 = vmatpush.msra.mxu0 %v1972
    %2307 = vmatpush.msra.mxu0 %v1968
    %2308 = vmatpush.msra.mxu0 %v1964
    %2309 = vmatpush.msra.mxu0 %v1960
    %2310 = vmatpush.msra.mxu0 %v1956
    %2311 = vmatpush.msra.mxu0 %v1952
    %2312 = vmatpush.msra.mxu0 %v1948
    %2313 = vmatpush.msra.mxu0 %v1944
    %2314 = vmatpush.msra.mxu0 %v1940
    %2315 = vmatpush.msra.mxu0 %v1936
    %2316 = vmatpush.msra.mxu0 %v1932
    %2317 = vmatpush.msra.mxu0 %v1928
    %2318 = vmatpush.msra.mxu0 %v1924
    %2319 = vmatpush.msra.mxu0 %v1920
    %2320 = vmatpush.msra.mxu0 %v1916
    %2321 = vmatmul.f32.gmra.mxu0 %v2280
    %v2322 = vpop.f32.mrf.mxu0
    %v2323 = vadd.f32 0.0, %v2322
    %2324 = vdwg.mxu0
    %2325 = vmatpush.msra.mxu0 %v1977
    %2326 = vmatpush.msra.mxu0 %v1973
    %2327 = vmatpush.msra.mxu0 %v1969
    %2328 = vmatpush.msra.mxu0 %v1965
    %2329 = vmatpush.msra.mxu0 %v1961
    %2330 = vmatpush.msra.mxu0 %v1957
    %2331 = vmatpush.msra.mxu0 %v1953
    %2332 = vmatpush.msra.mxu0 %v1949
    %2333 = vmatpush.msra.mxu0 %v1945
    %2334 = vmatpush.msra.mxu0 %v1941
    %2335 = vmatpush.msra.mxu0 %v1937
    %2336 = vmatpush.msra.mxu0 %v1933
    %2337 = vmatpush.msra.mxu0 %v1929
    %2338 = vmatpush.msra.mxu0 %v1925
    %2339 = vmatpush.msra.mxu0 %v1921
    %2340 = vmatpush.msra.mxu0 %v1917
    %2341 = vmatmul.f32.gmra.mxu0 %v2280
    %v2342 = vpop.f32.mrf.mxu0
    %v2343 = vadd.f32 0.0, %v2342
    %2344 = vdwg.mxu0
    %2345 = vmatpush.msra.mxu0 %v1978
    %2346 = vmatpush.msra.mxu0 %v1974
    %2347 = vmatpush.msra.mxu0 %v1970
    %2348 = vmatpush.msra.mxu0 %v1966
    %2349 = vmatpush.msra.mxu0 %v1962
    %2350 = vmatpush.msra.mxu0 %v1958
    %2351 = vmatpush.msra.mxu0 %v1954
    %2352 = vmatpush.msra.mxu0 %v1950
    %2353 = vmatpush.msra.mxu0 %v1946
    %2354 = vmatpush.msra.mxu0 %v1942
    %2355 = vmatpush.msra.mxu0 %v1938
    %2356 = vmatpush.msra.mxu0 %v1934
    %2357 = vmatpush.msra.mxu0 %v1930
    %2358 = vmatpush.msra.mxu0 %v1926
    %2359 = vmatpush.msra.mxu0 %v1922
    %2360 = vmatpush.msra.mxu0 %v1918
    %2361 = vmatmul.f32.gmra.mxu0 %v2280
    %v2362 = vpop.f32.mrf.mxu0
    %v2363 = vadd.f32 0.0, %v2362
    %2364 = vdwg.mxu0
    %v2365 = vadd.f32 %v2281, %v2303
    %v2366 = vadd.f32 %v2282, %v2323
    %v2367 = vadd.f32 %v2283, %v2343
    %v2368 = vadd.f32 %v2284, %v2363
    %v2369 = vxor.u32 %v2365, 2147483648
    %v2370 = vmul.f32 %v2369, 1.442695
    %v2371 = vpow.pop %v2370
    %v2372 = vadd.f32 %v2371, 1.0
    %v2373 = vrcp.pop %v2372
    %v2374 = vmul.f32 %v2372, %v2373
    %v2375 = vsub.f32 1.0, %v2374
    %v2376 = vmul.f32 %v2373, %v2375
    %v2377 = vadd.f32 %v2373, %v2376
    %vm2378 = vweird.f32 %v2372
    %vm2379 = vweird.f32 %v2373
    %vm2380 = vmor %vm2378, %vm2379
    %v2381 = vsel %vm2380, %v2373, %v2377
    %v2382 = vand.u32 2147483647, %v2372
    %vm2383 = vcmp.eq.f32.partialorder %v2382, 8.507059e+37
    %v2384 = vand.u32 %v2372, 2147483648
    %v2385 = vor.u32 1.1754944e-38, %v2384
    %v2386 = vsel %vm2383, %v2385, %v2381
    %v2387 = vmul.f32 1.0, %v2386
    %v2388 = vxor.u32 %v2366, 2147483648
    %v2389 = vmul.f32 %v2388, 1.442695
    %v2390 = vpow.pop %v2389
    %v2391 = vadd.f32 %v2390, 1.0
    %v2392 = vrcp.pop %v2391
    %v2393 = vmul.f32 %v2391, %v2392
    %v2394 = vsub.f32 1.0, %v2393
    %v2395 = vmul.f32 %v2392, %v2394
    %v2396 = vadd.f32 %v2392, %v2395
    %vm2397 = vweird.f32 %v2391
    %vm2398 = vweird.f32 %v2392
    %vm2399 = vmor %vm2397, %vm2398
    %v2400 = vsel %vm2399, %v2392, %v2396
    %v2401 = vand.u32 2147483647, %v2391
    %vm2402 = vcmp.eq.f32.partialorder %v2401, 8.507059e+37
    %v2403 = vand.u32 %v2391, 2147483648
    %v2404 = vor.u32 1.1754944e-38, %v2403
    %v2405 = vsel %vm2402, %v2404, %v2400
    %v2406 = vmul.f32 1.0, %v2405
    %v2407 = vtanh.pop %v2367
    %v2408 = vxor.u32 %v2368, 2147483648
    %v2409 = vmul.f32 %v2408, 1.442695
    %v2410 = vpow.pop %v2409
    %v2411 = vadd.f32 %v2410, 1.0
    %v2412 = vrcp.pop %v2411
    %v2413 = vmul.f32 %v2411, %v2412
    %v2414 = vsub.f32 1.0, %v2413
    %v2415 = vmul.f32 %v2412, %v2414
    %v2416 = vadd.f32 %v2412, %v2415
    %vm2417 = vweird.f32 %v2411
    %vm2418 = vweird.f32 %v2412
    %vm2419 = vmor %vm2417, %vm2418
    %v2420 = vsel %vm2419, %v2412, %v2416
    %v2421 = vand.u32 2147483647, %v2411
    %vm2422 = vcmp.eq.f32.partialorder %v2421, 8.507059e+37
    %v2423 = vand.u32 %v2411, 2147483648
    %v2424 = vor.u32 1.1754944e-38, %v2423
    %v2425 = vsel %vm2422, %v2424, %v2420
    %v2426 = vmul.f32 1.0, %v2425
    %v2427 = vmul.f32 %v2406, %v2278
    %v2428 = vmul.f32 %v2387, %v2407
    %v2429 = vadd.f32 %v2427, %v2428
    %v2430 = vtanh.pop %v2429
    %v2431 = vmul.f32 %v2426, %v2430
    %v2432 = vld [vmem:[%s859] sm:$0xff]
    %v2433 = vld [vmem:[%s859 + $0x8] sm:$0xff]
    %v2434 = vld [vmem:[%s859 + $0x10] sm:$0xff]
    %v2435 = vld [vmem:[%s859 + $0x18] sm:$0xff]
    %2436 = vmatpush.msra.mxu0 %v1975
    %2437 = vmatpush.msra.mxu0 %v1971
    %2438 = vmatpush.msra.mxu0 %v1967
    %2439 = vmatpush.msra.mxu0 %v1963
    %2440 = vmatpush.msra.mxu0 %v1959
    %2441 = vmatpush.msra.mxu0 %v1955
    %2442 = vmatpush.msra.mxu0 %v1951
    %2443 = vmatpush.msra.mxu0 %v1947
    %2444 = vmatpush.msra.mxu0 %v1943
    %2445 = vmatpush.msra.mxu0 %v1939
    %2446 = vmatpush.msra.mxu0 %v1935
    %2447 = vmatpush.msra.mxu0 %v1931
    %2448 = vmatpush.msra.mxu0 %v1927
    %2449 = vmatpush.msra.mxu0 %v1923
    %2450 = vmatpush.msra.mxu0 %v1919
    %2451 = vmatpush.msra.mxu0 %v1915
    %2452 = vmatmul.f32.gmra.mxu0 %v2431
    %v2453 = vpop.f32.mrf.mxu0
    %v2454 = vadd.f32 0.0, %v2453
    %2455 = vdwg.mxu0
    %2456 = vmatpush.msra.mxu0 %v1976
    %2457 = vmatpush.msra.mxu0 %v1972
    %2458 = vmatpush.msra.mxu0 %v1968
    %2459 = vmatpush.msra.mxu0 %v1964
    %2460 = vmatpush.msra.mxu0 %v1960
    %2461 = vmatpush.msra.mxu0 %v1956
    %2462 = vmatpush.msra.mxu0 %v1952
    %2463 = vmatpush.msra.mxu0 %v1948
    %2464 = vmatpush.msra.mxu0 %v1944
    %2465 = vmatpush.msra.mxu0 %v1940
    %2466 = vmatpush.msra.mxu0 %v1936
    %2467 = vmatpush.msra.mxu0 %v1932
    %2468 = vmatpush.msra.mxu0 %v1928
    %2469 = vmatpush.msra.mxu0 %v1924
    %2470 = vmatpush.msra.mxu0 %v1920
    %2471 = vmatpush.msra.mxu0 %v1916
    %2472 = vmatmul.f32.gmra.mxu0 %v2431
    %v2473 = vpop.f32.mrf.mxu0
    %v2474 = vadd.f32 0.0, %v2473
    %2475 = vdwg.mxu0
    %2476 = vmatpush.msra.mxu0 %v1977
    %2477 = vmatpush.msra.mxu0 %v1973
    %2478 = vmatpush.msra.mxu0 %v1969
    %2479 = vmatpush.msra.mxu0 %v1965
    %2480 = vmatpush.msra.mxu0 %v1961
    %2481 = vmatpush.msra.mxu0 %v1957
    %2482 = vmatpush.msra.mxu0 %v1953
    %2483 = vmatpush.msra.mxu0 %v1949
    %2484 = vmatpush.msra.mxu0 %v1945
    %2485 = vmatpush.msra.mxu0 %v1941
    %2486 = vmatpush.msra.mxu0 %v1937
    %2487 = vmatpush.msra.mxu0 %v1933
    %2488 = vmatpush.msra.mxu0 %v1929
    %2489 = vmatpush.msra.mxu0 %v1925
    %2490 = vmatpush.msra.mxu0 %v1921
    %2491 = vmatpush.msra.mxu0 %v1917
    %2492 = vmatmul.f32.gmra.mxu0 %v2431
    %v2493 = vpop.f32.mrf.mxu0
    %v2494 = vadd.f32 0.0, %v2493
    %2495 = vdwg.mxu0
    %2496 = vmatpush.msra.mxu0 %v1978
    %2497 = vmatpush.msra.mxu0 %v1974
    %2498 = vmatpush.msra.mxu0 %v1970
    %2499 = vmatpush.msra.mxu0 %v1966
    %2500 = vmatpush.msra.mxu0 %v1962
    %2501 = vmatpush.msra.mxu0 %v1958
    %2502 = vmatpush.msra.mxu0 %v1954
    %2503 = vmatpush.msra.mxu0 %v1950
    %2504 = vmatpush.msra.mxu0 %v1946
    %2505 = vmatpush.msra.mxu0 %v1942
    %2506 = vmatpush.msra.mxu0 %v1938
    %2507 = vmatpush.msra.mxu0 %v1934
    %2508 = vmatpush.msra.mxu0 %v1930
    %2509 = vmatpush.msra.mxu0 %v1926
    %2510 = vmatpush.msra.mxu0 %v1922
    %2511 = vmatpush.msra.mxu0 %v1918
    %2512 = vmatmul.f32.gmra.mxu0 %v2431
    %v2513 = vpop.f32.mrf.mxu0
    %v2514 = vadd.f32 0.0, %v2513
    %2515 = vdwg.mxu0
    %v2516 = vadd.f32 %v2432, %v2454
    %v2517 = vadd.f32 %v2433, %v2474
    %v2518 = vadd.f32 %v2434, %v2494
    %v2519 = vadd.f32 %v2435, %v2514
    %v2520 = vxor.u32 %v2516, 2147483648
    %v2521 = vmul.f32 %v2520, 1.442695
    %v2522 = vpow.pop %v2521
    %v2523 = vadd.f32 %v2522, 1.0
    %v2524 = vrcp.pop %v2523
    %v2525 = vmul.f32 %v2523, %v2524
    %v2526 = vsub.f32 1.0, %v2525
    %v2527 = vmul.f32 %v2524, %v2526
    %v2528 = vadd.f32 %v2524, %v2527
    %vm2529 = vweird.f32 %v2523
    %vm2530 = vweird.f32 %v2524
    %vm2531 = vmor %vm2529, %vm2530
    %v2532 = vsel %vm2531, %v2524, %v2528
    %v2533 = vand.u32 2147483647, %v2523
    %vm2534 = vcmp.eq.f32.partialorder %v2533, 8.507059e+37
    %v2535 = vand.u32 %v2523, 2147483648
    %v2536 = vor.u32 1.1754944e-38, %v2535
    %v2537 = vsel %vm2534, %v2536, %v2532
    %v2538 = vmul.f32 1.0, %v2537
    %v2539 = vxor.u32 %v2517, 2147483648
    %v2540 = vmul.f32 %v2539, 1.442695
    %v2541 = vpow.pop %v2540
    %v2542 = vadd.f32 %v2541, 1.0
    %v2543 = vrcp.pop %v2542
    %v2544 = vmul.f32 %v2542, %v2543
    %v2545 = vsub.f32 1.0, %v2544
    %v2546 = vmul.f32 %v2543, %v2545
    %v2547 = vadd.f32 %v2543, %v2546
    %vm2548 = vweird.f32 %v2542
    %vm2549 = vweird.f32 %v2543
    %vm2550 = vmor %vm2548, %vm2549
    %v2551 = vsel %vm2550, %v2543, %v2547
    %v2552 = vand.u32 2147483647, %v2542
    %vm2553 = vcmp.eq.f32.partialorder %v2552, 8.507059e+37
    %v2554 = vand.u32 %v2542, 2147483648
    %v2555 = vor.u32 1.1754944e-38, %v2554
    %v2556 = vsel %vm2553, %v2555, %v2551
    %v2557 = vmul.f32 1.0, %v2556
    %v2558 = vtanh.pop %v2518
    %v2559 = vxor.u32 %v2519, 2147483648
    %v2560 = vmul.f32 %v2559, 1.442695
    %v2561 = vpow.pop %v2560
    %v2562 = vadd.f32 %v2561, 1.0
    %v2563 = vrcp.pop %v2562
    %v2564 = vmul.f32 %v2562, %v2563
    %v2565 = vsub.f32 1.0, %v2564
    %v2566 = vmul.f32 %v2563, %v2565
    %v2567 = vadd.f32 %v2563, %v2566
    %vm2568 = vweird.f32 %v2562
    %vm2569 = vweird.f32 %v2563
    %vm2570 = vmor %vm2568, %vm2569
    %v2571 = vsel %vm2570, %v2563, %v2567
    %v2572 = vand.u32 2147483647, %v2562
    %vm2573 = vcmp.eq.f32.partialorder %v2572, 8.507059e+37
    %v2574 = vand.u32 %v2562, 2147483648
    %v2575 = vor.u32 1.1754944e-38, %v2574
    %v2576 = vsel %vm2573, %v2575, %v2571
    %v2577 = vmul.f32 1.0, %v2576
    %v2578 = vmul.f32 %v2557, %v2429
    %v2579 = vmul.f32 %v2538, %v2558
    %v2580 = vadd.f32 %v2578, %v2579
    %v2581 = vtanh.pop %v2580
    %v2582 = vmul.f32 %v2577, %v2581
    %v2583 = vld [vmem:[%s1015] sm:$0xff]
    %v2584 = vld [vmem:[%s1015 + $0x8] sm:$0xff]
    %v2585 = vld [vmem:[%s1015 + $0x10] sm:$0xff]
    %v2586 = vld [vmem:[%s1015 + $0x18] sm:$0xff]
    %2587 = vmatpush.msra.mxu0 %v1975
    %2588 = vmatpush.msra.mxu0 %v1971
    %2589 = vmatpush.msra.mxu0 %v1967
    %2590 = vmatpush.msra.mxu0 %v1963
    %2591 = vmatpush.msra.mxu0 %v1959
    %2592 = vmatpush.msra.mxu0 %v1955
    %2593 = vmatpush.msra.mxu0 %v1951
    %2594 = vmatpush.msra.mxu0 %v1947
    %2595 = vmatpush.msra.mxu0 %v1943
    %2596 = vmatpush.msra.mxu0 %v1939
    %2597 = vmatpush.msra.mxu0 %v1935
    %2598 = vmatpush.msra.mxu0 %v1931
    %2599 = vmatpush.msra.mxu0 %v1927
    %2600 = vmatpush.msra.mxu0 %v1923
    %2601 = vmatpush.msra.mxu0 %v1919
    %2602 = vmatpush.msra.mxu0 %v1915
    %2603 = vmatmul.f32.gmra.mxu0 %v2582
    %v2604 = vpop.f32.mrf.mxu0
    %v2605 = vadd.f32 0.0, %v2604
    %2606 = vdwg.mxu0
    %2607 = vmatpush.msra.mxu0 %v1976
    %2608 = vmatpush.msra.mxu0 %v1972
    %2609 = vmatpush.msra.mxu0 %v1968
    %2610 = vmatpush.msra.mxu0 %v1964
    %2611 = vmatpush.msra.mxu0 %v1960
    %2612 = vmatpush.msra.mxu0 %v1956
    %2613 = vmatpush.msra.mxu0 %v1952
    %2614 = vmatpush.msra.mxu0 %v1948
    %2615 = vmatpush.msra.mxu0 %v1944
    %2616 = vmatpush.msra.mxu0 %v1940
    %2617 = vmatpush.msra.mxu0 %v1936
    %2618 = vmatpush.msra.mxu0 %v1932
    %2619 = vmatpush.msra.mxu0 %v1928
    %2620 = vmatpush.msra.mxu0 %v1924
    %2621 = vmatpush.msra.mxu0 %v1920
    %2622 = vmatpush.msra.mxu0 %v1916
    %2623 = vmatmul.f32.gmra.mxu0 %v2582
    %v2624 = vpop.f32.mrf.mxu0
    %v2625 = vadd.f32 0.0, %v2624
    %2626 = vdwg.mxu0
    %2627 = vmatpush.msra.mxu0 %v1977
    %2628 = vmatpush.msra.mxu0 %v1973
    %2629 = vmatpush.msra.mxu0 %v1969
    %2630 = vmatpush.msra.mxu0 %v1965
    %2631 = vmatpush.msra.mxu0 %v1961
    %2632 = vmatpush.msra.mxu0 %v1957
    %2633 = vmatpush.msra.mxu0 %v1953
    %2634 = vmatpush.msra.mxu0 %v1949
    %2635 = vmatpush.msra.mxu0 %v1945
    %2636 = vmatpush.msra.mxu0 %v1941
    %2637 = vmatpush.msra.mxu0 %v1937
    %2638 = vmatpush.msra.mxu0 %v1933
    %2639 = vmatpush.msra.mxu0 %v1929
    %2640 = vmatpush.msra.mxu0 %v1925
    %2641 = vmatpush.msra.mxu0 %v1921
    %2642 = vmatpush.msra.mxu0 %v1917
    %2643 = vmatmul.f32.gmra.mxu0 %v2582
    %v2644 = vpop.f32.mrf.mxu0
    %v2645 = vadd.f32 0.0, %v2644
    %2646 = vdwg.mxu0
    %2647 = vmatpush.msra.mxu0 %v1978
    %2648 = vmatpush.msra.mxu0 %v1974
    %2649 = vmatpush.msra.mxu0 %v1970
    %2650 = vmatpush.msra.mxu0 %v1966
    %2651 = vmatpush.msra.mxu0 %v1962
    %2652 = vmatpush.msra.mxu0 %v1958
    %2653 = vmatpush.msra.mxu0 %v1954
    %2654 = vmatpush.msra.mxu0 %v1950
    %2655 = vmatpush.msra.mxu0 %v1946
    %2656 = vmatpush.msra.mxu0 %v1942
    %2657 = vmatpush.msra.mxu0 %v1938
    %2658 = vmatpush.msra.mxu0 %v1934
    %2659 = vmatpush.msra.mxu0 %v1930
    %2660 = vmatpush.msra.mxu0 %v1926
    %2661 = vmatpush.msra.mxu0 %v1922
    %2662 = vmatpush.msra.mxu0 %v1918
    %2663 = vmatmul.f32.gmra.mxu0 %v2582
    %v2664 = vpop.f32.mrf.mxu0
    %v2665 = vadd.f32 0.0, %v2664
    %2666 = vdwg.mxu0
    %v2667 = vadd.f32 %v2583, %v2605
    %v2668 = vadd.f32 %v2584, %v2625
    %v2669 = vadd.f32 %v2585, %v2645
    %v2670 = vadd.f32 %v2586, %v2665
    %v2671 = vxor.u32 %v2667, 2147483648
    %v2672 = vmul.f32 %v2671, 1.442695
    %v2673 = vpow.pop %v2672
    %v2674 = vadd.f32 %v2673, 1.0
    %v2675 = vrcp.pop %v2674
    %v2676 = vmul.f32 %v2674, %v2675
    %v2677 = vsub.f32 1.0, %v2676
    %v2678 = vmul.f32 %v2675, %v2677
    %v2679 = vadd.f32 %v2675, %v2678
    %vm2680 = vweird.f32 %v2674
    %vm2681 = vweird.f32 %v2675
    %vm2682 = vmor %vm2680, %vm2681
    %v2683 = vsel %vm2682, %v2675, %v2679
    %v2684 = vand.u32 2147483647, %v2674
    %vm2685 = vcmp.eq.f32.partialorder %v2684, 8.507059e+37
    %v2686 = vand.u32 %v2674, 2147483648
    %v2687 = vor.u32 1.1754944e-38, %v2686
    %v2688 = vsel %vm2685, %v2687, %v2683
    %v2689 = vmul.f32 1.0, %v2688
    %v2690 = vxor.u32 %v2668, 2147483648
    %v2691 = vmul.f32 %v2690, 1.442695
    %v2692 = vpow.pop %v2691
    %v2693 = vadd.f32 %v2692, 1.0
    %v2694 = vrcp.pop %v2693
    %v2695 = vmul.f32 %v2693, %v2694
    %v2696 = vsub.f32 1.0, %v2695
    %v2697 = vmul.f32 %v2694, %v2696
    %v2698 = vadd.f32 %v2694, %v2697
    %vm2699 = vweird.f32 %v2693
    %vm2700 = vweird.f32 %v2694
    %vm2701 = vmor %vm2699, %vm2700
    %v2702 = vsel %vm2701, %v2694, %v2698
    %v2703 = vand.u32 2147483647, %v2693
    %vm2704 = vcmp.eq.f32.partialorder %v2703, 8.507059e+37
    %v2705 = vand.u32 %v2693, 2147483648
    %v2706 = vor.u32 1.1754944e-38, %v2705
    %v2707 = vsel %vm2704, %v2706, %v2702
    %v2708 = vmul.f32 1.0, %v2707
    %v2709 = vtanh.pop %v2669
    %v2710 = vxor.u32 %v2670, 2147483648
    %v2711 = vmul.f32 %v2710, 1.442695
    %v2712 = vpow.pop %v2711
    %v2713 = vadd.f32 %v2712, 1.0
    %v2714 = vrcp.pop %v2713
    %v2715 = vmul.f32 %v2713, %v2714
    %v2716 = vsub.f32 1.0, %v2715
    %v2717 = vmul.f32 %v2714, %v2716
    %v2718 = vadd.f32 %v2714, %v2717
    %vm2719 = vweird.f32 %v2713
    %vm2720 = vweird.f32 %v2714
    %vm2721 = vmor %vm2719, %vm2720
    %v2722 = vsel %vm2721, %v2714, %v2718
    %v2723 = vand.u32 2147483647, %v2713
    %vm2724 = vcmp.eq.f32.partialorder %v2723, 8.507059e+37
    %v2725 = vand.u32 %v2713, 2147483648
    %v2726 = vor.u32 1.1754944e-38, %v2725
    %v2727 = vsel %vm2724, %v2726, %v2722
    %v2728 = vmul.f32 1.0, %v2727
    %v2729 = vmul.f32 %v2708, %v2580
    %v2730 = vmul.f32 %v2689, %v2709
    %v2731 = vadd.f32 %v2729, %v2730
    %v2732 = vtanh.pop %v2731
    %v2733 = vmul.f32 %v2728, %v2732
    %v2734 = vld [vmem:[%s1171] sm:$0xff]
    %v2735 = vld [vmem:[%s1171 + $0x8] sm:$0xff]
    %v2736 = vld [vmem:[%s1171 + $0x10] sm:$0xff]
    %v2737 = vld [vmem:[%s1171 + $0x18] sm:$0xff]
    %2738 = vmatpush.msra.mxu0 %v1975
    %2739 = vmatpush.msra.mxu0 %v1971
    %2740 = vmatpush.msra.mxu0 %v1967
    %2741 = vmatpush.msra.mxu0 %v1963
    %2742 = vmatpush.msra.mxu0 %v1959
    %2743 = vmatpush.msra.mxu0 %v1955
    %2744 = vmatpush.msra.mxu0 %v1951
    %2745 = vmatpush.msra.mxu0 %v1947
    %2746 = vmatpush.msra.mxu0 %v1943
    %2747 = vmatpush.msra.mxu0 %v1939
    %2748 = vmatpush.msra.mxu0 %v1935
    %2749 = vmatpush.msra.mxu0 %v1931
    %2750 = vmatpush.msra.mxu0 %v1927
    %2751 = vmatpush.msra.mxu0 %v1923
    %2752 = vmatpush.msra.mxu0 %v1919
    %2753 = vmatpush.msra.mxu0 %v1915
    %2754 = vmatmul.f32.gmra.mxu0 %v2733
    %v2755 = vpop.f32.mrf.mxu0
    %v2756 = vadd.f32 0.0, %v2755
    %2757 = vdwg.mxu0
    %2758 = vmatpush.msra.mxu0 %v1976
    %2759 = vmatpush.msra.mxu0 %v1972
    %2760 = vmatpush.msra.mxu0 %v1968
    %2761 = vmatpush.msra.mxu0 %v1964
    %2762 = vmatpush.msra.mxu0 %v1960
    %2763 = vmatpush.msra.mxu0 %v1956
    %2764 = vmatpush.msra.mxu0 %v1952
    %2765 = vmatpush.msra.mxu0 %v1948
    %2766 = vmatpush.msra.mxu0 %v1944
    %2767 = vmatpush.msra.mxu0 %v1940
    %2768 = vmatpush.msra.mxu0 %v1936
    %2769 = vmatpush.msra.mxu0 %v1932
    %2770 = vmatpush.msra.mxu0 %v1928
    %2771 = vmatpush.msra.mxu0 %v1924
    %2772 = vmatpush.msra.mxu0 %v1920
    %2773 = vmatpush.msra.mxu0 %v1916
    %2774 = vmatmul.f32.gmra.mxu0 %v2733
    %v2775 = vpop.f32.mrf.mxu0
    %v2776 = vadd.f32 0.0, %v2775
    %2777 = vdwg.mxu0
    %2778 = vmatpush.msra.mxu0 %v1977
    %2779 = vmatpush.msra.mxu0 %v1973
    %2780 = vmatpush.msra.mxu0 %v1969
    %2781 = vmatpush.msra.mxu0 %v1965
    %2782 = vmatpush.msra.mxu0 %v1961
    %2783 = vmatpush.msra.mxu0 %v1957
    %2784 = vmatpush.msra.mxu0 %v1953
    %2785 = vmatpush.msra.mxu0 %v1949
    %2786 = vmatpush.msra.mxu0 %v1945
    %2787 = vmatpush.msra.mxu0 %v1941
    %2788 = vmatpush.msra.mxu0 %v1937
    %2789 = vmatpush.msra.mxu0 %v1933
    %2790 = vmatpush.msra.mxu0 %v1929
    %2791 = vmatpush.msra.mxu0 %v1925
    %2792 = vmatpush.msra.mxu0 %v1921
    %2793 = vmatpush.msra.mxu0 %v1917
    %2794 = vmatmul.f32.gmra.mxu0 %v2733
    %v2795 = vpop.f32.mrf.mxu0
    %v2796 = vadd.f32 0.0, %v2795
    %2797 = vdwg.mxu0
    %2798 = vmatpush.msra.mxu0 %v1978
    %2799 = vmatpush.msra.mxu0 %v1974
    %2800 = vmatpush.msra.mxu0 %v1970
    %2801 = vmatpush.msra.mxu0 %v1966
    %2802 = vmatpush.msra.mxu0 %v1962
    %2803 = vmatpush.msra.mxu0 %v1958
    %2804 = vmatpush.msra.mxu0 %v1954
    %2805 = vmatpush.msra.mxu0 %v1950
    %2806 = vmatpush.msra.mxu0 %v1946
    %2807 = vmatpush.msra.mxu0 %v1942
    %2808 = vmatpush.msra.mxu0 %v1938
    %2809 = vmatpush.msra.mxu0 %v1934
    %2810 = vmatpush.msra.mxu0 %v1930
    %2811 = vmatpush.msra.mxu0 %v1926
    %2812 = vmatpush.msra.mxu0 %v1922
    %2813 = vmatpush.msra.mxu0 %v1918
    %2814 = vmatmul.f32.gmra.mxu0 %v2733
    %v2815 = vpop.f32.mrf.mxu0
    %v2816 = vadd.f32 0.0, %v2815
    %2817 = vdwg.mxu0
    %v2818 = vadd.f32 %v2734, %v2756
    %v2819 = vadd.f32 %v2735, %v2776
    %v2820 = vadd.f32 %v2736, %v2796
    %v2821 = vadd.f32 %v2737, %v2816
    %v2822 = vxor.u32 %v2818, 2147483648
    %v2823 = vmul.f32 %v2822, 1.442695
    %v2824 = vpow.pop %v2823
    %v2825 = vadd.f32 %v2824, 1.0
    %v2826 = vrcp.pop %v2825
    %v2827 = vmul.f32 %v2825, %v2826
    %v2828 = vsub.f32 1.0, %v2827
    %v2829 = vmul.f32 %v2826, %v2828
    %v2830 = vadd.f32 %v2826, %v2829
    %vm2831 = vweird.f32 %v2825
    %vm2832 = vweird.f32 %v2826
    %vm2833 = vmor %vm2831, %vm2832
    %v2834 = vsel %vm2833, %v2826, %v2830
    %v2835 = vand.u32 2147483647, %v2825
    %vm2836 = vcmp.eq.f32.partialorder %v2835, 8.507059e+37
    %v2837 = vand.u32 %v2825, 2147483648
    %v2838 = vor.u32 1.1754944e-38, %v2837
    %v2839 = vsel %vm2836, %v2838, %v2834
    %v2840 = vmul.f32 1.0, %v2839
    %v2841 = vxor.u32 %v2819, 2147483648
    %v2842 = vmul.f32 %v2841, 1.442695
    %v2843 = vpow.pop %v2842
    %v2844 = vadd.f32 %v2843, 1.0
    %v2845 = vrcp.pop %v2844
    %v2846 = vmul.f32 %v2844, %v2845
    %v2847 = vsub.f32 1.0, %v2846
    %v2848 = vmul.f32 %v2845, %v2847
    %v2849 = vadd.f32 %v2845, %v2848
    %vm2850 = vweird.f32 %v2844
    %vm2851 = vweird.f32 %v2845
    %vm2852 = vmor %vm2850, %vm2851
    %v2853 = vsel %vm2852, %v2845, %v2849
    %v2854 = vand.u32 2147483647, %v2844
    %vm2855 = vcmp.eq.f32.partialorder %v2854, 8.507059e+37
    %v2856 = vand.u32 %v2844, 2147483648
    %v2857 = vor.u32 1.1754944e-38, %v2856
    %v2858 = vsel %vm2855, %v2857, %v2853
    %v2859 = vmul.f32 1.0, %v2858
    %v2860 = vtanh.pop %v2820
    %v2861 = vxor.u32 %v2821, 2147483648
    %v2862 = vmul.f32 %v2861, 1.442695
    %v2863 = vpow.pop %v2862
    %v2864 = vadd.f32 %v2863, 1.0
    %v2865 = vrcp.pop %v2864
    %v2866 = vmul.f32 %v2864, %v2865
    %v2867 = vsub.f32 1.0, %v2866
    %v2868 = vmul.f32 %v2865, %v2867
    %v2869 = vadd.f32 %v2865, %v2868
    %vm2870 = vweird.f32 %v2864
    %vm2871 = vweird.f32 %v2865
    %vm2872 = vmor %vm2870, %vm2871
    %v2873 = vsel %vm2872, %v2865, %v2869
    %v2874 = vand.u32 2147483647, %v2864
    %vm2875 = vcmp.eq.f32.partialorder %v2874, 8.507059e+37
    %v2876 = vand.u32 %v2864, 2147483648
    %v2877 = vor.u32 1.1754944e-38, %v2876
    %v2878 = vsel %vm2875, %v2877, %v2873
    %v2879 = vmul.f32 1.0, %v2878
    %v2880 = vmul.f32 %v2859, %v2731
    %v2881 = vmul.f32 %v2840, %v2860
    %v2882 = vadd.f32 %v2880, %v2881
    %v2883 = vtanh.pop %v2882
    %v2884 = vmul.f32 %v2879, %v2883
    %v2885 = vld [vmem:[%s1327] sm:$0xff]
    %v2886 = vld [vmem:[%s1327 + $0x8] sm:$0xff]
    %v2887 = vld [vmem:[%s1327 + $0x10] sm:$0xff]
    %v2888 = vld [vmem:[%s1327 + $0x18] sm:$0xff]
    %2889 = vmatpush.msra.mxu0 %v1975
    %2890 = vmatpush.msra.mxu0 %v1971
    %2891 = vmatpush.msra.mxu0 %v1967
    %2892 = vmatpush.msra.mxu0 %v1963
    %2893 = vmatpush.msra.mxu0 %v1959
    %2894 = vmatpush.msra.mxu0 %v1955
    %2895 = vmatpush.msra.mxu0 %v1951
    %2896 = vmatpush.msra.mxu0 %v1947
    %2897 = vmatpush.msra.mxu0 %v1943
    %2898 = vmatpush.msra.mxu0 %v1939
    %2899 = vmatpush.msra.mxu0 %v1935
    %2900 = vmatpush.msra.mxu0 %v1931
    %2901 = vmatpush.msra.mxu0 %v1927
    %2902 = vmatpush.msra.mxu0 %v1923
    %2903 = vmatpush.msra.mxu0 %v1919
    %2904 = vmatpush.msra.mxu0 %v1915
    %2905 = vmatmul.f32.gmra.mxu0 %v2884
    %v2906 = vpop.f32.mrf.mxu0
    %v2907 = vadd.f32 0.0, %v2906
    %2908 = vdwg.mxu0
    %2909 = vmatpush.msra.mxu0 %v1976
    %2910 = vmatpush.msra.mxu0 %v1972
    %2911 = vmatpush.msra.mxu0 %v1968
    %2912 = vmatpush.msra.mxu0 %v1964
    %2913 = vmatpush.msra.mxu0 %v1960
    %2914 = vmatpush.msra.mxu0 %v1956
    %2915 = vmatpush.msra.mxu0 %v1952
    %2916 = vmatpush.msra.mxu0 %v1948
    %2917 = vmatpush.msra.mxu0 %v1944
    %2918 = vmatpush.msra.mxu0 %v1940
    %2919 = vmatpush.msra.mxu0 %v1936
    %2920 = vmatpush.msra.mxu0 %v1932
    %2921 = vmatpush.msra.mxu0 %v1928
    %2922 = vmatpush.msra.mxu0 %v1924
    %2923 = vmatpush.msra.mxu0 %v1920
    %2924 = vmatpush.msra.mxu0 %v1916
    %2925 = vmatmul.f32.gmra.mxu0 %v2884
    %v2926 = vpop.f32.mrf.mxu0
    %v2927 = vadd.f32 0.0, %v2926
    %2928 = vdwg.mxu0
    %2929 = vmatpush.msra.mxu0 %v1977
    %2930 = vmatpush.msra.mxu0 %v1973
    %2931 = vmatpush.msra.mxu0 %v1969
    %2932 = vmatpush.msra.mxu0 %v1965
    %2933 = vmatpush.msra.mxu0 %v1961
    %2934 = vmatpush.msra.mxu0 %v1957
    %2935 = vmatpush.msra.mxu0 %v1953
    %2936 = vmatpush.msra.mxu0 %v1949
    %2937 = vmatpush.msra.mxu0 %v1945
    %2938 = vmatpush.msra.mxu0 %v1941
    %2939 = vmatpush.msra.mxu0 %v1937
    %2940 = vmatpush.msra.mxu0 %v1933
    %2941 = vmatpush.msra.mxu0 %v1929
    %2942 = vmatpush.msra.mxu0 %v1925
    %2943 = vmatpush.msra.mxu0 %v1921
    %2944 = vmatpush.msra.mxu0 %v1917
    %2945 = vmatmul.f32.gmra.mxu0 %v2884
    %v2946 = vpop.f32.mrf.mxu0
    %v2947 = vadd.f32 0.0, %v2946
    %2948 = vdwg.mxu0
    %2949 = vmatpush.msra.mxu0 %v1978
    %2950 = vmatpush.msra.mxu0 %v1974
    %2951 = vmatpush.msra.mxu0 %v1970
    %2952 = vmatpush.msra.mxu0 %v1966
    %2953 = vmatpush.msra.mxu0 %v1962
    %2954 = vmatpush.msra.mxu0 %v1958
    %2955 = vmatpush.msra.mxu0 %v1954
    %2956 = vmatpush.msra.mxu0 %v1950
    %2957 = vmatpush.msra.mxu0 %v1946
    %2958 = vmatpush.msra.mxu0 %v1942
    %2959 = vmatpush.msra.mxu0 %v1938
    %2960 = vmatpush.msra.mxu0 %v1934
    %2961 = vmatpush.msra.mxu0 %v1930
    %2962 = vmatpush.msra.mxu0 %v1926
    %2963 = vmatpush.msra.mxu0 %v1922
    %2964 = vmatpush.msra.mxu0 %v1918
    %2965 = vmatmul.f32.gmra.mxu0 %v2884
    %v2966 = vpop.f32.mrf.mxu0
    %v2967 = vadd.f32 0.0, %v2966
    %2968 = vdwg.mxu0
    %v2969 = vadd.f32 %v2885, %v2907
    %v2970 = vadd.f32 %v2886, %v2927
    %v2971 = vadd.f32 %v2887, %v2947
    %v2972 = vadd.f32 %v2888, %v2967
    %v2973 = vxor.u32 %v2969, 2147483648
    %v2974 = vmul.f32 %v2973, 1.442695
    %v2975 = vpow.pop %v2974
    %v2976 = vadd.f32 %v2975, 1.0
    %v2977 = vrcp.pop %v2976
    %v2978 = vmul.f32 %v2976, %v2977
    %v2979 = vsub.f32 1.0, %v2978
    %v2980 = vmul.f32 %v2977, %v2979
    %v2981 = vadd.f32 %v2977, %v2980
    %vm2982 = vweird.f32 %v2976
    %vm2983 = vweird.f32 %v2977
    %vm2984 = vmor %vm2982, %vm2983
    %v2985 = vsel %vm2984, %v2977, %v2981
    %v2986 = vand.u32 2147483647, %v2976
    %vm2987 = vcmp.eq.f32.partialorder %v2986, 8.507059e+37
    %v2988 = vand.u32 %v2976, 2147483648
    %v2989 = vor.u32 1.1754944e-38, %v2988
    %v2990 = vsel %vm2987, %v2989, %v2985
    %v2991 = vmul.f32 1.0, %v2990
    %v2992 = vxor.u32 %v2970, 2147483648
    %v2993 = vmul.f32 %v2992, 1.442695
    %v2994 = vpow.pop %v2993
    %v2995 = vadd.f32 %v2994, 1.0
    %v2996 = vrcp.pop %v2995
    %v2997 = vmul.f32 %v2995, %v2996
    %v2998 = vsub.f32 1.0, %v2997
    %v2999 = vmul.f32 %v2996, %v2998
    %v3000 = vadd.f32 %v2996, %v2999
    %vm3001 = vweird.f32 %v2995
    %vm3002 = vweird.f32 %v2996
    %vm3003 = vmor %vm3001, %vm3002
    %v3004 = vsel %vm3003, %v2996, %v3000
    %v3005 = vand.u32 2147483647, %v2995
    %vm3006 = vcmp.eq.f32.partialorder %v3005, 8.507059e+37
    %v3007 = vand.u32 %v2995, 2147483648
    %v3008 = vor.u32 1.1754944e-38, %v3007
    %v3009 = vsel %vm3006, %v3008, %v3004
    %v3010 = vmul.f32 1.0, %v3009
    %v3011 = vtanh.pop %v2971
    %v3012 = vxor.u32 %v2972, 2147483648
    %v3013 = vmul.f32 %v3012, 1.442695
    %v3014 = vpow.pop %v3013
    %v3015 = vadd.f32 %v3014, 1.0
    %v3016 = vrcp.pop %v3015
    %v3017 = vmul.f32 %v3015, %v3016
    %v3018 = vsub.f32 1.0, %v3017
    %v3019 = vmul.f32 %v3016, %v3018
    %v3020 = vadd.f32 %v3016, %v3019
    %vm3021 = vweird.f32 %v3015
    %vm3022 = vweird.f32 %v3016
    %vm3023 = vmor %vm3021, %vm3022
    %v3024 = vsel %vm3023, %v3016, %v3020
    %v3025 = vand.u32 2147483647, %v3015
    %vm3026 = vcmp.eq.f32.partialorder %v3025, 8.507059e+37
    %v3027 = vand.u32 %v3015, 2147483648
    %v3028 = vor.u32 1.1754944e-38, %v3027
    %v3029 = vsel %vm3026, %v3028, %v3024
    %v3030 = vmul.f32 1.0, %v3029
    %v3031 = vmul.f32 %v3010, %v2882
    %v3032 = vmul.f32 %v2991, %v3011
    %v3033 = vadd.f32 %v3031, %v3032
    %v3034 = vtanh.pop %v3033
    %v3035 = vmul.f32 %v3030, %v3034
    %v3036 = vld [vmem:[%s1483] sm:$0xff]
    %v3037 = vld [vmem:[%s1483 + $0x8] sm:$0xff]
    %v3038 = vld [vmem:[%s1483 + $0x10] sm:$0xff]
    %v3039 = vld [vmem:[%s1483 + $0x18] sm:$0xff]
    %3040 = vmatpush.msra.mxu0 %v1975
    %3041 = vmatpush.msra.mxu0 %v1971
    %3042 = vmatpush.msra.mxu0 %v1967
    %3043 = vmatpush.msra.mxu0 %v1963
    %3044 = vmatpush.msra.mxu0 %v1959
    %3045 = vmatpush.msra.mxu0 %v1955
    %3046 = vmatpush.msra.mxu0 %v1951
    %3047 = vmatpush.msra.mxu0 %v1947
    %3048 = vmatpush.msra.mxu0 %v1943
    %3049 = vmatpush.msra.mxu0 %v1939
    %3050 = vmatpush.msra.mxu0 %v1935
    %3051 = vmatpush.msra.mxu0 %v1931
    %3052 = vmatpush.msra.mxu0 %v1927
    %3053 = vmatpush.msra.mxu0 %v1923
    %3054 = vmatpush.msra.mxu0 %v1919
    %3055 = vmatpush.msra.mxu0 %v1915
    %3056 = vmatmul.f32.gmra.mxu0 %v3035
    %v3057 = vpop.f32.mrf.mxu0
    %v3058 = vadd.f32 0.0, %v3057
    %3059 = vdwg.mxu0
    %3060 = vmatpush.msra.mxu0 %v1976
    %3061 = vmatpush.msra.mxu0 %v1972
    %3062 = vmatpush.msra.mxu0 %v1968
    %3063 = vmatpush.msra.mxu0 %v1964
    %3064 = vmatpush.msra.mxu0 %v1960
    %3065 = vmatpush.msra.mxu0 %v1956
    %3066 = vmatpush.msra.mxu0 %v1952
    %3067 = vmatpush.msra.mxu0 %v1948
    %3068 = vmatpush.msra.mxu0 %v1944
    %3069 = vmatpush.msra.mxu0 %v1940
    %3070 = vmatpush.msra.mxu0 %v1936
    %3071 = vmatpush.msra.mxu0 %v1932
    %3072 = vmatpush.msra.mxu0 %v1928
    %3073 = vmatpush.msra.mxu0 %v1924
    %3074 = vmatpush.msra.mxu0 %v1920
    %3075 = vmatpush.msra.mxu0 %v1916
    %3076 = vmatmul.f32.gmra.mxu0 %v3035
    %v3077 = vpop.f32.mrf.mxu0
    %v3078 = vadd.f32 0.0, %v3077
    %3079 = vdwg.mxu0
    %3080 = vmatpush.msra.mxu0 %v1977
    %3081 = vmatpush.msra.mxu0 %v1973
    %3082 = vmatpush.msra.mxu0 %v1969
    %3083 = vmatpush.msra.mxu0 %v1965
    %3084 = vmatpush.msra.mxu0 %v1961
    %3085 = vmatpush.msra.mxu0 %v1957
    %3086 = vmatpush.msra.mxu0 %v1953
    %3087 = vmatpush.msra.mxu0 %v1949
    %3088 = vmatpush.msra.mxu0 %v1945
    %3089 = vmatpush.msra.mxu0 %v1941
    %3090 = vmatpush.msra.mxu0 %v1937
    %3091 = vmatpush.msra.mxu0 %v1933
    %3092 = vmatpush.msra.mxu0 %v1929
    %3093 = vmatpush.msra.mxu0 %v1925
    %3094 = vmatpush.msra.mxu0 %v1921
    %3095 = vmatpush.msra.mxu0 %v1917
    %3096 = vmatmul.f32.gmra.mxu0 %v3035
    %v3097 = vpop.f32.mrf.mxu0
    %v3098 = vadd.f32 0.0, %v3097
    %3099 = vdwg.mxu0
    %3100 = vmatpush.msra.mxu0 %v1978
    %3101 = vmatpush.msra.mxu0 %v1974
    %3102 = vmatpush.msra.mxu0 %v1970
    %3103 = vmatpush.msra.mxu0 %v1966
    %3104 = vmatpush.msra.mxu0 %v1962
    %3105 = vmatpush.msra.mxu0 %v1958
    %3106 = vmatpush.msra.mxu0 %v1954
    %3107 = vmatpush.msra.mxu0 %v1950
    %3108 = vmatpush.msra.mxu0 %v1946
    %3109 = vmatpush.msra.mxu0 %v1942
    %3110 = vmatpush.msra.mxu0 %v1938
    %3111 = vmatpush.msra.mxu0 %v1934
    %3112 = vmatpush.msra.mxu0 %v1930
    %3113 = vmatpush.msra.mxu0 %v1926
    %3114 = vmatpush.msra.mxu0 %v1922
    %3115 = vmatpush.msra.mxu0 %v1918
    %3116 = vmatmul.f32.gmra.mxu0 %v3035
    %v3117 = vpop.f32.mrf.mxu0
    %v3118 = vadd.f32 0.0, %v3117
    %3119 = vdwg.mxu0
    %v3120 = vadd.f32 %v3036, %v3058
    %v3121 = vadd.f32 %v3037, %v3078
    %v3122 = vadd.f32 %v3038, %v3098
    %v3123 = vadd.f32 %v3039, %v3118
    %v3124 = vxor.u32 %v3120, 2147483648
    %v3125 = vmul.f32 %v3124, 1.442695
    %v3126 = vpow.pop %v3125
    %v3127 = vadd.f32 %v3126, 1.0
    %v3128 = vrcp.pop %v3127
    %v3129 = vmul.f32 %v3127, %v3128
    %v3130 = vsub.f32 1.0, %v3129
    %v3131 = vmul.f32 %v3128, %v3130
    %v3132 = vadd.f32 %v3128, %v3131
    %vm3133 = vweird.f32 %v3127
    %vm3134 = vweird.f32 %v3128
    %vm3135 = vmor %vm3133, %vm3134
    %v3136 = vsel %vm3135, %v3128, %v3132
    %v3137 = vand.u32 2147483647, %v3127
    %vm3138 = vcmp.eq.f32.partialorder %v3137, 8.507059e+37
    %v3139 = vand.u32 %v3127, 2147483648
    %v3140 = vor.u32 1.1754944e-38, %v3139
    %v3141 = vsel %vm3138, %v3140, %v3136
    %v3142 = vmul.f32 1.0, %v3141
    %v3143 = vxor.u32 %v3121, 2147483648
    %v3144 = vmul.f32 %v3143, 1.442695
    %v3145 = vpow.pop %v3144
    %v3146 = vadd.f32 %v3145, 1.0
    %v3147 = vrcp.pop %v3146
    %v3148 = vmul.f32 %v3146, %v3147
    %v3149 = vsub.f32 1.0, %v3148
    %v3150 = vmul.f32 %v3147, %v3149
    %v3151 = vadd.f32 %v3147, %v3150
    %vm3152 = vweird.f32 %v3146
    %vm3153 = vweird.f32 %v3147
    %vm3154 = vmor %vm3152, %vm3153
    %v3155 = vsel %vm3154, %v3147, %v3151
    %v3156 = vand.u32 2147483647, %v3146
    %vm3157 = vcmp.eq.f32.partialorder %v3156, 8.507059e+37
    %v3158 = vand.u32 %v3146, 2147483648
    %v3159 = vor.u32 1.1754944e-38, %v3158
    %v3160 = vsel %vm3157, %v3159, %v3155
    %v3161 = vmul.f32 1.0, %v3160
    %v3162 = vtanh.pop %v3122
    %v3163 = vxor.u32 %v3123, 2147483648
    %v3164 = vmul.f32 %v3163, 1.442695
    %v3165 = vpow.pop %v3164
    %v3166 = vadd.f32 %v3165, 1.0
    %v3167 = vrcp.pop %v3166
    %v3168 = vmul.f32 %v3166, %v3167
    %v3169 = vsub.f32 1.0, %v3168
    %v3170 = vmul.f32 %v3167, %v3169
    %v3171 = vadd.f32 %v3167, %v3170
    %vm3172 = vweird.f32 %v3166
    %vm3173 = vweird.f32 %v3167
    %vm3174 = vmor %vm3172, %vm3173
    %v3175 = vsel %vm3174, %v3167, %v3171
    %v3176 = vand.u32 2147483647, %v3166
    %vm3177 = vcmp.eq.f32.partialorder %v3176, 8.507059e+37
    %v3178 = vand.u32 %v3166, 2147483648
    %v3179 = vor.u32 1.1754944e-38, %v3178
    %v3180 = vsel %vm3177, %v3179, %v3175
    %v3181 = vmul.f32 1.0, %v3180
    %v3182 = vmul.f32 %v3161, %v3033
    %v3183 = vmul.f32 %v3142, %v3162
    %v3184 = vadd.f32 %v3182, %v3183
    %v3185 = vtanh.pop %v3184
    %v3186 = vmul.f32 %v3181, %v3185
    %v3187 = vld [vmem:[%s7] sm:$0xff]
    %v3188 = vld [vmem:[%s7 + $0x8] sm:$0xff]
    %v3189 = vld [vmem:[%s7 + $0x10] sm:$0xff]
    %v3190 = vld [vmem:[%s7 + $0x18] sm:$0xff]
    %v3191 = vld [vmem:[%s7 + $0x20] sm:$0xff]
    %v3192 = vld [vmem:[%s7 + $0x28] sm:$0xff]
    %v3193 = vld [vmem:[%s7 + $0x30] sm:$0xff]
    %v3194 = vld [vmem:[%s7 + $0x38] sm:$0xff]
    %v3195 = vld [vmem:[%s7 + $0x40] sm:$0xff]
    %v3196 = vld [vmem:[%s7 + $0x48] sm:$0xff]
    %v3197 = vld [vmem:[%s7 + $0x50] sm:$0xff]
    %v3198 = vld [vmem:[%s7 + $0x58] sm:$0xff]
    %v3199 = vld [vmem:[%s7 + $0x60] sm:$0xff]
    %v3200 = vld [vmem:[%s7 + $0x68] sm:$0xff]
    %v3201 = vld [vmem:[%s7 + $0x70] sm:$0xff]
    %v3202 = vld [vmem:[%s7 + $0x78] sm:$0xff]
    %v3203 = vld [vmem:[%s8] sm:$0x1]
    %v3205 = vperm.slane %v3203, 0
    %3207 = vmatpush.msra.mxu0 %v3202
    %3208 = vmatpush.msra.mxu0 %v3201
    %3209 = vmatpush.msra.mxu0 %v3200
    %3210 = vmatpush.msra.mxu0 %v3199
    %3211 = vmatpush.msra.mxu0 %v3198
    %3212 = vmatpush.msra.mxu0 %v3197
    %3213 = vmatpush.msra.mxu0 %v3196
    %3214 = vmatpush.msra.mxu0 %v3195
    %3215 = vmatpush.msra.mxu0 %v3194
    %3216 = vmatpush.msra.mxu0 %v3193
    %3217 = vmatpush.msra.mxu0 %v3192
    %3218 = vmatpush.msra.mxu0 %v3191
    %3219 = vmatpush.msra.mxu0 %v3190
    %3220 = vmatpush.msra.mxu0 %v3189
    %3221 = vmatpush.msra.mxu0 %v3188
    %3222 = vmatpush.msra.mxu0 %v3187
    %3223 = vmatmul.f32.gmra.mxu0 %v3186
    %v3224 = vpop.f32.mrf.mxu0
    %v3225 = vadd.f32 %v3205, %v3224
    %3226 = vdwg.mxu0
    %vm3227 = vcmask 31744
    %3228 = vst.msk [vmem:[%s9] sm:$0xff] %vm3227, %v3225
    // Predicated region
    $region50: #{lstm_model_forward.1} parent=1 // pred_check
      _
    $region51: #{lstm_model_forward.1} parent=1 // pred_check_branch
      %3230 = sbr.rel (0) target = $region53
    $region52: #{lstm_model_forward.1} parent=1 // pred_region
      _
    $region53: #{lstm_model_forward.1} parent=1 // pred_fallthru
      _
    // Predicated region
    $region54: #{lstm_model_forward.1} parent=1 // pred_check
      _
    $region55: #{lstm_model_forward.1} parent=1 // pred_check_branch
      %3232 = sbr.rel (0) target = $region57
    $region56: #{lstm_model_forward.1} parent=1 // pred_region
      _
    $region57: #{lstm_model_forward.1} parent=1 // pred_fallthru
      _
    %3233 = vsyncpa [#allocation5], 1
    %3234 = vsyncpa [#allocation7], 1

</llo_original>
